<compile_context>
chip_gen: v7x
topology: tpu7x:2x2x1
jax: 0.10.0
libtpu: 0.0.40
codegen_flags: <defaults>
</compile_context>

<pallas_src>
import math

import jax
import jax.numpy as jnp
from jax.experimental import pallas as pl
from jax.experimental.pallas import tpu as pltpu

EMB_DIM = 16
NUM_HEADS = 2
HEAD_DIM = EMB_DIM // NUM_HEADS
NUM_FIELDS = 5  # 4 categorical embeddings + 1 price embedding


# ---------------------------------------------------------------------------
# Pallas kernel: one batch tile of TB samples, batch on the lane axis.
# ---------------------------------------------------------------------------
def autoint_kernel(x_ref, w16_ref, w2_ref, w3_ref, b_ref, out_ref, qkv_ref):
    S, E, TB = x_ref.shape          # (5 fields, 16, batch tile on lanes)
    H, Dh = NUM_HEADS, HEAD_DIM
    E3 = 3 * E

    # Coalesced weight/bias slabs (all row offsets are sublane-aligned).
    w_qkv = w16_ref[0:E3, :]                    # (48, 16)  Q rows pre-scaled by 1/sqrt(Dh)
    w_o   = w16_ref[E3:E3 + E, :]               # (16, 16)  MHA out_proj
    w_1   = w16_ref[E3 + E:E3 + E + 64, :]      # (64, 16)  MLP layer 1
    b_qkv = b_ref[0:E3, :]                      # (48, 1)   lane-broadcast biases
    b_o   = b_ref[E3:E3 + E, :]
    b_1   = b_ref[E3 + E:E3 + E + 64, :]
    b_2   = b_ref[E3 + E + 64:E3 + E + 96, :]
    b_3   = b_ref[E3 + E + 96:E3 + E + 97, :]

    # 1) Fused Q/K/V projection: per-field weight-stationary MXU matmuls,
    #    bf16 input upcast in-kernel, f32 accumulation.
    for s in range(S):
        qkv_ref[s] = jnp.dot(w_qkv, x_ref[s].astype(jnp.float32),
                             preferred_element_type=jnp.float32) + b_qkv

    # 2) Attention with batch on lanes.  For each (head, query field) the 5 key
    #    scores are packed into one (S, TB) slab; softmax runs once per slab.
    #    Mean over query fields commutes with the weighted V-sum, so the
    #    normalized probs are averaged first and a single V-sum is done per head.
    head_outs = []
    for h in range(H):
        lo = h * Dh
        p_sum = None                        # sum over query fields of softmax probs
        for i in range(S):
            q_i = qkv_ref[i, lo:lo + Dh, :]                                   # (Dh, TB)
            scores = jnp.concatenate(
                [jnp.sum(q_i * qkv_ref[j, E + lo:E + lo + Dh, :],
                         axis=0, keepdims=True)                               # (1, TB)
                 for j in range(S)], axis=0)                                  # (S, TB)
            m = jnp.max(scores, axis=0, keepdims=True)                        # (1, TB)
            e = jnp.exp(scores - m)                                           # (S, TB)
            denom = jnp.sum(e, axis=0, keepdims=True)                         # (1, TB)
            p_i = e * pl.reciprocal(denom)        # exact reciprocal; EUP has slack
            p_sum = p_i if p_sum is None else p_sum + p_i
        p_mean = p_sum * (1.0 / S)                                            # (S, TB)
        o_h = p_mean[0:1, :] * qkv_ref[0, 2 * E + lo:2 * E + lo + Dh, :]      # (Dh, TB)
        for j in range(1, S):
            o_h = o_h + p_mean[j:j + 1, :] * qkv_ref[j, 2 * E + lo:2 * E + lo + Dh, :]
        head_outs.append(o_h)
    pooled = jnp.concatenate(head_outs, axis=0)                               # (E, TB)

    # 3) Out-projection (mean-pool already folded through it by linearity) + MLP.
    a  = jnp.dot(w_o, pooled, preferred_element_type=jnp.float32) + b_o       # (16, TB)
    h1 = jnp.maximum(jnp.dot(w_1, a, preferred_element_type=jnp.float32) + b_1, 0.0)
    h2 = jnp.maximum(jnp.dot(w2_ref[...], h1,
                             preferred_element_type=jnp.float32) + b_2, 0.0)
    out_ref[...] = jnp.dot(w3_ref[...], h2,
                           preferred_element_type=jnp.float32) + b_3          # (1, TB)


# ---------------------------------------------------------------------------
# Wrapper: 1-D grid over lane-dense batch tiles; weights resident full blocks.
# ---------------------------------------------------------------------------
def autoint_pallas(x_sef, kernel_w, tb=4096):
    """x_sef: (S=5, E=16, B) batch-on-lanes input (bf16 recommended)."""
    S, E, B = x_sef.shape
    assert (S, E) == (NUM_FIELDS, EMB_DIM)
    w16, w2, w3, b_all = kernel_w

    # Large default tile amortises the ~0.35us per-grid-step overhead; shrink
    # for small batches and pad the tail so any B works.  (v7x: keep tb <= B/2
    # so both TensorCores get a grid step; v5e: keep tb <= 4096 for the 16 MiB
    # scoped-VMEM default, or raise vmem_limit_bytes.)
    tb = min(tb, pl.cdiv(B, 128) * 128)
    tb = max(128, (tb // 128) * 128)
    b_pad = pl.cdiv(B, tb) * tb
    x = x_sef if b_pad == B else jnp.pad(x_sef, ((0, 0), (0, 0), (0, b_pad - B)))

    def const_spec(a):
        return pl.BlockSpec(a.shape, lambda i: (0,) * a.ndim)

    out = pl.pallas_call(
        autoint_kernel,
        out_shape=jax.ShapeDtypeStruct((1, b_pad), jnp.float32),
        grid=(b_pad // tb,),
        in_specs=[pl.BlockSpec((S, E, tb), lambda i: (0, 0, i))]
                 + [const_spec(w) for w in (w16, w2, w3, b_all)],
        out_specs=pl.BlockSpec((1, tb), lambda i: (0, i)),          # lane-dense output
        scratch_shapes=[pltpu.VMEM((S, 3 * E, tb), jnp.float32)],   # fused QKV
        compiler_params=pltpu.CompilerParams(
            dimension_semantics=("parallel",)),                     # shard tiles across TCs
    )(x, w16, w2, w3, b_all)
    return out[0, :B]


# ---------------------------------------------------------------------------
# Deterministic parameter construction (PyTorch layouts), then kernel re-layout.
# ---------------------------------------------------------------------------
def make_params(key, field_dims, emb_dim=EMB_DIM):
    ks = iter(jax.random.split(key, 32))

    def nrm(shape, s=0.1):
        return jax.random.normal(next(ks), shape, jnp.float32) * s

    p = {}
    p['emb'] = {name: nrm((dim, emb_dim)) for name, dim in field_dims.items() if dim > 0}
    p['price_w'] = nrm((emb_dim, 1))              # nn.Linear(1, E).weight
    p['price_b'] = nrm((emb_dim,))
    p['in_proj_w'] = nrm((3 * emb_dim, emb_dim))  # MHA in_proj  (3E, E)
    p['in_proj_b'] = nrm((3 * emb_dim,))
    p['out_w'] = nrm((emb_dim, emb_dim))          # MHA out_proj (E, E)
    p['out_b'] = nrm((emb_dim,))
    p['W1'] = nrm((64, emb_dim)); p['b1'] = nrm((64,))
    p['W2'] = nrm((32, 64));      p['b2'] = nrm((32,))
    p['W3'] = nrm((1, 32));       p['b3'] = nrm((1,))
    return p


def kernel_weights(p):
    """Coalesced, weights-on-the-left layouts for the batch-on-lanes kernel."""
    E = EMB_DIM
    scale = 1.0 / math.sqrt(HEAD_DIM)
    row_scale = jnp.concatenate(
        [jnp.full((E,), scale, jnp.float32), jnp.ones((2 * E,), jnp.float32)])
    wqkv = p['in_proj_w'] * row_scale[:, None]        # (48, 16); 1/sqrt(Dh) folded into Q
    bqkv = p['in_proj_b'] * row_scale                 # (48,)
    w16 = jnp.concatenate([wqkv, p['out_w'], p['W1']], axis=0)                        # (128, 16)
    b_all = jnp.concatenate([bqkv, p['out_b'], p['b1'], p['b2'], p['b3']])[:, None]   # (161, 1)
    return (w16, p['W2'], p['W3'], b_all)


def embed_inputs_lanes(p, names, x_cat, price):
    """Builds the kernel's (S, E, B) batch-on-lanes input *directly* in bf16:
    column gathers from pre-transposed embedding tables instead of a post-hoc
    (B,S,E)->(S,E,B) transpose pass over HBM."""
    cols = [p['emb'][name].T.astype(jnp.bfloat16)[:, x_cat[i]]
            for i, name in enumerate(names)]                            # 4 x (E, B)
    price_e = p['price_w'] @ price[None, :] + p['price_b'][:, None]     # (E, B) f32
    cols.append(price_e.astype(jnp.bfloat16))
    return jnp.stack(cols, axis=0)                                      # (5, E, B) bf16


def embed_inputs(p, names, x_cat, price):
    """Standard (B, S, E) f32 layout, used only by the pure-JAX reference."""
    embeds = [p['emb'][name][x_cat[i]] for i, name in enumerate(names)]     # 4 x (B, E)
    price_e = jnp.dot(price[:, None], p['price_w'].T) + p['price_b']        # (B, E)
    return jnp.stack(embeds + [price_e], axis=1)                            # (B, 5, E)


# ---------------------------------------------------------------------------
# Pure-JAX reference (mirrors torch.nn.MultiheadAttention + MLP) for validation.
# ---------------------------------------------------------------------------
def reference_forward(p, inputs):
    B, S, E = inputs.shape
    H, Dh = NUM_HEADS, HEAD_DIM
    qkv = inputs @ p['in_proj_w'].T + p['in_proj_b']
    q, k, v = jnp.split(qkv, 3, axis=-1)

    def heads(t):
        return t.reshape(B, S, H, Dh).transpose(0, 2, 1, 3)

    q, k, v = heads(q), heads(k), heads(v)
    s = jnp.einsum('bhqd,bhkd->bhqk', q, k) / math.sqrt(Dh)
    a = jnp.einsum('bhqk,bhkd->bhqd', jax.nn.softmax(s, axis=-1), v)
    a = a.transpose(0, 2, 1, 3).reshape(B, S, E)
    attn_out = a @ p['out_w'].T + p['out_b']
    pooled = attn_out.mean(axis=1)
    h1 = jax.nn.relu(pooled @ p['W1'].T + p['b1'])
    h2 = jax.nn.relu(h1 @ p['W2'].T + p['b2'])
    return (h2 @ p['W3'].T + p['b3'])[:, 0]


if __name__ == "__main__":
    # synthetic field vocab sizes (stand-ins for the CSV-derived dims); price has no table
    # TODO(synk): real pipeline reads field_dims / rows from the cleaned CSV; synthetic here.
    field_dims = {'user_id': 11, 'item_id': 13, 'category': 7, 'brand': 5, 'price': 0}
    names = [n for n, d in field_dims.items() if d > 0]
    B, TB = 384, 256      # small test: 2 grid steps + a padded tail (default tb=4096 for real use)

    key = jax.random.PRNGKey(0)
    kparam, kdata = jax.random.split(key)
    params = make_params(kparam, field_dims)

    dkeys = jax.random.split(kdata, 5)
    x_cat = [jax.random.randint(dkeys[i], (B,), 0, field_dims[n]) for i, n in enumerate(names)]
    price = jax.random.normal(dkeys[4], (B,), jnp.float32)

    x_sef = embed_inputs_lanes(params, names, x_cat, price)           # (5, 16, B) bf16
    out = autoint_pallas(x_sef, kernel_weights(params), tb=TB)        # (B,)
    out = jax.block_until_ready(out)
    assert out.shape == (B,)

    # tight check: f32 reference run on the exact (bf16-quantized) inputs the kernel saw
    inputs_q = jnp.transpose(x_sef.astype(jnp.float32), (2, 0, 1))    # (B, 5, 16)
    ref_q = reference_forward(params, inputs_q)
    assert jnp.allclose(out, ref_q, atol=1e-3, rtol=1e-3), float(jnp.max(jnp.abs(out - ref_q)))

    # loose check: full-f32 reference; the only gap is the intentional bf16 input cast
    ref = reference_forward(params, embed_inputs(params, names, x_cat, price))
    assert jnp.allclose(out, ref, atol=2e-2, rtol=2e-2), float(jnp.max(jnp.abs(out - ref)))
    print("KERNEL_OK")
</pallas_src>

<mosaic_0001>
module attributes {stable_mosaic.version = 11 : i64} {
  func.func @autoint_kernel(%arg0: i32, %arg1: memref<5x16x256xbf16, #tpu.memory_space<vmem>>, %arg2: memref<128x16xf32, #tpu.memory_space<vmem>>, %arg3: memref<32x64xf32, #tpu.memory_space<vmem>>, %arg4: memref<1x32xf32, #tpu.memory_space<vmem>>, %arg5: memref<161x1xf32, #tpu.memory_space<vmem>>, %arg6: memref<1x256xf32, #tpu.memory_space<vmem>>, %arg7: memref<5x48x256xf32, #tpu.memory_space<vmem>>) attributes {dimension_semantics = [#tpu.dimension_semantics<parallel>], iteration_bounds = array<i64: 2>, scalar_prefetch = 0 : i64, scratch_operands = 1 : i64, tpu.core_type = #tpu.core_type<tc>, window_params = [{transform_indices = @transform_0, window_bounds = array<i64: 5, 16, 256>}, {pipeline_mode = #tpu.pipeline_mode<synchronous>, transform_indices = @transform_1, window_bounds = array<i64: 128, 16>}, {pipeline_mode = #tpu.pipeline_mode<synchronous>, transform_indices = @transform_2, window_bounds = array<i64: 32, 64>}, {pipeline_mode = #tpu.pipeline_mode<synchronous>, transform_indices = @transform_3, window_bounds = array<i64: 1, 32>}, {pipeline_mode = #tpu.pipeline_mode<synchronous>, transform_indices = @transform_4, window_bounds = array<i64: 161, 1>}, {transform_indices = @transform_5, window_bounds = array<i64: 1, 256>}]} {
    %c0 = arith.constant 0 : index
    %c0_0 = arith.constant 0 : index
    %0 = vector.load %arg2[%c0, %c0_0] : memref<128x16xf32, #tpu.memory_space<vmem>>, vector<48x16xf32>
    %c48 = arith.constant 48 : index
    %c0_1 = arith.constant 0 : index
    %1 = vector.load %arg2[%c48, %c0_1] : memref<128x16xf32, #tpu.memory_space<vmem>>, vector<16x16xf32>
    %c64 = arith.constant 64 : index
    %c0_2 = arith.constant 0 : index
    %2 = vector.load %arg2[%c64, %c0_2] : memref<128x16xf32, #tpu.memory_space<vmem>>, vector<64x16xf32>
    %c0_3 = arith.constant 0 : index
    %c0_4 = arith.constant 0 : index
    %3 = vector.load %arg5[%c0_3, %c0_4] : memref<161x1xf32, #tpu.memory_space<vmem>>, vector<48x1xf32>
    %c48_5 = arith.constant 48 : index
    %c0_6 = arith.constant 0 : index
    %4 = vector.load %arg5[%c48_5, %c0_6] : memref<161x1xf32, #tpu.memory_space<vmem>>, vector<16x1xf32>
    %c64_7 = arith.constant 64 : index
    %c0_8 = arith.constant 0 : index
    %5 = vector.load %arg5[%c64_7, %c0_8] : memref<161x1xf32, #tpu.memory_space<vmem>>, vector<64x1xf32>
    %c128 = arith.constant 128 : index
    %c0_9 = arith.constant 0 : index
    %6 = vector.load %arg5[%c128, %c0_9] : memref<161x1xf32, #tpu.memory_space<vmem>>, vector<32x1xf32>
    %c160 = arith.constant 160 : index
    %c0_10 = arith.constant 0 : index
    %7 = vector.load %arg5[%c160, %c0_10] : memref<161x1xf32, #tpu.memory_space<vmem>>, vector<1x1xf32>
    %c0_11 = arith.constant 0 : index
    %c0_12 = arith.constant 0 : index
    %c0_13 = arith.constant 0 : index
    %8 = vector.load %arg1[%c0_11, %c0_12, %c0_13] : memref<5x16x256xbf16, #tpu.memory_space<vmem>>, vector<1x16x256xbf16>
    %9 = vector.shape_cast %8 : vector<1x16x256xbf16> to vector<16x256xbf16>
    %10 = arith.extf %9 : vector<16x256xbf16> to vector<16x256xf32>
    %cst = arith.constant dense<0.000000e+00> : vector<48x256xf32>
    %11 = tpu.matmul %0, %10, %cst {dimension_numbers = #tpu.dot_dimension_numbers<[1], [0], [0], [1], [0, 0, 1, 1], [], []>} : vector<48x16xf32>, vector<16x256xf32>, vector<48x256xf32> -> vector<48x256xf32>
    %12 = vector.broadcast %3 : vector<48x1xf32> to vector<48x256xf32>
    %13 = arith.addf %11, %12 : vector<48x256xf32>
    %c0_14 = arith.constant 0 : index
    %c0_15 = arith.constant 0 : index
    %c0_16 = arith.constant 0 : index
    %14 = vector.load %arg7[%c0_14, %c0_15, %c0_16] : memref<5x48x256xf32, #tpu.memory_space<vmem>>, vector<1x48x256xf32>
    %15 = vector.shape_cast %14 : vector<1x48x256xf32> to vector<48x256xf32>
    %16 = vector.shape_cast %13 : vector<48x256xf32> to vector<1x48x256xf32>
    tpu.vector_store %arg7[%c0_14, %c0_15, %c0_16], %16 {strides = array<i32>} : memref<5x48x256xf32, #tpu.memory_space<vmem>>, vector<1x48x256xf32>,
    %c1 = arith.constant 1 : index
    %c0_17 = arith.constant 0 : index
    %c0_18 = arith.constant 0 : index
    %17 = vector.load %arg1[%c1, %c0_17, %c0_18] : memref<5x16x256xbf16, #tpu.memory_space<vmem>>, vector<1x16x256xbf16>
    %18 = vector.shape_cast %17 : vector<1x16x256xbf16> to vector<16x256xbf16>
    %19 = arith.extf %18 : vector<16x256xbf16> to vector<16x256xf32>
    %cst_19 = arith.constant dense<0.000000e+00> : vector<48x256xf32>
    %20 = tpu.matmul %0, %19, %cst_19 {dimension_numbers = #tpu.dot_dimension_numbers<[1], [0], [0], [1], [0, 0, 1, 1], [], []>} : vector<48x16xf32>, vector<16x256xf32>, vector<48x256xf32> -> vector<48x256xf32>
    %21 = vector.broadcast %3 : vector<48x1xf32> to vector<48x256xf32>
    %22 = arith.addf %20, %21 : vector<48x256xf32>
    %c1_20 = arith.constant 1 : index
    %c0_21 = arith.constant 0 : index
    %c0_22 = arith.constant 0 : index
    %23 = vector.load %arg7[%c1_20, %c0_21, %c0_22] : memref<5x48x256xf32, #tpu.memory_space<vmem>>, vector<1x48x256xf32>
    %24 = vector.shape_cast %23 : vector<1x48x256xf32> to vector<48x256xf32>
    %25 = vector.shape_cast %22 : vector<48x256xf32> to vector<1x48x256xf32>
    tpu.vector_store %arg7[%c1_20, %c0_21, %c0_22], %25 {strides = array<i32>} : memref<5x48x256xf32, #tpu.memory_space<vmem>>, vector<1x48x256xf32>,
    %c2 = arith.constant 2 : index
    %c0_23 = arith.constant 0 : index
    %c0_24 = arith.constant 0 : index
    %26 = vector.load %arg1[%c2, %c0_23, %c0_24] : memref<5x16x256xbf16, #tpu.memory_space<vmem>>, vector<1x16x256xbf16>
    %27 = vector.shape_cast %26 : vector<1x16x256xbf16> to vector<16x256xbf16>
    %28 = arith.extf %27 : vector<16x256xbf16> to vector<16x256xf32>
    %cst_25 = arith.constant dense<0.000000e+00> : vector<48x256xf32>
    %29 = tpu.matmul %0, %28, %cst_25 {dimension_numbers = #tpu.dot_dimension_numbers<[1], [0], [0], [1], [0, 0, 1, 1], [], []>} : vector<48x16xf32>, vector<16x256xf32>, vector<48x256xf32> -> vector<48x256xf32>
    %30 = vector.broadcast %3 : vector<48x1xf32> to vector<48x256xf32>
    %31 = arith.addf %29, %30 : vector<48x256xf32>
    %c2_26 = arith.constant 2 : index
    %c0_27 = arith.constant 0 : index
    %c0_28 = arith.constant 0 : index
    %32 = vector.load %arg7[%c2_26, %c0_27, %c0_28] : memref<5x48x256xf32, #tpu.memory_space<vmem>>, vector<1x48x256xf32>
    %33 = vector.shape_cast %32 : vector<1x48x256xf32> to vector<48x256xf32>
    %34 = vector.shape_cast %31 : vector<48x256xf32> to vector<1x48x256xf32>
    tpu.vector_store %arg7[%c2_26, %c0_27, %c0_28], %34 {strides = array<i32>} : memref<5x48x256xf32, #tpu.memory_space<vmem>>, vector<1x48x256xf32>,
    %c3 = arith.constant 3 : index
    %c0_29 = arith.constant 0 : index
    %c0_30 = arith.constant 0 : index
    %35 = vector.load %arg1[%c3, %c0_29, %c0_30] : memref<5x16x256xbf16, #tpu.memory_space<vmem>>, vector<1x16x256xbf16>
    %36 = vector.shape_cast %35 : vector<1x16x256xbf16> to vector<16x256xbf16>
    %37 = arith.extf %36 : vector<16x256xbf16> to vector<16x256xf32>
    %cst_31 = arith.constant dense<0.000000e+00> : vector<48x256xf32>
    %38 = tpu.matmul %0, %37, %cst_31 {dimension_numbers = #tpu.dot_dimension_numbers<[1], [0], [0], [1], [0, 0, 1, 1], [], []>} : vector<48x16xf32>, vector<16x256xf32>, vector<48x256xf32> -> vector<48x256xf32>
    %39 = vector.broadcast %3 : vector<48x1xf32> to vector<48x256xf32>
    %40 = arith.addf %38, %39 : vector<48x256xf32>
    %c3_32 = arith.constant 3 : index
    %c0_33 = arith.constant 0 : index
    %c0_34 = arith.constant 0 : index
    %41 = vector.load %arg7[%c3_32, %c0_33, %c0_34] : memref<5x48x256xf32, #tpu.memory_space<vmem>>, vector<1x48x256xf32>
    %42 = vector.shape_cast %41 : vector<1x48x256xf32> to vector<48x256xf32>
    %43 = vector.shape_cast %40 : vector<48x256xf32> to vector<1x48x256xf32>
    tpu.vector_store %arg7[%c3_32, %c0_33, %c0_34], %43 {strides = array<i32>} : memref<5x48x256xf32, #tpu.memory_space<vmem>>, vector<1x48x256xf32>,
    %c4 = arith.constant 4 : index
    %c0_35 = arith.constant 0 : index
    %c0_36 = arith.constant 0 : index
    %44 = vector.load %arg1[%c4, %c0_35, %c0_36] : memref<5x16x256xbf16, #tpu.memory_space<vmem>>, vector<1x16x256xbf16>
    %45 = vector.shape_cast %44 : vector<1x16x256xbf16> to vector<16x256xbf16>
    %46 = arith.extf %45 : vector<16x256xbf16> to vector<16x256xf32>
    %cst_37 = arith.constant dense<0.000000e+00> : vector<48x256xf32>
    %47 = tpu.matmul %0, %46, %cst_37 {dimension_numbers = #tpu.dot_dimension_numbers<[1], [0], [0], [1], [0, 0, 1, 1], [], []>} : vector<48x16xf32>, vector<16x256xf32>, vector<48x256xf32> -> vector<48x256xf32>
    %48 = vector.broadcast %3 : vector<48x1xf32> to vector<48x256xf32>
    %49 = arith.addf %47, %48 : vector<48x256xf32>
    %c4_38 = arith.constant 4 : index
    %c0_39 = arith.constant 0 : index
    %c0_40 = arith.constant 0 : index
    %50 = vector.load %arg7[%c4_38, %c0_39, %c0_40] : memref<5x48x256xf32, #tpu.memory_space<vmem>>, vector<1x48x256xf32>
    %51 = vector.shape_cast %50 : vector<1x48x256xf32> to vector<48x256xf32>
    %52 = vector.shape_cast %49 : vector<48x256xf32> to vector<1x48x256xf32>
    tpu.vector_store %arg7[%c4_38, %c0_39, %c0_40], %52 {strides = array<i32>} : memref<5x48x256xf32, #tpu.memory_space<vmem>>, vector<1x48x256xf32>,
    %c0_41 = arith.constant 0 : index
    %c0_42 = arith.constant 0 : index
    %c0_43 = arith.constant 0 : index
    %53 = vector.load %arg7[%c0_41, %c0_42, %c0_43] : memref<5x48x256xf32, #tpu.memory_space<vmem>>, vector<1x8x256xf32>
    %54 = vector.shape_cast %53 : vector<1x8x256xf32> to vector<8x256xf32>
    %c0_44 = arith.constant 0 : index
    %c16 = arith.constant 16 : index
    %c0_45 = arith.constant 0 : index
    %55 = vector.load %arg7[%c0_44, %c16, %c0_45] : memref<5x48x256xf32, #tpu.memory_space<vmem>>, vector<1x8x256xf32>
    %56 = vector.shape_cast %55 : vector<1x8x256xf32> to vector<8x256xf32>
    %57 = arith.mulf %54, %56 : vector<8x256xf32>
    %cst_46 = arith.constant dense<0.000000e+00> : vector<256xf32>
    %58 = vector.multi_reduction <add>, %57, %cst_46 [0] : vector<8x256xf32> to vector<256xf32>
    %59 = vector.shape_cast %58 : vector<256xf32> to vector<1x256xf32>
    %c1_47 = arith.constant 1 : index
    %c16_48 = arith.constant 16 : index
    %c0_49 = arith.constant 0 : index
    %60 = vector.load %arg7[%c1_47, %c16_48, %c0_49] : memref<5x48x256xf32, #tpu.memory_space<vmem>>, vector<1x8x256xf32>
    %61 = vector.shape_cast %60 : vector<1x8x256xf32> to vector<8x256xf32>
    %62 = arith.mulf %54, %61 : vector<8x256xf32>
    %cst_50 = arith.constant dense<0.000000e+00> : vector<256xf32>
    %63 = vector.multi_reduction <add>, %62, %cst_50 [0] : vector<8x256xf32> to vector<256xf32>
    %64 = vector.shape_cast %63 : vector<256xf32> to vector<1x256xf32>
    %c2_51 = arith.constant 2 : index
    %c16_52 = arith.constant 16 : index
    %c0_53 = arith.constant 0 : index
    %65 = vector.load %arg7[%c2_51, %c16_52, %c0_53] : memref<5x48x256xf32, #tpu.memory_space<vmem>>, vector<1x8x256xf32>
    %66 = vector.shape_cast %65 : vector<1x8x256xf32> to vector<8x256xf32>
    %67 = arith.mulf %54, %66 : vector<8x256xf32>
    %cst_54 = arith.constant dense<0.000000e+00> : vector<256xf32>
    %68 = vector.multi_reduction <add>, %67, %cst_54 [0] : vector<8x256xf32> to vector<256xf32>
    %69 = vector.shape_cast %68 : vector<256xf32> to vector<1x256xf32>
    %c3_55 = arith.constant 3 : index
    %c16_56 = arith.constant 16 : index
    %c0_57 = arith.constant 0 : index
    %70 = vector.load %arg7[%c3_55, %c16_56, %c0_57] : memref<5x48x256xf32, #tpu.memory_space<vmem>>, vector<1x8x256xf32>
    %71 = vector.shape_cast %70 : vector<1x8x256xf32> to vector<8x256xf32>
    %72 = arith.mulf %54, %71 : vector<8x256xf32>
    %cst_58 = arith.constant dense<0.000000e+00> : vector<256xf32>
    %73 = vector.multi_reduction <add>, %72, %cst_58 [0] : vector<8x256xf32> to vector<256xf32>
    %74 = vector.shape_cast %73 : vector<256xf32> to vector<1x256xf32>
    %c4_59 = arith.constant 4 : index
    %c16_60 = arith.constant 16 : index
    %c0_61 = arith.constant 0 : index
    %75 = vector.load %arg7[%c4_59, %c16_60, %c0_61] : memref<5x48x256xf32, #tpu.memory_space<vmem>>, vector<1x8x256xf32>
    %76 = vector.shape_cast %75 : vector<1x8x256xf32> to vector<8x256xf32>
    %77 = arith.mulf %54, %76 : vector<8x256xf32>
    %cst_62 = arith.constant dense<0.000000e+00> : vector<256xf32>
    %78 = vector.multi_reduction <add>, %77, %cst_62 [0] : vector<8x256xf32> to vector<256xf32>
    %79 = vector.shape_cast %78 : vector<256xf32> to vector<1x256xf32>
    %80 = tpu.concatenate %59, %64, %69, %74, %79 in 0 : vector<1x256xf32>, vector<1x256xf32>, vector<1x256xf32>, vector<1x256xf32>, vector<1x256xf32> -> vector<5x256xf32>
    %cst_63 = arith.constant dense<0xFF800000> : vector<256xf32>
    %81 = vector.multi_reduction <maximumf>, %80, %cst_63 [0] : vector<5x256xf32> to vector<256xf32>
    %82 = vector.shape_cast %81 : vector<256xf32> to vector<1x256xf32>
    %83 = vector.broadcast %82 : vector<1x256xf32> to vector<5x256xf32>
    %84 = arith.subf %80, %83 : vector<5x256xf32>
    %85 = math.exp %84 : vector<5x256xf32>
    %cst_64 = arith.constant dense<0.000000e+00> : vector<256xf32>
    %86 = vector.multi_reduction <add>, %85, %cst_64 [0] : vector<5x256xf32> to vector<256xf32>
    %87 = vector.shape_cast %86 : vector<256xf32> to vector<1x256xf32>
    %88 = tpu.reciprocal %87 : vector<1x256xf32> -> vector<1x256xf32>
    %89 = vector.broadcast %88 : vector<1x256xf32> to vector<5x256xf32>
    %90 = arith.mulf %85, %89 : vector<5x256xf32>
    %c1_65 = arith.constant 1 : index
    %c0_66 = arith.constant 0 : index
    %c0_67 = arith.constant 0 : index
    %91 = vector.load %arg7[%c1_65, %c0_66, %c0_67] : memref<5x48x256xf32, #tpu.memory_space<vmem>>, vector<1x8x256xf32>
    %92 = vector.shape_cast %91 : vector<1x8x256xf32> to vector<8x256xf32>
    %c0_68 = arith.constant 0 : index
    %c16_69 = arith.constant 16 : index
    %c0_70 = arith.constant 0 : index
    %93 = vector.load %arg7[%c0_68, %c16_69, %c0_70] : memref<5x48x256xf32, #tpu.memory_space<vmem>>, vector<1x8x256xf32>
    %94 = vector.shape_cast %93 : vector<1x8x256xf32> to vector<8x256xf32>
    %95 = arith.mulf %92, %94 : vector<8x256xf32>
    %cst_71 = arith.constant dense<0.000000e+00> : vector<256xf32>
    %96 = vector.multi_reduction <add>, %95, %cst_71 [0] : vector<8x256xf32> to vector<256xf32>
    %97 = vector.shape_cast %96 : vector<256xf32> to vector<1x256xf32>
    %c1_72 = arith.constant 1 : index
    %c16_73 = arith.constant 16 : index
    %c0_74 = arith.constant 0 : index
    %98 = vector.load %arg7[%c1_72, %c16_73, %c0_74] : memref<5x48x256xf32, #tpu.memory_space<vmem>>, vector<1x8x256xf32>
    %99 = vector.shape_cast %98 : vector<1x8x256xf32> to vector<8x256xf32>
    %100 = arith.mulf %92, %99 : vector<8x256xf32>
    %cst_75 = arith.constant dense<0.000000e+00> : vector<256xf32>
    %101 = vector.multi_reduction <add>, %100, %cst_75 [0] : vector<8x256xf32> to vector<256xf32>
    %102 = vector.shape_cast %101 : vector<256xf32> to vector<1x256xf32>
    %c2_76 = arith.constant 2 : index
    %c16_77 = arith.constant 16 : index
    %c0_78 = arith.constant 0 : index
    %103 = vector.load %arg7[%c2_76, %c16_77, %c0_78] : memref<5x48x256xf32, #tpu.memory_space<vmem>>, vector<1x8x256xf32>
    %104 = vector.shape_cast %103 : vector<1x8x256xf32> to vector<8x256xf32>
    %105 = arith.mulf %92, %104 : vector<8x256xf32>
    %cst_79 = arith.constant dense<0.000000e+00> : vector<256xf32>
    %106 = vector.multi_reduction <add>, %105, %cst_79 [0] : vector<8x256xf32> to vector<256xf32>
    %107 = vector.shape_cast %106 : vector<256xf32> to vector<1x256xf32>
    %c3_80 = arith.constant 3 : index
    %c16_81 = arith.constant 16 : index
    %c0_82 = arith.constant 0 : index
    %108 = vector.load %arg7[%c3_80, %c16_81, %c0_82] : memref<5x48x256xf32, #tpu.memory_space<vmem>>, vector<1x8x256xf32>
    %109 = vector.shape_cast %108 : vector<1x8x256xf32> to vector<8x256xf32>
    %110 = arith.mulf %92, %109 : vector<8x256xf32>
    %cst_83 = arith.constant dense<0.000000e+00> : vector<256xf32>
    %111 = vector.multi_reduction <add>, %110, %cst_83 [0] : vector<8x256xf32> to vector<256xf32>
    %112 = vector.shape_cast %111 : vector<256xf32> to vector<1x256xf32>
    %c4_84 = arith.constant 4 : index
    %c16_85 = arith.constant 16 : index
    %c0_86 = arith.constant 0 : index
    %113 = vector.load %arg7[%c4_84, %c16_85, %c0_86] : memref<5x48x256xf32, #tpu.memory_space<vmem>>, vector<1x8x256xf32>
    %114 = vector.shape_cast %113 : vector<1x8x256xf32> to vector<8x256xf32>
    %115 = arith.mulf %92, %114 : vector<8x256xf32>
    %cst_87 = arith.constant dense<0.000000e+00> : vector<256xf32>
    %116 = vector.multi_reduction <add>, %115, %cst_87 [0] : vector<8x256xf32> to vector<256xf32>
    %117 = vector.shape_cast %116 : vector<256xf32> to vector<1x256xf32>
    %118 = tpu.concatenate %97, %102, %107, %112, %117 in 0 : vector<1x256xf32>, vector<1x256xf32>, vector<1x256xf32>, vector<1x256xf32>, vector<1x256xf32> -> vector<5x256xf32>
    %cst_88 = arith.constant dense<0xFF800000> : vector<256xf32>
    %119 = vector.multi_reduction <maximumf>, %118, %cst_88 [0] : vector<5x256xf32> to vector<256xf32>
    %120 = vector.shape_cast %119 : vector<256xf32> to vector<1x256xf32>
    %121 = vector.broadcast %120 : vector<1x256xf32> to vector<5x256xf32>
    %122 = arith.subf %118, %121 : vector<5x256xf32>
    %123 = math.exp %122 : vector<5x256xf32>
    %cst_89 = arith.constant dense<0.000000e+00> : vector<256xf32>
    %124 = vector.multi_reduction <add>, %123, %cst_89 [0] : vector<5x256xf32> to vector<256xf32>
    %125 = vector.shape_cast %124 : vector<256xf32> to vector<1x256xf32>
    %126 = tpu.reciprocal %125 : vector<1x256xf32> -> vector<1x256xf32>
    %127 = vector.broadcast %126 : vector<1x256xf32> to vector<5x256xf32>
    %128 = arith.mulf %123, %127 : vector<5x256xf32>
    %129 = arith.addf %90, %128 : vector<5x256xf32>
    %c2_90 = arith.constant 2 : index
    %c0_91 = arith.constant 0 : index
    %c0_92 = arith.constant 0 : index
    %130 = vector.load %arg7[%c2_90, %c0_91, %c0_92] : memref<5x48x256xf32, #tpu.memory_space<vmem>>, vector<1x8x256xf32>
    %131 = vector.shape_cast %130 : vector<1x8x256xf32> to vector<8x256xf32>
    %c0_93 = arith.constant 0 : index
    %c16_94 = arith.constant 16 : index
    %c0_95 = arith.constant 0 : index
    %132 = vector.load %arg7[%c0_93, %c16_94, %c0_95] : memref<5x48x256xf32, #tpu.memory_space<vmem>>, vector<1x8x256xf32>
    %133 = vector.shape_cast %132 : vector<1x8x256xf32> to vector<8x256xf32>
    %134 = arith.mulf %131, %133 : vector<8x256xf32>
    %cst_96 = arith.constant dense<0.000000e+00> : vector<256xf32>
    %135 = vector.multi_reduction <add>, %134, %cst_96 [0] : vector<8x256xf32> to vector<256xf32>
    %136 = vector.shape_cast %135 : vector<256xf32> to vector<1x256xf32>
    %c1_97 = arith.constant 1 : index
    %c16_98 = arith.constant 16 : index
    %c0_99 = arith.constant 0 : index
    %137 = vector.load %arg7[%c1_97, %c16_98, %c0_99] : memref<5x48x256xf32, #tpu.memory_space<vmem>>, vector<1x8x256xf32>
    %138 = vector.shape_cast %137 : vector<1x8x256xf32> to vector<8x256xf32>
    %139 = arith.mulf %131, %138 : vector<8x256xf32>
    %cst_100 = arith.constant dense<0.000000e+00> : vector<256xf32>
    %140 = vector.multi_reduction <add>, %139, %cst_100 [0] : vector<8x256xf32> to vector<256xf32>
    %141 = vector.shape_cast %140 : vector<256xf32> to vector<1x256xf32>
    %c2_101 = arith.constant 2 : index
    %c16_102 = arith.constant 16 : index
    %c0_103 = arith.constant 0 : index
    %142 = vector.load %arg7[%c2_101, %c16_102, %c0_103] : memref<5x48x256xf32, #tpu.memory_space<vmem>>, vector<1x8x256xf32>
    %143 = vector.shape_cast %142 : vector<1x8x256xf32> to vector<8x256xf32>
    %144 = arith.mulf %131, %143 : vector<8x256xf32>
    %cst_104 = arith.constant dense<0.000000e+00> : vector<256xf32>
    %145 = vector.multi_reduction <add>, %144, %cst_104 [0] : vector<8x256xf32> to vector<256xf32>
    %146 = vector.shape_cast %145 : vector<256xf32> to vector<1x256xf32>
    %c3_105 = arith.constant 3 : index
    %c16_106 = arith.constant 16 : index
    %c0_107 = arith.constant 0 : index
    %147 = vector.load %arg7[%c3_105, %c16_106, %c0_107] : memref<5x48x256xf32, #tpu.memory_space<vmem>>, vector<1x8x256xf32>
    %148 = vector.shape_cast %147 : vector<1x8x256xf32> to vector<8x256xf32>
    %149 = arith.mulf %131, %148 : vector<8x256xf32>
    %cst_108 = arith.constant dense<0.000000e+00> : vector<256xf32>
    %150 = vector.multi_reduction <add>, %149, %cst_108 [0] : vector<8x256xf32> to vector<256xf32>
    %151 = vector.shape_cast %150 : vector<256xf32> to vector<1x256xf32>
    %c4_109 = arith.constant 4 : index
    %c16_110 = arith.constant 16 : index
    %c0_111 = arith.constant 0 : index
    %152 = vector.load %arg7[%c4_109, %c16_110, %c0_111] : memref<5x48x256xf32, #tpu.memory_space<vmem>>, vector<1x8x256xf32>
    %153 = vector.shape_cast %152 : vector<1x8x256xf32> to vector<8x256xf32>
    %154 = arith.mulf %131, %153 : vector<8x256xf32>
    %cst_112 = arith.constant dense<0.000000e+00> : vector<256xf32>
    %155 = vector.multi_reduction <add>, %154, %cst_112 [0] : vector<8x256xf32> to vector<256xf32>
    %156 = vector.shape_cast %155 : vector<256xf32> to vector<1x256xf32>
    %157 = tpu.concatenate %136, %141, %146, %151, %156 in 0 : vector<1x256xf32>, vector<1x256xf32>, vector<1x256xf32>, vector<1x256xf32>, vector<1x256xf32> -> vector<5x256xf32>
    %cst_113 = arith.constant dense<0xFF800000> : vector<256xf32>
    %158 = vector.multi_reduction <maximumf>, %157, %cst_113 [0] : vector<5x256xf32> to vector<256xf32>
    %159 = vector.shape_cast %158 : vector<256xf32> to vector<1x256xf32>
    %160 = vector.broadcast %159 : vector<1x256xf32> to vector<5x256xf32>
    %161 = arith.subf %157, %160 : vector<5x256xf32>
    %162 = math.exp %161 : vector<5x256xf32>
    %cst_114 = arith.constant dense<0.000000e+00> : vector<256xf32>
    %163 = vector.multi_reduction <add>, %162, %cst_114 [0] : vector<5x256xf32> to vector<256xf32>
    %164 = vector.shape_cast %163 : vector<256xf32> to vector<1x256xf32>
    %165 = tpu.reciprocal %164 : vector<1x256xf32> -> vector<1x256xf32>
    %166 = vector.broadcast %165 : vector<1x256xf32> to vector<5x256xf32>
    %167 = arith.mulf %162, %166 : vector<5x256xf32>
    %168 = arith.addf %129, %167 : vector<5x256xf32>
    %c3_115 = arith.constant 3 : index
    %c0_116 = arith.constant 0 : index
    %c0_117 = arith.constant 0 : index
    %169 = vector.load %arg7[%c3_115, %c0_116, %c0_117] : memref<5x48x256xf32, #tpu.memory_space<vmem>>, vector<1x8x256xf32>
    %170 = vector.shape_cast %169 : vector<1x8x256xf32> to vector<8x256xf32>
    %c0_118 = arith.constant 0 : index
    %c16_119 = arith.constant 16 : index
    %c0_120 = arith.constant 0 : index
    %171 = vector.load %arg7[%c0_118, %c16_119, %c0_120] : memref<5x48x256xf32, #tpu.memory_space<vmem>>, vector<1x8x256xf32>
    %172 = vector.shape_cast %171 : vector<1x8x256xf32> to vector<8x256xf32>
    %173 = arith.mulf %170, %172 : vector<8x256xf32>
    %cst_121 = arith.constant dense<0.000000e+00> : vector<256xf32>
    %174 = vector.multi_reduction <add>, %173, %cst_121 [0] : vector<8x256xf32> to vector<256xf32>
    %175 = vector.shape_cast %174 : vector<256xf32> to vector<1x256xf32>
    %c1_122 = arith.constant 1 : index
    %c16_123 = arith.constant 16 : index
    %c0_124 = arith.constant 0 : index
    %176 = vector.load %arg7[%c1_122, %c16_123, %c0_124] : memref<5x48x256xf32, #tpu.memory_space<vmem>>, vector<1x8x256xf32>
    %177 = vector.shape_cast %176 : vector<1x8x256xf32> to vector<8x256xf32>
    %178 = arith.mulf %170, %177 : vector<8x256xf32>
    %cst_125 = arith.constant dense<0.000000e+00> : vector<256xf32>
    %179 = vector.multi_reduction <add>, %178, %cst_125 [0] : vector<8x256xf32> to vector<256xf32>
    %180 = vector.shape_cast %179 : vector<256xf32> to vector<1x256xf32>
    %c2_126 = arith.constant 2 : index
    %c16_127 = arith.constant 16 : index
    %c0_128 = arith.constant 0 : index
    %181 = vector.load %arg7[%c2_126, %c16_127, %c0_128] : memref<5x48x256xf32, #tpu.memory_space<vmem>>, vector<1x8x256xf32>
    %182 = vector.shape_cast %181 : vector<1x8x256xf32> to vector<8x256xf32>
    %183 = arith.mulf %170, %182 : vector<8x256xf32>
    %cst_129 = arith.constant dense<0.000000e+00> : vector<256xf32>
    %184 = vector.multi_reduction <add>, %183, %cst_129 [0] : vector<8x256xf32> to vector<256xf32>
    %185 = vector.shape_cast %184 : vector<256xf32> to vector<1x256xf32>
    %c3_130 = arith.constant 3 : index
    %c16_131 = arith.constant 16 : index
    %c0_132 = arith.constant 0 : index
    %186 = vector.load %arg7[%c3_130, %c16_131, %c0_132] : memref<5x48x256xf32, #tpu.memory_space<vmem>>, vector<1x8x256xf32>
    %187 = vector.shape_cast %186 : vector<1x8x256xf32> to vector<8x256xf32>
    %188 = arith.mulf %170, %187 : vector<8x256xf32>
    %cst_133 = arith.constant dense<0.000000e+00> : vector<256xf32>
    %189 = vector.multi_reduction <add>, %188, %cst_133 [0] : vector<8x256xf32> to vector<256xf32>
    %190 = vector.shape_cast %189 : vector<256xf32> to vector<1x256xf32>
    %c4_134 = arith.constant 4 : index
    %c16_135 = arith.constant 16 : index
    %c0_136 = arith.constant 0 : index
    %191 = vector.load %arg7[%c4_134, %c16_135, %c0_136] : memref<5x48x256xf32, #tpu.memory_space<vmem>>, vector<1x8x256xf32>
    %192 = vector.shape_cast %191 : vector<1x8x256xf32> to vector<8x256xf32>
    %193 = arith.mulf %170, %192 : vector<8x256xf32>
    %cst_137 = arith.constant dense<0.000000e+00> : vector<256xf32>
    %194 = vector.multi_reduction <add>, %193, %cst_137 [0] : vector<8x256xf32> to vector<256xf32>
    %195 = vector.shape_cast %194 : vector<256xf32> to vector<1x256xf32>
    %196 = tpu.concatenate %175, %180, %185, %190, %195 in 0 : vector<1x256xf32>, vector<1x256xf32>, vector<1x256xf32>, vector<1x256xf32>, vector<1x256xf32> -> vector<5x256xf32>
    %cst_138 = arith.constant dense<0xFF800000> : vector<256xf32>
    %197 = vector.multi_reduction <maximumf>, %196, %cst_138 [0] : vector<5x256xf32> to vector<256xf32>
    %198 = vector.shape_cast %197 : vector<256xf32> to vector<1x256xf32>
    %199 = vector.broadcast %198 : vector<1x256xf32> to vector<5x256xf32>
    %200 = arith.subf %196, %199 : vector<5x256xf32>
    %201 = math.exp %200 : vector<5x256xf32>
    %cst_139 = arith.constant dense<0.000000e+00> : vector<256xf32>
    %202 = vector.multi_reduction <add>, %201, %cst_139 [0] : vector<5x256xf32> to vector<256xf32>
    %203 = vector.shape_cast %202 : vector<256xf32> to vector<1x256xf32>
    %204 = tpu.reciprocal %203 : vector<1x256xf32> -> vector<1x256xf32>
    %205 = vector.broadcast %204 : vector<1x256xf32> to vector<5x256xf32>
    %206 = arith.mulf %201, %205 : vector<5x256xf32>
    %207 = arith.addf %168, %206 : vector<5x256xf32>
    %c4_140 = arith.constant 4 : index
    %c0_141 = arith.constant 0 : index
    %c0_142 = arith.constant 0 : index
    %208 = vector.load %arg7[%c4_140, %c0_141, %c0_142] : memref<5x48x256xf32, #tpu.memory_space<vmem>>, vector<1x8x256xf32>
    %209 = vector.shape_cast %208 : vector<1x8x256xf32> to vector<8x256xf32>
    %c0_143 = arith.constant 0 : index
    %c16_144 = arith.constant 16 : index
    %c0_145 = arith.constant 0 : index
    %210 = vector.load %arg7[%c0_143, %c16_144, %c0_145] : memref<5x48x256xf32, #tpu.memory_space<vmem>>, vector<1x8x256xf32>
    %211 = vector.shape_cast %210 : vector<1x8x256xf32> to vector<8x256xf32>
    %212 = arith.mulf %209, %211 : vector<8x256xf32>
    %cst_146 = arith.constant dense<0.000000e+00> : vector<256xf32>
    %213 = vector.multi_reduction <add>, %212, %cst_146 [0] : vector<8x256xf32> to vector<256xf32>
    %214 = vector.shape_cast %213 : vector<256xf32> to vector<1x256xf32>
    %c1_147 = arith.constant 1 : index
    %c16_148 = arith.constant 16 : index
    %c0_149 = arith.constant 0 : index
    %215 = vector.load %arg7[%c1_147, %c16_148, %c0_149] : memref<5x48x256xf32, #tpu.memory_space<vmem>>, vector<1x8x256xf32>
    %216 = vector.shape_cast %215 : vector<1x8x256xf32> to vector<8x256xf32>
    %217 = arith.mulf %209, %216 : vector<8x256xf32>
    %cst_150 = arith.constant dense<0.000000e+00> : vector<256xf32>
    %218 = vector.multi_reduction <add>, %217, %cst_150 [0] : vector<8x256xf32> to vector<256xf32>
    %219 = vector.shape_cast %218 : vector<256xf32> to vector<1x256xf32>
    %c2_151 = arith.constant 2 : index
    %c16_152 = arith.constant 16 : index
    %c0_153 = arith.constant 0 : index
    %220 = vector.load %arg7[%c2_151, %c16_152, %c0_153] : memref<5x48x256xf32, #tpu.memory_space<vmem>>, vector<1x8x256xf32>
    %221 = vector.shape_cast %220 : vector<1x8x256xf32> to vector<8x256xf32>
    %222 = arith.mulf %209, %221 : vector<8x256xf32>
    %cst_154 = arith.constant dense<0.000000e+00> : vector<256xf32>
    %223 = vector.multi_reduction <add>, %222, %cst_154 [0] : vector<8x256xf32> to vector<256xf32>
    %224 = vector.shape_cast %223 : vector<256xf32> to vector<1x256xf32>
    %c3_155 = arith.constant 3 : index
    %c16_156 = arith.constant 16 : index
    %c0_157 = arith.constant 0 : index
    %225 = vector.load %arg7[%c3_155, %c16_156, %c0_157] : memref<5x48x256xf32, #tpu.memory_space<vmem>>, vector<1x8x256xf32>
    %226 = vector.shape_cast %225 : vector<1x8x256xf32> to vector<8x256xf32>
    %227 = arith.mulf %209, %226 : vector<8x256xf32>
    %cst_158 = arith.constant dense<0.000000e+00> : vector<256xf32>
    %228 = vector.multi_reduction <add>, %227, %cst_158 [0] : vector<8x256xf32> to vector<256xf32>
    %229 = vector.shape_cast %228 : vector<256xf32> to vector<1x256xf32>
    %c4_159 = arith.constant 4 : index
    %c16_160 = arith.constant 16 : index
    %c0_161 = arith.constant 0 : index
    %230 = vector.load %arg7[%c4_159, %c16_160, %c0_161] : memref<5x48x256xf32, #tpu.memory_space<vmem>>, vector<1x8x256xf32>
    %231 = vector.shape_cast %230 : vector<1x8x256xf32> to vector<8x256xf32>
    %232 = arith.mulf %209, %231 : vector<8x256xf32>
    %cst_162 = arith.constant dense<0.000000e+00> : vector<256xf32>
    %233 = vector.multi_reduction <add>, %232, %cst_162 [0] : vector<8x256xf32> to vector<256xf32>
    %234 = vector.shape_cast %233 : vector<256xf32> to vector<1x256xf32>
    %235 = tpu.concatenate %214, %219, %224, %229, %234 in 0 : vector<1x256xf32>, vector<1x256xf32>, vector<1x256xf32>, vector<1x256xf32>, vector<1x256xf32> -> vector<5x256xf32>
    %cst_163 = arith.constant dense<0xFF800000> : vector<256xf32>
    %236 = vector.multi_reduction <maximumf>, %235, %cst_163 [0] : vector<5x256xf32> to vector<256xf32>
    %237 = vector.shape_cast %236 : vector<256xf32> to vector<1x256xf32>
    %238 = vector.broadcast %237 : vector<1x256xf32> to vector<5x256xf32>
    %239 = arith.subf %235, %238 : vector<5x256xf32>
    %240 = math.exp %239 : vector<5x256xf32>
    %cst_164 = arith.constant dense<0.000000e+00> : vector<256xf32>
    %241 = vector.multi_reduction <add>, %240, %cst_164 [0] : vector<5x256xf32> to vector<256xf32>
    %242 = vector.shape_cast %241 : vector<256xf32> to vector<1x256xf32>
    %243 = tpu.reciprocal %242 : vector<1x256xf32> -> vector<1x256xf32>
    %244 = vector.broadcast %243 : vector<1x256xf32> to vector<5x256xf32>
    %245 = arith.mulf %240, %244 : vector<5x256xf32>
    %246 = arith.addf %207, %245 : vector<5x256xf32>
    %cst_165 = arith.constant 2.000000e-01 : f32
    %247 = vector.broadcast %cst_165 : f32 to vector<5x256xf32>
    %248 = arith.mulf %246, %247 : vector<5x256xf32>
    %249 = vector.extract_strided_slice %248 {offsets = [0, 0], sizes = [1, 256], strides = [1, 1]} : vector<5x256xf32> to vector<1x256xf32>
    %c0_166 = arith.constant 0 : index
    %c32 = arith.constant 32 : index
    %c0_167 = arith.constant 0 : index
    %250 = vector.load %arg7[%c0_166, %c32, %c0_167] : memref<5x48x256xf32, #tpu.memory_space<vmem>>, vector<1x8x256xf32>
    %251 = vector.shape_cast %250 : vector<1x8x256xf32> to vector<8x256xf32>
    %252 = vector.broadcast %249 : vector<1x256xf32> to vector<8x256xf32>
    %253 = arith.mulf %252, %251 : vector<8x256xf32>
    %254 = vector.extract_strided_slice %248 {offsets = [1, 0], sizes = [1, 256], strides = [1, 1]} : vector<5x256xf32> to vector<1x256xf32>
    %c1_168 = arith.constant 1 : index
    %c32_169 = arith.constant 32 : index
    %c0_170 = arith.constant 0 : index
    %255 = vector.load %arg7[%c1_168, %c32_169, %c0_170] : memref<5x48x256xf32, #tpu.memory_space<vmem>>, vector<1x8x256xf32>
    %256 = vector.shape_cast %255 : vector<1x8x256xf32> to vector<8x256xf32>
    %257 = vector.broadcast %254 : vector<1x256xf32> to vector<8x256xf32>
    %258 = arith.mulf %257, %256 : vector<8x256xf32>
    %259 = arith.addf %253, %258 : vector<8x256xf32>
    %260 = vector.extract_strided_slice %248 {offsets = [2, 0], sizes = [1, 256], strides = [1, 1]} : vector<5x256xf32> to vector<1x256xf32>
    %c2_171 = arith.constant 2 : index
    %c32_172 = arith.constant 32 : index
    %c0_173 = arith.constant 0 : index
    %261 = vector.load %arg7[%c2_171, %c32_172, %c0_173] : memref<5x48x256xf32, #tpu.memory_space<vmem>>, vector<1x8x256xf32>
    %262 = vector.shape_cast %261 : vector<1x8x256xf32> to vector<8x256xf32>
    %263 = vector.broadcast %260 : vector<1x256xf32> to vector<8x256xf32>
    %264 = arith.mulf %263, %262 : vector<8x256xf32>
    %265 = arith.addf %259, %264 : vector<8x256xf32>
    %266 = vector.extract_strided_slice %248 {offsets = [3, 0], sizes = [1, 256], strides = [1, 1]} : vector<5x256xf32> to vector<1x256xf32>
    %c3_174 = arith.constant 3 : index
    %c32_175 = arith.constant 32 : index
    %c0_176 = arith.constant 0 : index
    %267 = vector.load %arg7[%c3_174, %c32_175, %c0_176] : memref<5x48x256xf32, #tpu.memory_space<vmem>>, vector<1x8x256xf32>
    %268 = vector.shape_cast %267 : vector<1x8x256xf32> to vector<8x256xf32>
    %269 = vector.broadcast %266 : vector<1x256xf32> to vector<8x256xf32>
    %270 = arith.mulf %269, %268 : vector<8x256xf32>
    %271 = arith.addf %265, %270 : vector<8x256xf32>
    %272 = vector.extract_strided_slice %248 {offsets = [4, 0], sizes = [1, 256], strides = [1, 1]} : vector<5x256xf32> to vector<1x256xf32>
    %c4_177 = arith.constant 4 : index
    %c32_178 = arith.constant 32 : index
    %c0_179 = arith.constant 0 : index
    %273 = vector.load %arg7[%c4_177, %c32_178, %c0_179] : memref<5x48x256xf32, #tpu.memory_space<vmem>>, vector<1x8x256xf32>
    %274 = vector.shape_cast %273 : vector<1x8x256xf32> to vector<8x256xf32>
    %275 = vector.broadcast %272 : vector<1x256xf32> to vector<8x256xf32>
    %276 = arith.mulf %275, %274 : vector<8x256xf32>
    %277 = arith.addf %271, %276 : vector<8x256xf32>
    %c0_180 = arith.constant 0 : index
    %c8 = arith.constant 8 : index
    %c0_181 = arith.constant 0 : index
    %278 = vector.load %arg7[%c0_180, %c8, %c0_181] : memref<5x48x256xf32, #tpu.memory_space<vmem>>, vector<1x8x256xf32>
    %279 = vector.shape_cast %278 : vector<1x8x256xf32> to vector<8x256xf32>
    %c0_182 = arith.constant 0 : index
    %c24 = arith.constant 24 : index
    %c0_183 = arith.constant 0 : index
    %280 = vector.load %arg7[%c0_182, %c24, %c0_183] : memref<5x48x256xf32, #tpu.memory_space<vmem>>, vector<1x8x256xf32>
    %281 = vector.shape_cast %280 : vector<1x8x256xf32> to vector<8x256xf32>
    %282 = arith.mulf %279, %281 : vector<8x256xf32>
    %cst_184 = arith.constant dense<0.000000e+00> : vector<256xf32>
    %283 = vector.multi_reduction <add>, %282, %cst_184 [0] : vector<8x256xf32> to vector<256xf32>
    %284 = vector.shape_cast %283 : vector<256xf32> to vector<1x256xf32>
    %c1_185 = arith.constant 1 : index
    %c24_186 = arith.constant 24 : index
    %c0_187 = arith.constant 0 : index
    %285 = vector.load %arg7[%c1_185, %c24_186, %c0_187] : memref<5x48x256xf32, #tpu.memory_space<vmem>>, vector<1x8x256xf32>
    %286 = vector.shape_cast %285 : vector<1x8x256xf32> to vector<8x256xf32>
    %287 = arith.mulf %279, %286 : vector<8x256xf32>
    %cst_188 = arith.constant dense<0.000000e+00> : vector<256xf32>
    %288 = vector.multi_reduction <add>, %287, %cst_188 [0] : vector<8x256xf32> to vector<256xf32>
    %289 = vector.shape_cast %288 : vector<256xf32> to vector<1x256xf32>
    %c2_189 = arith.constant 2 : index
    %c24_190 = arith.constant 24 : index
    %c0_191 = arith.constant 0 : index
    %290 = vector.load %arg7[%c2_189, %c24_190, %c0_191] : memref<5x48x256xf32, #tpu.memory_space<vmem>>, vector<1x8x256xf32>
    %291 = vector.shape_cast %290 : vector<1x8x256xf32> to vector<8x256xf32>
    %292 = arith.mulf %279, %291 : vector<8x256xf32>
    %cst_192 = arith.constant dense<0.000000e+00> : vector<256xf32>
    %293 = vector.multi_reduction <add>, %292, %cst_192 [0] : vector<8x256xf32> to vector<256xf32>
    %294 = vector.shape_cast %293 : vector<256xf32> to vector<1x256xf32>
    %c3_193 = arith.constant 3 : index
    %c24_194 = arith.constant 24 : index
    %c0_195 = arith.constant 0 : index
    %295 = vector.load %arg7[%c3_193, %c24_194, %c0_195] : memref<5x48x256xf32, #tpu.memory_space<vmem>>, vector<1x8x256xf32>
    %296 = vector.shape_cast %295 : vector<1x8x256xf32> to vector<8x256xf32>
    %297 = arith.mulf %279, %296 : vector<8x256xf32>
    %cst_196 = arith.constant dense<0.000000e+00> : vector<256xf32>
    %298 = vector.multi_reduction <add>, %297, %cst_196 [0] : vector<8x256xf32> to vector<256xf32>
    %299 = vector.shape_cast %298 : vector<256xf32> to vector<1x256xf32>
    %c4_197 = arith.constant 4 : index
    %c24_198 = arith.constant 24 : index
    %c0_199 = arith.constant 0 : index
    %300 = vector.load %arg7[%c4_197, %c24_198, %c0_199] : memref<5x48x256xf32, #tpu.memory_space<vmem>>, vector<1x8x256xf32>
    %301 = vector.shape_cast %300 : vector<1x8x256xf32> to vector<8x256xf32>
    %302 = arith.mulf %279, %301 : vector<8x256xf32>
    %cst_200 = arith.constant dense<0.000000e+00> : vector<256xf32>
    %303 = vector.multi_reduction <add>, %302, %cst_200 [0] : vector<8x256xf32> to vector<256xf32>
    %304 = vector.shape_cast %303 : vector<256xf32> to vector<1x256xf32>
    %305 = tpu.concatenate %284, %289, %294, %299, %304 in 0 : vector<1x256xf32>, vector<1x256xf32>, vector<1x256xf32>, vector<1x256xf32>, vector<1x256xf32> -> vector<5x256xf32>
    %cst_201 = arith.constant dense<0xFF800000> : vector<256xf32>
    %306 = vector.multi_reduction <maximumf>, %305, %cst_201 [0] : vector<5x256xf32> to vector<256xf32>
    %307 = vector.shape_cast %306 : vector<256xf32> to vector<1x256xf32>
    %308 = vector.broadcast %307 : vector<1x256xf32> to vector<5x256xf32>
    %309 = arith.subf %305, %308 : vector<5x256xf32>
    %310 = math.exp %309 : vector<5x256xf32>
    %cst_202 = arith.constant dense<0.000000e+00> : vector<256xf32>
    %311 = vector.multi_reduction <add>, %310, %cst_202 [0] : vector<5x256xf32> to vector<256xf32>
    %312 = vector.shape_cast %311 : vector<256xf32> to vector<1x256xf32>
    %313 = tpu.reciprocal %312 : vector<1x256xf32> -> vector<1x256xf32>
    %314 = vector.broadcast %313 : vector<1x256xf32> to vector<5x256xf32>
    %315 = arith.mulf %310, %314 : vector<5x256xf32>
    %c1_203 = arith.constant 1 : index
    %c8_204 = arith.constant 8 : index
    %c0_205 = arith.constant 0 : index
    %316 = vector.load %arg7[%c1_203, %c8_204, %c0_205] : memref<5x48x256xf32, #tpu.memory_space<vmem>>, vector<1x8x256xf32>
    %317 = vector.shape_cast %316 : vector<1x8x256xf32> to vector<8x256xf32>
    %c0_206 = arith.constant 0 : index
    %c24_207 = arith.constant 24 : index
    %c0_208 = arith.constant 0 : index
    %318 = vector.load %arg7[%c0_206, %c24_207, %c0_208] : memref<5x48x256xf32, #tpu.memory_space<vmem>>, vector<1x8x256xf32>
    %319 = vector.shape_cast %318 : vector<1x8x256xf32> to vector<8x256xf32>
    %320 = arith.mulf %317, %319 : vector<8x256xf32>
    %cst_209 = arith.constant dense<0.000000e+00> : vector<256xf32>
    %321 = vector.multi_reduction <add>, %320, %cst_209 [0] : vector<8x256xf32> to vector<256xf32>
    %322 = vector.shape_cast %321 : vector<256xf32> to vector<1x256xf32>
    %c1_210 = arith.constant 1 : index
    %c24_211 = arith.constant 24 : index
    %c0_212 = arith.constant 0 : index
    %323 = vector.load %arg7[%c1_210, %c24_211, %c0_212] : memref<5x48x256xf32, #tpu.memory_space<vmem>>, vector<1x8x256xf32>
    %324 = vector.shape_cast %323 : vector<1x8x256xf32> to vector<8x256xf32>
    %325 = arith.mulf %317, %324 : vector<8x256xf32>
    %cst_213 = arith.constant dense<0.000000e+00> : vector<256xf32>
    %326 = vector.multi_reduction <add>, %325, %cst_213 [0] : vector<8x256xf32> to vector<256xf32>
    %327 = vector.shape_cast %326 : vector<256xf32> to vector<1x256xf32>
    %c2_214 = arith.constant 2 : index
    %c24_215 = arith.constant 24 : index
    %c0_216 = arith.constant 0 : index
    %328 = vector.load %arg7[%c2_214, %c24_215, %c0_216] : memref<5x48x256xf32, #tpu.memory_space<vmem>>, vector<1x8x256xf32>
    %329 = vector.shape_cast %328 : vector<1x8x256xf32> to vector<8x256xf32>
    %330 = arith.mulf %317, %329 : vector<8x256xf32>
    %cst_217 = arith.constant dense<0.000000e+00> : vector<256xf32>
    %331 = vector.multi_reduction <add>, %330, %cst_217 [0] : vector<8x256xf32> to vector<256xf32>
    %332 = vector.shape_cast %331 : vector<256xf32> to vector<1x256xf32>
    %c3_218 = arith.constant 3 : index
    %c24_219 = arith.constant 24 : index
    %c0_220 = arith.constant 0 : index
    %333 = vector.load %arg7[%c3_218, %c24_219, %c0_220] : memref<5x48x256xf32, #tpu.memory_space<vmem>>, vector<1x8x256xf32>
    %334 = vector.shape_cast %333 : vector<1x8x256xf32> to vector<8x256xf32>
    %335 = arith.mulf %317, %334 : vector<8x256xf32>
    %cst_221 = arith.constant dense<0.000000e+00> : vector<256xf32>
    %336 = vector.multi_reduction <add>, %335, %cst_221 [0] : vector<8x256xf32> to vector<256xf32>
    %337 = vector.shape_cast %336 : vector<256xf32> to vector<1x256xf32>
    %c4_222 = arith.constant 4 : index
    %c24_223 = arith.constant 24 : index
    %c0_224 = arith.constant 0 : index
    %338 = vector.load %arg7[%c4_222, %c24_223, %c0_224] : memref<5x48x256xf32, #tpu.memory_space<vmem>>, vector<1x8x256xf32>
    %339 = vector.shape_cast %338 : vector<1x8x256xf32> to vector<8x256xf32>
    %340 = arith.mulf %317, %339 : vector<8x256xf32>
    %cst_225 = arith.constant dense<0.000000e+00> : vector<256xf32>
    %341 = vector.multi_reduction <add>, %340, %cst_225 [0] : vector<8x256xf32> to vector<256xf32>
    %342 = vector.shape_cast %341 : vector<256xf32> to vector<1x256xf32>
    %343 = tpu.concatenate %322, %327, %332, %337, %342 in 0 : vector<1x256xf32>, vector<1x256xf32>, vector<1x256xf32>, vector<1x256xf32>, vector<1x256xf32> -> vector<5x256xf32>
    %cst_226 = arith.constant dense<0xFF800000> : vector<256xf32>
    %344 = vector.multi_reduction <maximumf>, %343, %cst_226 [0] : vector<5x256xf32> to vector<256xf32>
    %345 = vector.shape_cast %344 : vector<256xf32> to vector<1x256xf32>
    %346 = vector.broadcast %345 : vector<1x256xf32> to vector<5x256xf32>
    %347 = arith.subf %343, %346 : vector<5x256xf32>
    %348 = math.exp %347 : vector<5x256xf32>
    %cst_227 = arith.constant dense<0.000000e+00> : vector<256xf32>
    %349 = vector.multi_reduction <add>, %348, %cst_227 [0] : vector<5x256xf32> to vector<256xf32>
    %350 = vector.shape_cast %349 : vector<256xf32> to vector<1x256xf32>
    %351 = tpu.reciprocal %350 : vector<1x256xf32> -> vector<1x256xf32>
    %352 = vector.broadcast %351 : vector<1x256xf32> to vector<5x256xf32>
    %353 = arith.mulf %348, %352 : vector<5x256xf32>
    %354 = arith.addf %315, %353 : vector<5x256xf32>
    %c2_228 = arith.constant 2 : index
    %c8_229 = arith.constant 8 : index
    %c0_230 = arith.constant 0 : index
    %355 = vector.load %arg7[%c2_228, %c8_229, %c0_230] : memref<5x48x256xf32, #tpu.memory_space<vmem>>, vector<1x8x256xf32>
    %356 = vector.shape_cast %355 : vector<1x8x256xf32> to vector<8x256xf32>
    %c0_231 = arith.constant 0 : index
    %c24_232 = arith.constant 24 : index
    %c0_233 = arith.constant 0 : index
    %357 = vector.load %arg7[%c0_231, %c24_232, %c0_233] : memref<5x48x256xf32, #tpu.memory_space<vmem>>, vector<1x8x256xf32>
    %358 = vector.shape_cast %357 : vector<1x8x256xf32> to vector<8x256xf32>
    %359 = arith.mulf %356, %358 : vector<8x256xf32>
    %cst_234 = arith.constant dense<0.000000e+00> : vector<256xf32>
    %360 = vector.multi_reduction <add>, %359, %cst_234 [0] : vector<8x256xf32> to vector<256xf32>
    %361 = vector.shape_cast %360 : vector<256xf32> to vector<1x256xf32>
    %c1_235 = arith.constant 1 : index
    %c24_236 = arith.constant 24 : index
    %c0_237 = arith.constant 0 : index
    %362 = vector.load %arg7[%c1_235, %c24_236, %c0_237] : memref<5x48x256xf32, #tpu.memory_space<vmem>>, vector<1x8x256xf32>
    %363 = vector.shape_cast %362 : vector<1x8x256xf32> to vector<8x256xf32>
    %364 = arith.mulf %356, %363 : vector<8x256xf32>
    %cst_238 = arith.constant dense<0.000000e+00> : vector<256xf32>
    %365 = vector.multi_reduction <add>, %364, %cst_238 [0] : vector<8x256xf32> to vector<256xf32>
    %366 = vector.shape_cast %365 : vector<256xf32> to vector<1x256xf32>
    %c2_239 = arith.constant 2 : index
    %c24_240 = arith.constant 24 : index
    %c0_241 = arith.constant 0 : index
    %367 = vector.load %arg7[%c2_239, %c24_240, %c0_241] : memref<5x48x256xf32, #tpu.memory_space<vmem>>, vector<1x8x256xf32>
    %368 = vector.shape_cast %367 : vector<1x8x256xf32> to vector<8x256xf32>
    %369 = arith.mulf %356, %368 : vector<8x256xf32>
    %cst_242 = arith.constant dense<0.000000e+00> : vector<256xf32>
    %370 = vector.multi_reduction <add>, %369, %cst_242 [0] : vector<8x256xf32> to vector<256xf32>
    %371 = vector.shape_cast %370 : vector<256xf32> to vector<1x256xf32>
    %c3_243 = arith.constant 3 : index
    %c24_244 = arith.constant 24 : index
    %c0_245 = arith.constant 0 : index
    %372 = vector.load %arg7[%c3_243, %c24_244, %c0_245] : memref<5x48x256xf32, #tpu.memory_space<vmem>>, vector<1x8x256xf32>
    %373 = vector.shape_cast %372 : vector<1x8x256xf32> to vector<8x256xf32>
    %374 = arith.mulf %356, %373 : vector<8x256xf32>
    %cst_246 = arith.constant dense<0.000000e+00> : vector<256xf32>
    %375 = vector.multi_reduction <add>, %374, %cst_246 [0] : vector<8x256xf32> to vector<256xf32>
    %376 = vector.shape_cast %375 : vector<256xf32> to vector<1x256xf32>
    %c4_247 = arith.constant 4 : index
    %c24_248 = arith.constant 24 : index
    %c0_249 = arith.constant 0 : index
    %377 = vector.load %arg7[%c4_247, %c24_248, %c0_249] : memref<5x48x256xf32, #tpu.memory_space<vmem>>, vector<1x8x256xf32>
    %378 = vector.shape_cast %377 : vector<1x8x256xf32> to vector<8x256xf32>
    %379 = arith.mulf %356, %378 : vector<8x256xf32>
    %cst_250 = arith.constant dense<0.000000e+00> : vector<256xf32>
    %380 = vector.multi_reduction <add>, %379, %cst_250 [0] : vector<8x256xf32> to vector<256xf32>
    %381 = vector.shape_cast %380 : vector<256xf32> to vector<1x256xf32>
    %382 = tpu.concatenate %361, %366, %371, %376, %381 in 0 : vector<1x256xf32>, vector<1x256xf32>, vector<1x256xf32>, vector<1x256xf32>, vector<1x256xf32> -> vector<5x256xf32>
    %cst_251 = arith.constant dense<0xFF800000> : vector<256xf32>
    %383 = vector.multi_reduction <maximumf>, %382, %cst_251 [0] : vector<5x256xf32> to vector<256xf32>
    %384 = vector.shape_cast %383 : vector<256xf32> to vector<1x256xf32>
    %385 = vector.broadcast %384 : vector<1x256xf32> to vector<5x256xf32>
    %386 = arith.subf %382, %385 : vector<5x256xf32>
    %387 = math.exp %386 : vector<5x256xf32>
    %cst_252 = arith.constant dense<0.000000e+00> : vector<256xf32>
    %388 = vector.multi_reduction <add>, %387, %cst_252 [0] : vector<5x256xf32> to vector<256xf32>
    %389 = vector.shape_cast %388 : vector<256xf32> to vector<1x256xf32>
    %390 = tpu.reciprocal %389 : vector<1x256xf32> -> vector<1x256xf32>
    %391 = vector.broadcast %390 : vector<1x256xf32> to vector<5x256xf32>
    %392 = arith.mulf %387, %391 : vector<5x256xf32>
    %393 = arith.addf %354, %392 : vector<5x256xf32>
    %c3_253 = arith.constant 3 : index
    %c8_254 = arith.constant 8 : index
    %c0_255 = arith.constant 0 : index
    %394 = vector.load %arg7[%c3_253, %c8_254, %c0_255] : memref<5x48x256xf32, #tpu.memory_space<vmem>>, vector<1x8x256xf32>
    %395 = vector.shape_cast %394 : vector<1x8x256xf32> to vector<8x256xf32>
    %c0_256 = arith.constant 0 : index
    %c24_257 = arith.constant 24 : index
    %c0_258 = arith.constant 0 : index
    %396 = vector.load %arg7[%c0_256, %c24_257, %c0_258] : memref<5x48x256xf32, #tpu.memory_space<vmem>>, vector<1x8x256xf32>
    %397 = vector.shape_cast %396 : vector<1x8x256xf32> to vector<8x256xf32>
    %398 = arith.mulf %395, %397 : vector<8x256xf32>
    %cst_259 = arith.constant dense<0.000000e+00> : vector<256xf32>
    %399 = vector.multi_reduction <add>, %398, %cst_259 [0] : vector<8x256xf32> to vector<256xf32>
    %400 = vector.shape_cast %399 : vector<256xf32> to vector<1x256xf32>
    %c1_260 = arith.constant 1 : index
    %c24_261 = arith.constant 24 : index
    %c0_262 = arith.constant 0 : index
    %401 = vector.load %arg7[%c1_260, %c24_261, %c0_262] : memref<5x48x256xf32, #tpu.memory_space<vmem>>, vector<1x8x256xf32>
    %402 = vector.shape_cast %401 : vector<1x8x256xf32> to vector<8x256xf32>
    %403 = arith.mulf %395, %402 : vector<8x256xf32>
    %cst_263 = arith.constant dense<0.000000e+00> : vector<256xf32>
    %404 = vector.multi_reduction <add>, %403, %cst_263 [0] : vector<8x256xf32> to vector<256xf32>
    %405 = vector.shape_cast %404 : vector<256xf32> to vector<1x256xf32>
    %c2_264 = arith.constant 2 : index
    %c24_265 = arith.constant 24 : index
    %c0_266 = arith.constant 0 : index
    %406 = vector.load %arg7[%c2_264, %c24_265, %c0_266] : memref<5x48x256xf32, #tpu.memory_space<vmem>>, vector<1x8x256xf32>
    %407 = vector.shape_cast %406 : vector<1x8x256xf32> to vector<8x256xf32>
    %408 = arith.mulf %395, %407 : vector<8x256xf32>
    %cst_267 = arith.constant dense<0.000000e+00> : vector<256xf32>
    %409 = vector.multi_reduction <add>, %408, %cst_267 [0] : vector<8x256xf32> to vector<256xf32>
    %410 = vector.shape_cast %409 : vector<256xf32> to vector<1x256xf32>
    %c3_268 = arith.constant 3 : index
    %c24_269 = arith.constant 24 : index
    %c0_270 = arith.constant 0 : index
    %411 = vector.load %arg7[%c3_268, %c24_269, %c0_270] : memref<5x48x256xf32, #tpu.memory_space<vmem>>, vector<1x8x256xf32>
    %412 = vector.shape_cast %411 : vector<1x8x256xf32> to vector<8x256xf32>
    %413 = arith.mulf %395, %412 : vector<8x256xf32>
    %cst_271 = arith.constant dense<0.000000e+00> : vector<256xf32>
    %414 = vector.multi_reduction <add>, %413, %cst_271 [0] : vector<8x256xf32> to vector<256xf32>
    %415 = vector.shape_cast %414 : vector<256xf32> to vector<1x256xf32>
    %c4_272 = arith.constant 4 : index
    %c24_273 = arith.constant 24 : index
    %c0_274 = arith.constant 0 : index
    %416 = vector.load %arg7[%c4_272, %c24_273, %c0_274] : memref<5x48x256xf32, #tpu.memory_space<vmem>>, vector<1x8x256xf32>
    %417 = vector.shape_cast %416 : vector<1x8x256xf32> to vector<8x256xf32>
    %418 = arith.mulf %395, %417 : vector<8x256xf32>
    %cst_275 = arith.constant dense<0.000000e+00> : vector<256xf32>
    %419 = vector.multi_reduction <add>, %418, %cst_275 [0] : vector<8x256xf32> to vector<256xf32>
    %420 = vector.shape_cast %419 : vector<256xf32> to vector<1x256xf32>
    %421 = tpu.concatenate %400, %405, %410, %415, %420 in 0 : vector<1x256xf32>, vector<1x256xf32>, vector<1x256xf32>, vector<1x256xf32>, vector<1x256xf32> -> vector<5x256xf32>
    %cst_276 = arith.constant dense<0xFF800000> : vector<256xf32>
    %422 = vector.multi_reduction <maximumf>, %421, %cst_276 [0] : vector<5x256xf32> to vector<256xf32>
    %423 = vector.shape_cast %422 : vector<256xf32> to vector<1x256xf32>
    %424 = vector.broadcast %423 : vector<1x256xf32> to vector<5x256xf32>
    %425 = arith.subf %421, %424 : vector<5x256xf32>
    %426 = math.exp %425 : vector<5x256xf32>
    %cst_277 = arith.constant dense<0.000000e+00> : vector<256xf32>
    %427 = vector.multi_reduction <add>, %426, %cst_277 [0] : vector<5x256xf32> to vector<256xf32>
    %428 = vector.shape_cast %427 : vector<256xf32> to vector<1x256xf32>
    %429 = tpu.reciprocal %428 : vector<1x256xf32> -> vector<1x256xf32>
    %430 = vector.broadcast %429 : vector<1x256xf32> to vector<5x256xf32>
    %431 = arith.mulf %426, %430 : vector<5x256xf32>
    %432 = arith.addf %393, %431 : vector<5x256xf32>
    %c4_278 = arith.constant 4 : index
    %c8_279 = arith.constant 8 : index
    %c0_280 = arith.constant 0 : index
    %433 = vector.load %arg7[%c4_278, %c8_279, %c0_280] : memref<5x48x256xf32, #tpu.memory_space<vmem>>, vector<1x8x256xf32>
    %434 = vector.shape_cast %433 : vector<1x8x256xf32> to vector<8x256xf32>
    %c0_281 = arith.constant 0 : index
    %c24_282 = arith.constant 24 : index
    %c0_283 = arith.constant 0 : index
    %435 = vector.load %arg7[%c0_281, %c24_282, %c0_283] : memref<5x48x256xf32, #tpu.memory_space<vmem>>, vector<1x8x256xf32>
    %436 = vector.shape_cast %435 : vector<1x8x256xf32> to vector<8x256xf32>
    %437 = arith.mulf %434, %436 : vector<8x256xf32>
    %cst_284 = arith.constant dense<0.000000e+00> : vector<256xf32>
    %438 = vector.multi_reduction <add>, %437, %cst_284 [0] : vector<8x256xf32> to vector<256xf32>
    %439 = vector.shape_cast %438 : vector<256xf32> to vector<1x256xf32>
    %c1_285 = arith.constant 1 : index
    %c24_286 = arith.constant 24 : index
    %c0_287 = arith.constant 0 : index
    %440 = vector.load %arg7[%c1_285, %c24_286, %c0_287] : memref<5x48x256xf32, #tpu.memory_space<vmem>>, vector<1x8x256xf32>
    %441 = vector.shape_cast %440 : vector<1x8x256xf32> to vector<8x256xf32>
    %442 = arith.mulf %434, %441 : vector<8x256xf32>
    %cst_288 = arith.constant dense<0.000000e+00> : vector<256xf32>
    %443 = vector.multi_reduction <add>, %442, %cst_288 [0] : vector<8x256xf32> to vector<256xf32>
    %444 = vector.shape_cast %443 : vector<256xf32> to vector<1x256xf32>
    %c2_289 = arith.constant 2 : index
    %c24_290 = arith.constant 24 : index
    %c0_291 = arith.constant 0 : index
    %445 = vector.load %arg7[%c2_289, %c24_290, %c0_291] : memref<5x48x256xf32, #tpu.memory_space<vmem>>, vector<1x8x256xf32>
    %446 = vector.shape_cast %445 : vector<1x8x256xf32> to vector<8x256xf32>
    %447 = arith.mulf %434, %446 : vector<8x256xf32>
    %cst_292 = arith.constant dense<0.000000e+00> : vector<256xf32>
    %448 = vector.multi_reduction <add>, %447, %cst_292 [0] : vector<8x256xf32> to vector<256xf32>
    %449 = vector.shape_cast %448 : vector<256xf32> to vector<1x256xf32>
    %c3_293 = arith.constant 3 : index
    %c24_294 = arith.constant 24 : index
    %c0_295 = arith.constant 0 : index
    %450 = vector.load %arg7[%c3_293, %c24_294, %c0_295] : memref<5x48x256xf32, #tpu.memory_space<vmem>>, vector<1x8x256xf32>
    %451 = vector.shape_cast %450 : vector<1x8x256xf32> to vector<8x256xf32>
    %452 = arith.mulf %434, %451 : vector<8x256xf32>
    %cst_296 = arith.constant dense<0.000000e+00> : vector<256xf32>
    %453 = vector.multi_reduction <add>, %452, %cst_296 [0] : vector<8x256xf32> to vector<256xf32>
    %454 = vector.shape_cast %453 : vector<256xf32> to vector<1x256xf32>
    %c4_297 = arith.constant 4 : index
    %c24_298 = arith.constant 24 : index
    %c0_299 = arith.constant 0 : index
    %455 = vector.load %arg7[%c4_297, %c24_298, %c0_299] : memref<5x48x256xf32, #tpu.memory_space<vmem>>, vector<1x8x256xf32>
    %456 = vector.shape_cast %455 : vector<1x8x256xf32> to vector<8x256xf32>
    %457 = arith.mulf %434, %456 : vector<8x256xf32>
    %cst_300 = arith.constant dense<0.000000e+00> : vector<256xf32>
    %458 = vector.multi_reduction <add>, %457, %cst_300 [0] : vector<8x256xf32> to vector<256xf32>
    %459 = vector.shape_cast %458 : vector<256xf32> to vector<1x256xf32>
    %460 = tpu.concatenate %439, %444, %449, %454, %459 in 0 : vector<1x256xf32>, vector<1x256xf32>, vector<1x256xf32>, vector<1x256xf32>, vector<1x256xf32> -> vector<5x256xf32>
    %cst_301 = arith.constant dense<0xFF800000> : vector<256xf32>
    %461 = vector.multi_reduction <maximumf>, %460, %cst_301 [0] : vector<5x256xf32> to vector<256xf32>
    %462 = vector.shape_cast %461 : vector<256xf32> to vector<1x256xf32>
    %463 = vector.broadcast %462 : vector<1x256xf32> to vector<5x256xf32>
    %464 = arith.subf %460, %463 : vector<5x256xf32>
    %465 = math.exp %464 : vector<5x256xf32>
    %cst_302 = arith.constant dense<0.000000e+00> : vector<256xf32>
    %466 = vector.multi_reduction <add>, %465, %cst_302 [0] : vector<5x256xf32> to vector<256xf32>
    %467 = vector.shape_cast %466 : vector<256xf32> to vector<1x256xf32>
    %468 = tpu.reciprocal %467 : vector<1x256xf32> -> vector<1x256xf32>
    %469 = vector.broadcast %468 : vector<1x256xf32> to vector<5x256xf32>
    %470 = arith.mulf %465, %469 : vector<5x256xf32>
    %471 = arith.addf %432, %470 : vector<5x256xf32>
    %cst_303 = arith.constant 2.000000e-01 : f32
    %472 = vector.broadcast %cst_303 : f32 to vector<5x256xf32>
    %473 = arith.mulf %471, %472 : vector<5x256xf32>
    %474 = vector.extract_strided_slice %473 {offsets = [0, 0], sizes = [1, 256], strides = [1, 1]} : vector<5x256xf32> to vector<1x256xf32>
    %c0_304 = arith.constant 0 : index
    %c40 = arith.constant 40 : index
    %c0_305 = arith.constant 0 : index
    %475 = vector.load %arg7[%c0_304, %c40, %c0_305] : memref<5x48x256xf32, #tpu.memory_space<vmem>>, vector<1x8x256xf32>
    %476 = vector.shape_cast %475 : vector<1x8x256xf32> to vector<8x256xf32>
    %477 = vector.broadcast %474 : vector<1x256xf32> to vector<8x256xf32>
    %478 = arith.mulf %477, %476 : vector<8x256xf32>
    %479 = vector.extract_strided_slice %473 {offsets = [1, 0], sizes = [1, 256], strides = [1, 1]} : vector<5x256xf32> to vector<1x256xf32>
    %c1_306 = arith.constant 1 : index
    %c40_307 = arith.constant 40 : index
    %c0_308 = arith.constant 0 : index
    %480 = vector.load %arg7[%c1_306, %c40_307, %c0_308] : memref<5x48x256xf32, #tpu.memory_space<vmem>>, vector<1x8x256xf32>
    %481 = vector.shape_cast %480 : vector<1x8x256xf32> to vector<8x256xf32>
    %482 = vector.broadcast %479 : vector<1x256xf32> to vector<8x256xf32>
    %483 = arith.mulf %482, %481 : vector<8x256xf32>
    %484 = arith.addf %478, %483 : vector<8x256xf32>
    %485 = vector.extract_strided_slice %473 {offsets = [2, 0], sizes = [1, 256], strides = [1, 1]} : vector<5x256xf32> to vector<1x256xf32>
    %c2_309 = arith.constant 2 : index
    %c40_310 = arith.constant 40 : index
    %c0_311 = arith.constant 0 : index
    %486 = vector.load %arg7[%c2_309, %c40_310, %c0_311] : memref<5x48x256xf32, #tpu.memory_space<vmem>>, vector<1x8x256xf32>
    %487 = vector.shape_cast %486 : vector<1x8x256xf32> to vector<8x256xf32>
    %488 = vector.broadcast %485 : vector<1x256xf32> to vector<8x256xf32>
    %489 = arith.mulf %488, %487 : vector<8x256xf32>
    %490 = arith.addf %484, %489 : vector<8x256xf32>
    %491 = vector.extract_strided_slice %473 {offsets = [3, 0], sizes = [1, 256], strides = [1, 1]} : vector<5x256xf32> to vector<1x256xf32>
    %c3_312 = arith.constant 3 : index
    %c40_313 = arith.constant 40 : index
    %c0_314 = arith.constant 0 : index
    %492 = vector.load %arg7[%c3_312, %c40_313, %c0_314] : memref<5x48x256xf32, #tpu.memory_space<vmem>>, vector<1x8x256xf32>
    %493 = vector.shape_cast %492 : vector<1x8x256xf32> to vector<8x256xf32>
    %494 = vector.broadcast %491 : vector<1x256xf32> to vector<8x256xf32>
    %495 = arith.mulf %494, %493 : vector<8x256xf32>
    %496 = arith.addf %490, %495 : vector<8x256xf32>
    %497 = vector.extract_strided_slice %473 {offsets = [4, 0], sizes = [1, 256], strides = [1, 1]} : vector<5x256xf32> to vector<1x256xf32>
    %c4_315 = arith.constant 4 : index
    %c40_316 = arith.constant 40 : index
    %c0_317 = arith.constant 0 : index
    %498 = vector.load %arg7[%c4_315, %c40_316, %c0_317] : memref<5x48x256xf32, #tpu.memory_space<vmem>>, vector<1x8x256xf32>
    %499 = vector.shape_cast %498 : vector<1x8x256xf32> to vector<8x256xf32>
    %500 = vector.broadcast %497 : vector<1x256xf32> to vector<8x256xf32>
    %501 = arith.mulf %500, %499 : vector<8x256xf32>
    %502 = arith.addf %496, %501 : vector<8x256xf32>
    %503 = tpu.concatenate %277, %502 in 0 : vector<8x256xf32>, vector<8x256xf32> -> vector<16x256xf32>
    %cst_318 = arith.constant dense<0.000000e+00> : vector<16x256xf32>
    %504 = tpu.matmul %1, %503, %cst_318 {dimension_numbers = #tpu.dot_dimension_numbers<[1], [0], [0], [1], [0, 0, 1, 1], [], []>} : vector<16x16xf32>, vector<16x256xf32>, vector<16x256xf32> -> vector<16x256xf32>
    %505 = vector.broadcast %4 : vector<16x1xf32> to vector<16x256xf32>
    %506 = arith.addf %504, %505 : vector<16x256xf32>
    %cst_319 = arith.constant dense<0.000000e+00> : vector<64x256xf32>
    %507 = tpu.matmul %2, %506, %cst_319 {dimension_numbers = #tpu.dot_dimension_numbers<[1], [0], [0], [1], [0, 0, 1, 1], [], []>} : vector<64x16xf32>, vector<16x256xf32>, vector<64x256xf32> -> vector<64x256xf32>
    %508 = vector.broadcast %5 : vector<64x1xf32> to vector<64x256xf32>
    %509 = arith.addf %507, %508 : vector<64x256xf32>
    %cst_320 = arith.constant 0.000000e+00 : f32
    %510 = vector.broadcast %cst_320 : f32 to vector<64x256xf32>
    %511 = arith.maximumf %509, %510 : vector<64x256xf32>
    %c0_321 = arith.constant 0 : index
    %c0_322 = arith.constant 0 : index
    %512 = vector.load %arg3[%c0_321, %c0_322] : memref<32x64xf32, #tpu.memory_space<vmem>>, vector<32x64xf32>
    %cst_323 = arith.constant dense<0.000000e+00> : vector<32x256xf32>
    %513 = tpu.matmul %512, %511, %cst_323 {dimension_numbers = #tpu.dot_dimension_numbers<[1], [0], [0], [1], [0, 0, 1, 1], [], []>} : vector<32x64xf32>, vector<64x256xf32>, vector<32x256xf32> -> vector<32x256xf32>
    %514 = vector.broadcast %6 : vector<32x1xf32> to vector<32x256xf32>
    %515 = arith.addf %513, %514 : vector<32x256xf32>
    %cst_324 = arith.constant 0.000000e+00 : f32
    %516 = vector.broadcast %cst_324 : f32 to vector<32x256xf32>
    %517 = arith.maximumf %515, %516 : vector<32x256xf32>
    %c0_325 = arith.constant 0 : index
    %c0_326 = arith.constant 0 : index
    %518 = vector.load %arg4[%c0_325, %c0_326] : memref<1x32xf32, #tpu.memory_space<vmem>>, vector<1x32xf32>
    %cst_327 = arith.constant dense<0.000000e+00> : vector<1x256xf32>
    %519 = tpu.matmul %518, %517, %cst_327 {dimension_numbers = #tpu.dot_dimension_numbers<[1], [0], [0], [1], [0, 0, 1, 1], [], []>} : vector<1x32xf32>, vector<32x256xf32>, vector<1x256xf32> -> vector<1x256xf32>
    %520 = vector.broadcast %7 : vector<1x1xf32> to vector<1x256xf32>
    %521 = arith.addf %519, %520 : vector<1x256xf32>
    %c0_328 = arith.constant 0 : index
    %c0_329 = arith.constant 0 : index
    %522 = vector.load %arg6[%c0_328, %c0_329] : memref<1x256xf32, #tpu.memory_space<vmem>>, vector<1x256xf32>
    tpu.vector_store %arg6[%c0_328, %c0_329], %521 {strides = array<i32>} : memref<1x256xf32, #tpu.memory_space<vmem>>, vector<1x256xf32>,
    return
  }
  func.func @transform_0(%arg0: i32) -> (i32, i32, i32) {
    %c0_i32 = arith.constant 0 : i32
    %c0_i32_0 = arith.constant 0 : i32
    %c0_i32_1 = arith.constant 0 : i32
    return %c0_i32, %c0_i32_0, %arg0 : i32, i32, i32
  }
  func.func @transform_1(%arg0: i32) -> (i32, i32) {
    %c0_i32 = arith.constant 0 : i32
    %c0_i32_0 = arith.constant 0 : i32
    %c0_i32_1 = arith.constant 0 : i32
    return %c0_i32, %c0_i32_0 : i32, i32
  }
  func.func @transform_2(%arg0: i32) -> (i32, i32) {
    %c0_i32 = arith.constant 0 : i32
    %c0_i32_0 = arith.constant 0 : i32
    %c0_i32_1 = arith.constant 0 : i32
    return %c0_i32, %c0_i32_0 : i32, i32
  }
  func.func @transform_3(%arg0: i32) -> (i32, i32) {
    %c0_i32 = arith.constant 0 : i32
    %c0_i32_0 = arith.constant 0 : i32
    %c0_i32_1 = arith.constant 0 : i32
    return %c0_i32, %c0_i32_0 : i32, i32
  }
  func.func @transform_4(%arg0: i32) -> (i32, i32) {
    %c0_i32 = arith.constant 0 : i32
    %c0_i32_0 = arith.constant 0 : i32
    %c0_i32_1 = arith.constant 0 : i32
    return %c0_i32, %c0_i32_0 : i32, i32
  }
  func.func @transform_5(%arg0: i32) -> (i32, i32) {
    %c0_i32 = arith.constant 0 : i32
    %c0_i32_0 = arith.constant 0 : i32
    return %c0_i32, %arg0 : i32, i32
  }
}

</mosaic_0001>

<llo_original>
// kernel: tpu_custom_call.1
$region0: #{tpu_custom_call.1}
  #allocation0 [shape = 'u32[]', space=smem, size = 0x4, offset = 0x4, fixed_abs, tag = 'smem constant byte address 0x4 - core index']
  #allocation1 [shape = 'u32[144,128]{1,0:T(1,128)}', space=vmem, size = 0x12000, scoped, tag = 'internal scratch']
  #allocation2 [shape = 'f32[5,48,256]{2,1,0:T(8,128)}', space=vmem, size = 0x3c000, scoped, tag = 'scratch operand']
  %s0 = inlined_call_operand.vmem [shape: bf16[5,16,512], index: 0, kind: input, shape index: {}]
  %s1 = inlined_call_operand.vmem [shape: f32[128,16], index: 1, kind: input, shape index: {}]
  %s2 = inlined_call_operand.vmem [shape: f32[32,64], index: 2, kind: input, shape index: {}]
  %s3 = inlined_call_operand.vmem [shape: f32[1,32], index: 3, kind: input, shape index: {}]
  %s4 = inlined_call_operand.vmem [shape: f32[161,1], index: 4, kind: input, shape index: {}]
  %s5 = inlined_call_operand.hbm [shape: f32[1,512], index: 5, kind: output, shape index: {}]
  %s6 = sld [smem:[#allocation0]]
  $region91: #{tpu_custom_call.1} parent=0
    _
  %s8 = ssub.s32 1, %s6
  %s9 = scalar_select 0, %s8, %s6
  $region1: #{tpu_custom_call.1} parent=0
    #allocation3 [shape = 'u8[81920]{0}', space=vmem, size = 0x14000, scoped, tag = 'input window, operand 0']
    #allocation4 [shape = 'u8[2048]{0}', space=vmem, size = 0x800, scoped, tag = 'output window, operand 0']
    #allocation5 [shape = 's32[2]{0}', space=sflag, size = 0x8, scoped, tag = 'scoped memory for tpu_custom_call.1']
    %10 = vsyncpa [#allocation5], 0
    %s11 = scalar_lea.sflag [#allocation5], 1
    %12 = vsyncpa %s11, 0
    loop: start=0, step=1, limit=4
    $region2: #{tpu_custom_call.1} parent=1 // loop_pre_header
      _
    $region3: #{tpu_custom_call.1} parent=1 // loop_header
      %s14 = sphi 0, %s18
      %p15 = scmp.ge.s32.totalorder %s14, 4
      %s24 = sphi 0, %s26
      %s27 = sphi 0, %s24
      %s28 = sphi 0, %s27
      %s44 = sphi 0, %s28
      %s48 = sphi 0, %s48
      %s50 = sphi 0, %s48
      %s51 = sphi 0, %s50
      %s65 = sphi 0, %s51
      %s69 = sphi 0, %s69
      %s71 = sphi 0, %s69
      %s72 = sphi 0, %s71
      %s86 = sphi 0, %s72
      %s90 = sphi 0, %s90
      %s92 = sphi 0, %s90
      %s93 = sphi 0, %s92
      %s107 = sphi 0, %s93
      %s111 = sphi 0, %s111
      %s113 = sphi 0, %s111
      %s114 = sphi 0, %s113
      %s128 = sphi 0, %s114
      %s134 = sphi 0, %s136
      %s137 = sphi 0, %s134
      %s138 = sphi 0, %s137
      %s154 = sphi 0, %s138
    $region4: #{tpu_custom_call.1} parent=1 // loop_header_branch
      %17 = sbr.rel (%p15) target = $region8
    $region5: #{tpu_custom_call.1} parent=1 // loop_body
      %s19 = ssub.s32 %s14, 1
      %s20 = ssub.s32 %s14, 2
      %s21 = sadd.s32 %s14, 1
      %s22 = ssub.s32 %s14, %s21
      %p23 = scmp.eq.s32.totalorder %s22, 0
      %s25 = sadd.s32 %s24, 1
      %s26 = scalar_select %p23, %s24, %s25
      %p29 = pneg %p23
      %p30 = scmp.eq.s32.totalorder %s14, 1
      %p31 = por %p29, %p30
      %p32 = scmp.ne.s32.totalorder %s24, %s27
      %p33 = scmp.eq.s32.totalorder %s14, 0
      %p34 = por %p32, %p33
      %p35 = scmp.ne.s32.totalorder %s24, %s27
      %p36 = scmp.eq.s32.totalorder %s19, 1
      %p37 = por %p35, %p36
      %p38 = scmp.ne.s32.totalorder %s27, %s28
      %p39 = scmp.eq.s32.totalorder %s19, 0
      %p40 = por %p38, %p39
      %p41 = scmp.ne.s32.totalorder %s27, %s28
      %p42 = scmp.eq.s32.totalorder %s20, 1
      %p43 = por %p41, %p42
      %p45 = scmp.ne.s32.totalorder %s28, %s44
      %p46 = scmp.eq.s32.totalorder %s20, 0
      %p47 = por %p45, %p46
      %s49 = sadd.s32 %s48, 1
      %p52 = scmp.eq.s32.totalorder %s14, 1
      %p53 = scmp.ne.s32.totalorder %s48, %s50
      %p54 = scmp.eq.s32.totalorder %s14, 0
      %p55 = por %p53, %p54
      %p56 = scmp.ne.s32.totalorder %s48, %s50
      %p57 = scmp.eq.s32.totalorder %s19, 1
      %p58 = por %p56, %p57
      %p59 = scmp.ne.s32.totalorder %s50, %s51
      %p60 = scmp.eq.s32.totalorder %s19, 0
      %p61 = por %p59, %p60
      %p62 = scmp.ne.s32.totalorder %s50, %s51
      %p63 = scmp.eq.s32.totalorder %s20, 1
      %p64 = por %p62, %p63
      %p66 = scmp.ne.s32.totalorder %s51, %s65
      %p67 = scmp.eq.s32.totalorder %s20, 0
      %p68 = por %p66, %p67
      %s70 = sadd.s32 %s69, 1
      %p73 = scmp.eq.s32.totalorder %s14, 1
      %p74 = scmp.ne.s32.totalorder %s69, %s71
      %p75 = scmp.eq.s32.totalorder %s14, 0
      %p76 = por %p74, %p75
      %p77 = scmp.ne.s32.totalorder %s69, %s71
      %p78 = scmp.eq.s32.totalorder %s19, 1
      %p79 = por %p77, %p78
      %p80 = scmp.ne.s32.totalorder %s71, %s72
      %p81 = scmp.eq.s32.totalorder %s19, 0
      %p82 = por %p80, %p81
      %p83 = scmp.ne.s32.totalorder %s71, %s72
      %p84 = scmp.eq.s32.totalorder %s20, 1
      %p85 = por %p83, %p84
      %p87 = scmp.ne.s32.totalorder %s72, %s86
      %p88 = scmp.eq.s32.totalorder %s20, 0
      %p89 = por %p87, %p88
      %s91 = sadd.s32 %s90, 1
      %p94 = scmp.eq.s32.totalorder %s14, 1
      %p95 = scmp.ne.s32.totalorder %s90, %s92
      %p96 = scmp.eq.s32.totalorder %s14, 0
      %p97 = por %p95, %p96
      %p98 = scmp.ne.s32.totalorder %s90, %s92
      %p99 = scmp.eq.s32.totalorder %s19, 1
      %p100 = por %p98, %p99
      %p101 = scmp.ne.s32.totalorder %s92, %s93
      %p102 = scmp.eq.s32.totalorder %s19, 0
      %p103 = por %p101, %p102
      %p104 = scmp.ne.s32.totalorder %s92, %s93
      %p105 = scmp.eq.s32.totalorder %s20, 1
      %p106 = por %p104, %p105
      %p108 = scmp.ne.s32.totalorder %s93, %s107
      %p109 = scmp.eq.s32.totalorder %s20, 0
      %p110 = por %p108, %p109
      %s112 = sadd.s32 %s111, 1
      %p115 = scmp.eq.s32.totalorder %s14, 1
      %p116 = scmp.ne.s32.totalorder %s111, %s113
      %p117 = scmp.eq.s32.totalorder %s14, 0
      %p118 = por %p116, %p117
      %p119 = scmp.ne.s32.totalorder %s111, %s113
      %p120 = scmp.eq.s32.totalorder %s19, 1
      %p121 = por %p119, %p120
      %p122 = scmp.ne.s32.totalorder %s113, %s114
      %p123 = scmp.eq.s32.totalorder %s19, 0
      %p124 = por %p122, %p123
      %p125 = scmp.ne.s32.totalorder %s113, %s114
      %p126 = scmp.eq.s32.totalorder %s20, 1
      %p127 = por %p125, %p126
      %p129 = scmp.ne.s32.totalorder %s114, %s128
      %p130 = scmp.eq.s32.totalorder %s20, 0
      %p131 = por %p129, %p130
      %s132 = ssub.s32 %s14, %s21
      %p133 = scmp.eq.s32.totalorder %s132, 0
      %s135 = sadd.s32 %s134, 1
      %s136 = scalar_select %p133, %s134, %s135
      %p139 = pneg %p133
      %p140 = scmp.eq.s32.totalorder %s14, 1
      %p141 = por %p139, %p140
      %p142 = scmp.ne.s32.totalorder %s134, %s137
      %p143 = scmp.eq.s32.totalorder %s14, 0
      %p144 = por %p142, %p143
      %p145 = scmp.ne.s32.totalorder %s134, %s137
      %p146 = scmp.eq.s32.totalorder %s19, 1
      %p147 = por %p145, %p146
      %p148 = scmp.ne.s32.totalorder %s137, %s138
      %p149 = scmp.eq.s32.totalorder %s19, 0
      %p150 = por %p148, %p149
      %p151 = scmp.ne.s32.totalorder %s137, %s138
      %p152 = scmp.eq.s32.totalorder %s20, 1
      %p153 = por %p151, %p152
      %p155 = scmp.ne.s32.totalorder %s138, %s154
      %p156 = scmp.eq.s32.totalorder %s20, 0
      %p157 = por %p155, %p156
      %p158 = scmp.le.s32.totalorder 1, %s14
      %p159 = scmp.lt.s32.totalorder %s14, 3
      %p160 = pnand %p158, %p159
      %p161 = pneg %p160
      // Predicated region
      $region9: #{tpu_custom_call.1} parent=5 // pred_check
        _
      $region10: #{tpu_custom_call.1} parent=5 // pred_check_branch
        %163 = sbr.rel (%p160) target = $region12
      $region11: #{tpu_custom_call.1} parent=5 // pred_region
        %s164 = ssub.s32 %s14, 1
        // Predicated region
        $region13: #{tpu_custom_call.1} parent=11 // pred_check
          %p165 = pneg %p61
        $region14: #{tpu_custom_call.1} parent=11 // pred_check_branch
          %167 = sbr.rel (%p165) target = $region16
        $region15: #{tpu_custom_call.1} parent=11 // pred_region
          _
        $region16: #{tpu_custom_call.1} parent=11 // pred_fallthru
          _
        // Predicated region
        $region17: #{tpu_custom_call.1} parent=11 // pred_check
          %p168 = pneg %p82
        $region18: #{tpu_custom_call.1} parent=11 // pred_check_branch
          %170 = sbr.rel (%p168) target = $region20
        $region19: #{tpu_custom_call.1} parent=11 // pred_region
          _
        $region20: #{tpu_custom_call.1} parent=11 // pred_fallthru
          _
        // Predicated region
        $region21: #{tpu_custom_call.1} parent=11 // pred_check
          %p171 = pneg %p103
        $region22: #{tpu_custom_call.1} parent=11 // pred_check_branch
          %173 = sbr.rel (%p171) target = $region24
        $region23: #{tpu_custom_call.1} parent=11 // pred_region
          _
        $region24: #{tpu_custom_call.1} parent=11 // pred_fallthru
          _
        // Predicated region
        $region25: #{tpu_custom_call.1} parent=11 // pred_check
          %p174 = pneg %p124
        $region26: #{tpu_custom_call.1} parent=11 // pred_check_branch
          %176 = sbr.rel (%p174) target = $region28
        $region27: #{tpu_custom_call.1} parent=11 // pred_region
          _
        $region28: #{tpu_custom_call.1} parent=11 // pred_fallthru
          _
      $region12: #{tpu_custom_call.1} parent=5 // pred_fallthru
        _
      %p177 = scmp.lt.s32.totalorder %s14, 2
      // Predicated region
      $region29: #{tpu_custom_call.1} parent=5 // pred_check
        %p178 = pneg %p177
      $region30: #{tpu_custom_call.1} parent=5 // pred_check_branch
        %180 = sbr.rel (%p178) target = $region32
      $region31: #{tpu_custom_call.1} parent=5 // pred_region
        // Predicated region
        $region33: #{tpu_custom_call.1} parent=31 // pred_check
          %p181 = pneg %p34
        $region34: #{tpu_custom_call.1} parent=31 // pred_check_branch
          %183 = sbr.rel (%p181) target = $region36
        $region35: #{tpu_custom_call.1} parent=31 // pred_region
          %s184 = sand.u32 %s24, 1
          %s185 = sand.u32 %s24, 1
          %s186 = smul.addr %s185, 80
          %s187 = scalar_lea.vmem [#allocation3], %s186
          %s188 = smul.u32 2, %s14
          %s189 = smul.addr %s188, 4
          %s190 = scalar_lea.vmem %s0, %s189
          // Predicated region
          $region37: #{tpu_custom_call.1} parent=35 // pred_check
            _
          $region38: #{tpu_custom_call.1} parent=35 // pred_check_branch
            %192 = sbr.rel (0) target = $region40
          $region39: #{tpu_custom_call.1} parent=35 // pred_region
            // Predicated region
            $region41: #{tpu_custom_call.1} parent=39 // pred_check
              _
            $region42: #{tpu_custom_call.1} parent=39 // pred_check_branch
              %194 = sbr.rel (0) target = $region44
            $region43: #{tpu_custom_call.1} parent=39 // pred_region
              // Predicated region
              $region56: #{tpu_custom_call.1} parent=43 // pred_check
                _
              $region57: #{tpu_custom_call.1} parent=43 // pred_check_branch
                %227 = sbr.rel (0) target = $region59
              $region58: #{tpu_custom_call.1} parent=43 // pred_region
                loop: start=0, step=1, limit=1
                $region60: #{tpu_custom_call.1} parent=58 // loop_pre_header
                  _
                $region61: #{tpu_custom_call.1} parent=58 // loop_header
                  %s229 = sphi 0, %s233
                  %p230 = scmp.ge.s32.totalorder %s229, 1
                  %s234 = sphi %s190, %s190
                  %s235 = sphi %s187, %s187
                $region62: #{tpu_custom_call.1} parent=58 // loop_header_branch
                  %232 = sbr.rel (%p230) target = $region66
                $region63: #{tpu_custom_call.1} parent=58 // loop_body
                  %v236 = vld [vmem:[%s234] sm:$0xff]
                  %237 = vst [vmem:[%s235] sm:$0xff] %v236
                  %v238 = vld [vmem:[%s234 + $0x10] sm:$0xff]
                  %239 = vst [vmem:[%s235 + $0x8] sm:$0xff] %v238
                  %v240 = vld [vmem:[%s234 + $0x20] sm:$0xff]
                  %241 = vst [vmem:[%s235 + $0x10] sm:$0xff] %v240
                  %v242 = vld [vmem:[%s234 + $0x30] sm:$0xff]
                  %243 = vst [vmem:[%s235 + $0x18] sm:$0xff] %v242
                  %v244 = vld [vmem:[%s234 + $0x40] sm:$0xff]
                  %245 = vst [vmem:[%s235 + $0x20] sm:$0xff] %v244
                  %v246 = vld [vmem:[%s234 + $0x50] sm:$0xff]
                  %247 = vst [vmem:[%s235 + $0x28] sm:$0xff] %v246
                  %v248 = vld [vmem:[%s234 + $0x60] sm:$0xff]
                  %249 = vst [vmem:[%s235 + $0x30] sm:$0xff] %v248
                  %v250 = vld [vmem:[%s234 + $0x70] sm:$0xff]
                  %251 = vst [vmem:[%s235 + $0x38] sm:$0xff] %v250
                  %v252 = vld [vmem:[%s234 + $0x80] sm:$0xff]
                  %253 = vst [vmem:[%s235 + $0x40] sm:$0xff] %v252
                  %v254 = vld [vmem:[%s234 + $0x90] sm:$0xff]
                  %255 = vst [vmem:[%s235 + $0x48] sm:$0xff] %v254
                $region64: #{tpu_custom_call.1} parent=58 // loop_footer
                  %s233 = sadd.s32 1, %s229
                $region65: #{tpu_custom_call.1} parent=58 // loop_footer_branch
                  %228 = sbr.rel target = $region61
                $region66: #{tpu_custom_call.1} parent=58 // loop_exit
                  _
              $region59: #{tpu_custom_call.1} parent=43 // pred_fallthru
                _
              // Predicated region
              $region67: #{tpu_custom_call.1} parent=43 // pred_check
                _
              $region68: #{tpu_custom_call.1} parent=43 // pred_check_branch
                %257 = sbr.rel target = $region70
              $region69: #{tpu_custom_call.1} parent=43 // pred_region
                _
              $region70: #{tpu_custom_call.1} parent=43 // pred_fallthru
                _
            $region44: #{tpu_custom_call.1} parent=39 // pred_fallthru
              _
            // Predicated region
            $region45: #{tpu_custom_call.1} parent=39 // pred_check
              _
            $region46: #{tpu_custom_call.1} parent=39 // pred_check_branch
              %196 = sbr.rel target = $region48
            $region47: #{tpu_custom_call.1} parent=39 // pred_region
              loop: start=0, step=1, limit=1
              $region49: #{tpu_custom_call.1} parent=47 // loop_pre_header
                _
              $region50: #{tpu_custom_call.1} parent=47 // loop_header
                %s199 = sphi 0, %s203
                %p200 = scmp.ge.s32.totalorder %s199, 1
                %s204 = sphi %s190, %s190
                %s205 = sphi %s187, %s187
              $region51: #{tpu_custom_call.1} parent=47 // loop_header_branch
                %202 = sbr.rel (%p200) target = $region55
              $region52: #{tpu_custom_call.1} parent=47 // loop_body
                %v206 = vld [vmem:[%s204] sm:$0xff]
                %207 = vst [vmem:[%s205] sm:$0xff] %v206
                %v208 = vld [vmem:[%s204 + $0x10] sm:$0xff]
                %209 = vst [vmem:[%s205 + $0x8] sm:$0xff] %v208
                %v210 = vld [vmem:[%s204 + $0x20] sm:$0xff]
                %211 = vst [vmem:[%s205 + $0x10] sm:$0xff] %v210
                %v212 = vld [vmem:[%s204 + $0x30] sm:$0xff]
                %213 = vst [vmem:[%s205 + $0x18] sm:$0xff] %v212
                %v214 = vld [vmem:[%s204 + $0x40] sm:$0xff]
                %215 = vst [vmem:[%s205 + $0x20] sm:$0xff] %v214
                %v216 = vld [vmem:[%s204 + $0x50] sm:$0xff]
                %217 = vst [vmem:[%s205 + $0x28] sm:$0xff] %v216
                %v218 = vld [vmem:[%s204 + $0x60] sm:$0xff]
                %219 = vst [vmem:[%s205 + $0x30] sm:$0xff] %v218
                %v220 = vld [vmem:[%s204 + $0x70] sm:$0xff]
                %221 = vst [vmem:[%s205 + $0x38] sm:$0xff] %v220
                %v222 = vld [vmem:[%s204 + $0x80] sm:$0xff]
                %223 = vst [vmem:[%s205 + $0x40] sm:$0xff] %v222
                %v224 = vld [vmem:[%s204 + $0x90] sm:$0xff]
                %225 = vst [vmem:[%s205 + $0x48] sm:$0xff] %v224
              $region53: #{tpu_custom_call.1} parent=47 // loop_footer
                %s203 = sadd.s32 1, %s199
              $region54: #{tpu_custom_call.1} parent=47 // loop_footer_branch
                %198 = sbr.rel target = $region50
              $region55: #{tpu_custom_call.1} parent=47 // loop_exit
                _
            $region48: #{tpu_custom_call.1} parent=39 // pred_fallthru
              _
          $region40: #{tpu_custom_call.1} parent=35 // pred_fallthru
            _
          %258 = vnop
        $region36: #{tpu_custom_call.1} parent=31 // pred_fallthru
          _
      $region32: #{tpu_custom_call.1} parent=5 // pred_fallthru
        _
      %p259 = scmp.le.s32.totalorder 1, %s14
      %p260 = scmp.lt.s32.totalorder %s14, 3
      %p261 = pnand %p259, %p260
      %p262 = pneg %p261
      // Predicated region
      $region71: #{tpu_custom_call.1} parent=5 // pred_check
        _
      $region72: #{tpu_custom_call.1} parent=5 // pred_check_branch
        %264 = sbr.rel (%p261) target = $region74
      $region73: #{tpu_custom_call.1} parent=5 // pred_region
        %s265 = ssub.s32 %s14, 1
        %s266 = sand.u32 %s27, 1
        %s267 = sand.u32 %s27, 1
        %s268 = smul.addr %s267, 80
        %s269 = scalar_lea.vmem [#allocation3], %s268
        // Predicated region
        $region75: #{tpu_custom_call.1} parent=73 // pred_check
          %p270 = pneg %p40
        $region76: #{tpu_custom_call.1} parent=73 // pred_check_branch
          %272 = sbr.rel (%p270) target = $region78
        $region77: #{tpu_custom_call.1} parent=73 // pred_region
          _
        $region78: #{tpu_custom_call.1} parent=73 // pred_fallthru
          _
        %s273 = sand.u32 %s27, 1
        %s274 = sand.u32 %s27, 1
        %s275 = smul.addr %s274, 80
        %s276 = scalar_lea.vmem [#allocation3], %s275
        %p277 = pneg %p40
        %p278 = pneg %p37
        %p279 = pneg %p61
        %p280 = pneg %p58
        %p281 = pneg %p82
        %p282 = pneg %p79
        %p283 = pneg %p103
        %p284 = pneg %p100
        %p285 = pneg %p124
        %p286 = pneg %p121
        %p287 = pneg %p150
        %p288 = pneg %p147
        %s289 = sand.u32 %s137, 1
        %s290 = scalar_lea.sflag [#allocation5], %s289
        %s291 = sand.u32 %s137, 1
        %s292 = smul.addr %s291, 2
        %s293 = scalar_lea.vmem [#allocation4], %s292
        %s294 = smul.u32 2, %s19
        %s295 = smul.u32 2, %s19
        %v296 = vld [vmem:[%s1] sm:$0xff]
        %v297 = vld [vmem:[%s1 + $0x8] sm:$0xff]
        %v298 = vld [vmem:[%s1 + $0x10] sm:$0xff]
        %v299 = vld [vmem:[%s1 + $0x18] sm:$0xff]
        %v300 = vld [vmem:[%s1 + $0x20] sm:$0xff]
        %v301 = vld [vmem:[%s1 + $0x28] sm:$0xff]
        %v302 = vld [vmem:[%s1 + $0x30] sm:$0xff]
        %v303 = vld [vmem:[%s1 + $0x38] sm:$0xff]
        %v304 = vld [vmem:[%s1 + $0x40] sm:$0xff]
        %v305 = vld [vmem:[%s1 + $0x48] sm:$0xff]
        %v306 = vld [vmem:[%s1 + $0x50] sm:$0xff]
        %v307 = vld [vmem:[%s1 + $0x58] sm:$0xff]
        %v308 = vld [vmem:[%s1 + $0x60] sm:$0xff]
        %v309 = vld [vmem:[%s1 + $0x68] sm:$0xff]
        %v310 = vld [vmem:[%s1 + $0x70] sm:$0xff]
        %v311 = vld [vmem:[%s1 + $0x78] sm:$0xff]
        %v312 = vld [vmem:[%s4] sm:$0xff]
        %v313 = vld [vmem:[%s4 + $0x8] sm:$0xff]
        %v314 = vld [vmem:[%s4 + $0x10] sm:$0xff]
        %v315 = vld [vmem:[%s4 + $0x18] sm:$0xff]
        %v316 = vld [vmem:[%s4 + $0x20] sm:$0xff]
        %v317 = vld [vmem:[%s4 + $0x28] sm:$0xff]
        %v318 = vld [vmem:[%s4 + $0x30] sm:$0xff]
        %v319 = vld [vmem:[%s4 + $0x38] sm:$0xff]
        %v320 = vld [vmem:[%s4 + $0x40] sm:$0xff]
        %v321 = vld [vmem:[%s4 + $0x48] sm:$0xff]
        %v322 = vld [vmem:[%s4 + $0x50] sm:$0xff]
        %v323 = vld [vmem:[%s4 + $0x58] sm:$0xff]
        %v324 = vld [vmem:[%s4 + $0x60] sm:$0xff]
        %v325 = vld [vmem:[%s4 + $0x68] sm:$0xff]
        %v326 = vld [vmem:[%s4 + $0x70] sm:$0xff]
        %v327 = vld [vmem:[%s4 + $0x78] sm:$0xff]
        %v328 = vld [vmem:[%s4 + $0x80] sm:$0xff]
        %v329 = vld [vmem:[%s4 + $0x88] sm:$0xff]
        %v330 = vld [vmem:[%s4 + $0x90] sm:$0xff]
        %v331 = vld [vmem:[%s4 + $0x98] sm:$0xff]
        %v332 = vld [vmem:[%s4 + $0xa0] sm:$0x1]
        %v333 = vld [vmem:[%s269] sm:$0xff]
        %v334 = vld [vmem:[%s269 + $0x8] sm:$0xff]
        %v335 = vunpack.c.l.bf16 %v333
        %v336 = vunpack.c.h.bf16 %v333
        %v337 = vunpack.c.l.bf16 %v334
        %v338 = vunpack.c.h.bf16 %v334
        %340 = vset.pattern.permute.xlu0 0
        %341 = vperm.xlu0 %340, %v312
        %v342 = vpop.permute.xlu0 %341
        %345 = vset.pattern.permute.xlu0 0
        %346 = vperm.xlu0 %345, %v313
        %v347 = vpop.permute.xlu0 %346
        %350 = vset.pattern.permute.xlu0 0
        %351 = vperm.xlu0 %350, %v314
        %v352 = vpop.permute.xlu0 %351
        %355 = vset.pattern.permute.xlu0 0
        %356 = vperm.xlu0 %355, %v315
        %v357 = vpop.permute.xlu0 %356
        %360 = vset.pattern.permute.xlu0 0
        %361 = vperm.xlu0 %360, %v316
        %v362 = vpop.permute.xlu0 %361
        %365 = vset.pattern.permute.xlu0 0
        %366 = vperm.xlu0 %365, %v317
        %v367 = vpop.permute.xlu0 %366
        %vm369 = vcmask 130048
        %v371 = vsel %vm369, %v296, 0
        %v374 = vsel %vm369, %v297, 0
        %v377 = vsel %vm369, %v298, 0
        %v380 = vsel %vm369, %v299, 0
        %v383 = vsel %vm369, %v300, 0
        %v386 = vsel %vm369, %v301, 0
        %388 = vmatprep.subr.mxu0 %v336
        %389 = vmatpush1.msra.mxu0 %v335
        %390 = vmatprep.subr.mxu0 %v338
        %391 = vmatpush1.msra.mxu0 %v337
        %392 = vmatprep.subr.mxu0 0.0
        %393 = vmatpush1.msra.mxu0 0.0
        %394 = vmatprep.subr.mxu0 0.0
        %395 = vmatpush1.msra.mxu0 0.0
        %396 = vmatprep.subr.mxu0 0.0
        %397 = vmatpush1.msra.mxu0 0.0
        %398 = vmatprep.subr.mxu0 0.0
        %399 = vmatpush1.msra.mxu0 0.0
        %400 = vmatprep.subr.mxu0 0.0
        %401 = vmatpush1.msra.mxu0 0.0
        %402 = vmatprep.subr.mxu0 0.0
        %403 = vmatpush1.msra.mxu0 0.0
        %404 = vmatprep.subr.mxu0 0.0
        %405 = vmatpush1.msra.mxu0 0.0
        %406 = vmatprep.subr.mxu0 0.0
        %407 = vmatpush1.msra.mxu0 0.0
        %408 = vmatprep.subr.mxu0 0.0
        %409 = vmatpush1.msra.mxu0 0.0
        %410 = vmatprep.subr.mxu0 0.0
        %411 = vmatpush1.msra.mxu0 0.0
        %412 = vmatprep.subr.mxu0 0.0
        %413 = vmatpush1.msra.mxu0 0.0
        %414 = vmatprep.subr.mxu0 0.0
        %415 = vmatpush1.msra.mxu0 0.0
        %416 = vmatprep.subr.mxu0 0.0
        %417 = vmatpush1.msra.mxu0 0.0
        %418 = vmatprep.subr.mxu0 0.0
        %419 = vmatpush1.msra.mxu0 0.0
        %420 = vmatprep.subr.mxu0 0.0
        %421 = vmatpush1.msra.mxu0 0.0
        %422 = vmatprep.subr.mxu0 0.0
        %423 = vmatpush1.msra.mxu0 0.0
        %424 = vmatprep.subr.mxu0 0.0
        %425 = vmatpush1.msra.mxu0 0.0
        %426 = vmatprep.subr.mxu0 0.0
        %427 = vmatpush1.msra.mxu0 0.0
        %428 = vmatprep.subr.mxu0 0.0
        %429 = vmatpush1.msra.mxu0 0.0
        %430 = vmatprep.subr.mxu0 0.0
        %431 = vmatpush1.msra.mxu0 0.0
        %432 = vmatprep.subr.mxu0 0.0
        %433 = vmatpush1.msra.mxu0 0.0
        %434 = vmatprep.subr.mxu0 0.0
        %435 = vmatpush1.msra.mxu0 0.0
        %436 = vmatprep.subr.mxu0 0.0
        %437 = vmatpush1.msra.mxu0 0.0
        %438 = vmatprep.subr.mxu0 0.0
        %439 = vmatpush1.msra.mxu0 0.0
        %440 = vmatprep.subr.mxu0 0.0
        %441 = vmatpush1.msra.mxu0 0.0
        %442 = vmatprep.subr.mxu0 0.0
        %443 = vmatpush1.msra.mxu0 0.0
        %444 = vmatprep.subr.mxu0 0.0
        %445 = vmatpush1.msra.mxu0 0.0
        %446 = vmatprep.subr.mxu0 0.0
        %447 = vmatpush1.msra.mxu0 0.0
        %448 = vmatprep.subr.mxu0 0.0
        %449 = vmatpush1.msra.mxu0 0.0
        %450 = vmatprep.subr.mxu0 0.0
        %451 = vmatpush1.msra.mxu0 0.0
        %452 = vmatprep.mubr.f32.mxu0 0.0
        %453 = vmatmul.mubr.f32.gmra.mrb[0].mxu0 %v371
        %v454 = vpop.f32.mrb[0].mxu0
        %v455 = vadd.f32 %v342, %v454
        %v456 = vpop.f32.mrb[0].mxu0
        %v457 = vadd.f32 %v342, %v456
        %458 = vmatprep.mubr.f32.mxu0 0.0
        %459 = vmatmul.mubr.f32.gmra.mrb[0].mxu0 %v374
        %v460 = vpop.f32.mrb[0].mxu0
        %v461 = vadd.f32 %v347, %v460
        %v462 = vpop.f32.mrb[0].mxu0
        %v463 = vadd.f32 %v347, %v462
        %464 = vmatprep.mubr.f32.mxu0 0.0
        %465 = vmatmul.mubr.f32.gmra.mrb[0].mxu0 %v377
        %v466 = vpop.f32.mrb[0].mxu0
        %v467 = vadd.f32 %v352, %v466
        %v468 = vpop.f32.mrb[0].mxu0
        %v469 = vadd.f32 %v352, %v468
        %470 = vmatprep.mubr.f32.mxu0 0.0
        %471 = vmatmul.mubr.f32.gmra.mrb[0].mxu0 %v380
        %v472 = vpop.f32.mrb[0].mxu0
        %v473 = vadd.f32 %v357, %v472
        %v474 = vpop.f32.mrb[0].mxu0
        %v475 = vadd.f32 %v357, %v474
        %476 = vmatprep.mubr.f32.mxu0 0.0
        %477 = vmatmul.mubr.f32.gmra.mrb[0].mxu0 %v383
        %v478 = vpop.f32.mrb[0].mxu0
        %v479 = vadd.f32 %v362, %v478
        %v480 = vpop.f32.mrb[0].mxu0
        %v481 = vadd.f32 %v362, %v480
        %482 = vmatprep.mubr.f32.mxu0 0.0
        %483 = vmatmul.mubr.f32.gmra.mrb[0].mxu0 %v386
        %v484 = vpop.f32.mrb[0].mxu0
        %v485 = vadd.f32 %v367, %v484
        %v486 = vpop.f32.mrb[0].mxu0
        %v487 = vadd.f32 %v367, %v486
        %488 = vdwg.mxu0
        %489 = vst [vmem:[#allocation2] sm:$0xff] %v455
        %490 = vst [vmem:[#allocation2 + $0x8] sm:$0xff] %v457
        %491 = vst [vmem:[#allocation2 + $0x10] sm:$0xff] %v461
        %492 = vst [vmem:[#allocation2 + $0x18] sm:$0xff] %v463
        %493 = vst [vmem:[#allocation2 + $0x20] sm:$0xff] %v467
        %494 = vst [vmem:[#allocation2 + $0x28] sm:$0xff] %v469
        %495 = vst [vmem:[#allocation2 + $0x30] sm:$0xff] %v473
        %496 = vst [vmem:[#allocation2 + $0x38] sm:$0xff] %v475
        %497 = vst [vmem:[#allocation2 + $0x40] sm:$0xff] %v479
        %498 = vst [vmem:[#allocation2 + $0x48] sm:$0xff] %v481
        %499 = vst [vmem:[#allocation2 + $0x50] sm:$0xff] %v485
        %500 = vst [vmem:[#allocation2 + $0x58] sm:$0xff] %v487
        %s501 = scalar_lea.vmem %s269, 16 [#allocation3]
        %v502 = vld [vmem:[%s501] sm:$0xff]
        %v503 = vld [vmem:[%s501 + $0x8] sm:$0xff]
        %v504 = vunpack.c.l.bf16 %v502
        %v505 = vunpack.c.h.bf16 %v502
        %v506 = vunpack.c.l.bf16 %v503
        %v507 = vunpack.c.h.bf16 %v503
        %508 = vmatprep.subr.mxu0 %v505
        %509 = vmatpush1.msra.mxu0 %v504
        %510 = vmatprep.subr.mxu0 %v507
        %511 = vmatpush1.msra.mxu0 %v506
        %512 = vmatprep.subr.mxu0 0.0
        %513 = vmatpush1.msra.mxu0 0.0
        %514 = vmatprep.subr.mxu0 0.0
        %515 = vmatpush1.msra.mxu0 0.0
        %516 = vmatprep.subr.mxu0 0.0
        %517 = vmatpush1.msra.mxu0 0.0
        %518 = vmatprep.subr.mxu0 0.0
        %519 = vmatpush1.msra.mxu0 0.0
        %520 = vmatprep.subr.mxu0 0.0
        %521 = vmatpush1.msra.mxu0 0.0
        %522 = vmatprep.subr.mxu0 0.0
        %523 = vmatpush1.msra.mxu0 0.0
        %524 = vmatprep.subr.mxu0 0.0
        %525 = vmatpush1.msra.mxu0 0.0
        %526 = vmatprep.subr.mxu0 0.0
        %527 = vmatpush1.msra.mxu0 0.0
        %528 = vmatprep.subr.mxu0 0.0
        %529 = vmatpush1.msra.mxu0 0.0
        %530 = vmatprep.subr.mxu0 0.0
        %531 = vmatpush1.msra.mxu0 0.0
        %532 = vmatprep.subr.mxu0 0.0
        %533 = vmatpush1.msra.mxu0 0.0
        %534 = vmatprep.subr.mxu0 0.0
        %535 = vmatpush1.msra.mxu0 0.0
        %536 = vmatprep.subr.mxu0 0.0
        %537 = vmatpush1.msra.mxu0 0.0
        %538 = vmatprep.subr.mxu0 0.0
        %539 = vmatpush1.msra.mxu0 0.0
        %540 = vmatprep.subr.mxu0 0.0
        %541 = vmatpush1.msra.mxu0 0.0
        %542 = vmatprep.subr.mxu0 0.0
        %543 = vmatpush1.msra.mxu0 0.0
        %544 = vmatprep.subr.mxu0 0.0
        %545 = vmatpush1.msra.mxu0 0.0
        %546 = vmatprep.subr.mxu0 0.0
        %547 = vmatpush1.msra.mxu0 0.0
        %548 = vmatprep.subr.mxu0 0.0
        %549 = vmatpush1.msra.mxu0 0.0
        %550 = vmatprep.subr.mxu0 0.0
        %551 = vmatpush1.msra.mxu0 0.0
        %552 = vmatprep.subr.mxu0 0.0
        %553 = vmatpush1.msra.mxu0 0.0
        %554 = vmatprep.subr.mxu0 0.0
        %555 = vmatpush1.msra.mxu0 0.0
        %556 = vmatprep.subr.mxu0 0.0
        %557 = vmatpush1.msra.mxu0 0.0
        %558 = vmatprep.subr.mxu0 0.0
        %559 = vmatpush1.msra.mxu0 0.0
        %560 = vmatprep.subr.mxu0 0.0
        %561 = vmatpush1.msra.mxu0 0.0
        %562 = vmatprep.subr.mxu0 0.0
        %563 = vmatpush1.msra.mxu0 0.0
        %564 = vmatprep.subr.mxu0 0.0
        %565 = vmatpush1.msra.mxu0 0.0
        %566 = vmatprep.subr.mxu0 0.0
        %567 = vmatpush1.msra.mxu0 0.0
        %568 = vmatprep.subr.mxu0 0.0
        %569 = vmatpush1.msra.mxu0 0.0
        %570 = vmatprep.subr.mxu0 0.0
        %571 = vmatpush1.msra.mxu0 0.0
        %572 = vmatprep.mubr.f32.mxu0 0.0
        %573 = vmatmul.mubr.f32.gmra.mrb[0].mxu0 %v371
        %v574 = vpop.f32.mrb[0].mxu0
        %v575 = vadd.f32 %v342, %v574
        %v576 = vpop.f32.mrb[0].mxu0
        %v577 = vadd.f32 %v342, %v576
        %578 = vmatprep.mubr.f32.mxu0 0.0
        %579 = vmatmul.mubr.f32.gmra.mrb[0].mxu0 %v374
        %v580 = vpop.f32.mrb[0].mxu0
        %v581 = vadd.f32 %v347, %v580
        %v582 = vpop.f32.mrb[0].mxu0
        %v583 = vadd.f32 %v347, %v582
        %584 = vmatprep.mubr.f32.mxu0 0.0
        %585 = vmatmul.mubr.f32.gmra.mrb[0].mxu0 %v377
        %v586 = vpop.f32.mrb[0].mxu0
        %v587 = vadd.f32 %v352, %v586
        %v588 = vpop.f32.mrb[0].mxu0
        %v589 = vadd.f32 %v352, %v588
        %590 = vmatprep.mubr.f32.mxu0 0.0
        %591 = vmatmul.mubr.f32.gmra.mrb[0].mxu0 %v380
        %v592 = vpop.f32.mrb[0].mxu0
        %v593 = vadd.f32 %v357, %v592
        %v594 = vpop.f32.mrb[0].mxu0
        %v595 = vadd.f32 %v357, %v594
        %596 = vmatprep.mubr.f32.mxu0 0.0
        %597 = vmatmul.mubr.f32.gmra.mrb[0].mxu0 %v383
        %v598 = vpop.f32.mrb[0].mxu0
        %v599 = vadd.f32 %v362, %v598
        %v600 = vpop.f32.mrb[0].mxu0
        %v601 = vadd.f32 %v362, %v600
        %602 = vmatprep.mubr.f32.mxu0 0.0
        %603 = vmatmul.mubr.f32.gmra.mrb[0].mxu0 %v386
        %v604 = vpop.f32.mrb[0].mxu0
        %v605 = vadd.f32 %v367, %v604
        %v606 = vpop.f32.mrb[0].mxu0
        %v607 = vadd.f32 %v367, %v606
        %608 = vdwg.mxu0
        %s609 = scalar_lea.vmem [#allocation2], 96
        %610 = vst [vmem:[%s609] sm:$0xff] %v575
        %611 = vst [vmem:[%s609 + $0x8] sm:$0xff] %v577
        %612 = vst [vmem:[%s609 + $0x10] sm:$0xff] %v581
        %613 = vst [vmem:[%s609 + $0x18] sm:$0xff] %v583
        %614 = vst [vmem:[%s609 + $0x20] sm:$0xff] %v587
        %615 = vst [vmem:[%s609 + $0x28] sm:$0xff] %v589
        %616 = vst [vmem:[%s609 + $0x30] sm:$0xff] %v593
        %617 = vst [vmem:[%s609 + $0x38] sm:$0xff] %v595
        %618 = vst [vmem:[%s609 + $0x40] sm:$0xff] %v599
        %619 = vst [vmem:[%s609 + $0x48] sm:$0xff] %v601
        %620 = vst [vmem:[%s609 + $0x50] sm:$0xff] %v605
        %621 = vst [vmem:[%s609 + $0x58] sm:$0xff] %v607
        %s622 = scalar_lea.vmem %s269, 32 [#allocation3]
        %v623 = vld [vmem:[%s622] sm:$0xff]
        %v624 = vld [vmem:[%s622 + $0x8] sm:$0xff]
        %v625 = vunpack.c.l.bf16 %v623
        %v626 = vunpack.c.h.bf16 %v623
        %v627 = vunpack.c.l.bf16 %v624
        %v628 = vunpack.c.h.bf16 %v624
        %629 = vmatprep.subr.mxu0 %v626
        %630 = vmatpush1.msra.mxu0 %v625
        %631 = vmatprep.subr.mxu0 %v628
        %632 = vmatpush1.msra.mxu0 %v627
        %633 = vmatprep.subr.mxu0 0.0
        %634 = vmatpush1.msra.mxu0 0.0
        %635 = vmatprep.subr.mxu0 0.0
        %636 = vmatpush1.msra.mxu0 0.0
        %637 = vmatprep.subr.mxu0 0.0
        %638 = vmatpush1.msra.mxu0 0.0
        %639 = vmatprep.subr.mxu0 0.0
        %640 = vmatpush1.msra.mxu0 0.0
        %641 = vmatprep.subr.mxu0 0.0
        %642 = vmatpush1.msra.mxu0 0.0
        %643 = vmatprep.subr.mxu0 0.0
        %644 = vmatpush1.msra.mxu0 0.0
        %645 = vmatprep.subr.mxu0 0.0
        %646 = vmatpush1.msra.mxu0 0.0
        %647 = vmatprep.subr.mxu0 0.0
        %648 = vmatpush1.msra.mxu0 0.0
        %649 = vmatprep.subr.mxu0 0.0
        %650 = vmatpush1.msra.mxu0 0.0
        %651 = vmatprep.subr.mxu0 0.0
        %652 = vmatpush1.msra.mxu0 0.0
        %653 = vmatprep.subr.mxu0 0.0
        %654 = vmatpush1.msra.mxu0 0.0
        %655 = vmatprep.subr.mxu0 0.0
        %656 = vmatpush1.msra.mxu0 0.0
        %657 = vmatprep.subr.mxu0 0.0
        %658 = vmatpush1.msra.mxu0 0.0
        %659 = vmatprep.subr.mxu0 0.0
        %660 = vmatpush1.msra.mxu0 0.0
        %661 = vmatprep.subr.mxu0 0.0
        %662 = vmatpush1.msra.mxu0 0.0
        %663 = vmatprep.subr.mxu0 0.0
        %664 = vmatpush1.msra.mxu0 0.0
        %665 = vmatprep.subr.mxu0 0.0
        %666 = vmatpush1.msra.mxu0 0.0
        %667 = vmatprep.subr.mxu0 0.0
        %668 = vmatpush1.msra.mxu0 0.0
        %669 = vmatprep.subr.mxu0 0.0
        %670 = vmatpush1.msra.mxu0 0.0
        %671 = vmatprep.subr.mxu0 0.0
        %672 = vmatpush1.msra.mxu0 0.0
        %673 = vmatprep.subr.mxu0 0.0
        %674 = vmatpush1.msra.mxu0 0.0
        %675 = vmatprep.subr.mxu0 0.0
        %676 = vmatpush1.msra.mxu0 0.0
        %677 = vmatprep.subr.mxu0 0.0
        %678 = vmatpush1.msra.mxu0 0.0
        %679 = vmatprep.subr.mxu0 0.0
        %680 = vmatpush1.msra.mxu0 0.0
        %681 = vmatprep.subr.mxu0 0.0
        %682 = vmatpush1.msra.mxu0 0.0
        %683 = vmatprep.subr.mxu0 0.0
        %684 = vmatpush1.msra.mxu0 0.0
        %685 = vmatprep.subr.mxu0 0.0
        %686 = vmatpush1.msra.mxu0 0.0
        %687 = vmatprep.subr.mxu0 0.0
        %688 = vmatpush1.msra.mxu0 0.0
        %689 = vmatprep.subr.mxu0 0.0
        %690 = vmatpush1.msra.mxu0 0.0
        %691 = vmatprep.subr.mxu0 0.0
        %692 = vmatpush1.msra.mxu0 0.0
        %693 = vmatprep.mubr.f32.mxu0 0.0
        %694 = vmatmul.mubr.f32.gmra.mrb[0].mxu0 %v371
        %v695 = vpop.f32.mrb[0].mxu0
        %v696 = vadd.f32 %v342, %v695
        %v697 = vpop.f32.mrb[0].mxu0
        %v698 = vadd.f32 %v342, %v697
        %699 = vmatprep.mubr.f32.mxu0 0.0
        %700 = vmatmul.mubr.f32.gmra.mrb[0].mxu0 %v374
        %v701 = vpop.f32.mrb[0].mxu0
        %v702 = vadd.f32 %v347, %v701
        %v703 = vpop.f32.mrb[0].mxu0
        %v704 = vadd.f32 %v347, %v703
        %705 = vmatprep.mubr.f32.mxu0 0.0
        %706 = vmatmul.mubr.f32.gmra.mrb[0].mxu0 %v377
        %v707 = vpop.f32.mrb[0].mxu0
        %v708 = vadd.f32 %v352, %v707
        %v709 = vpop.f32.mrb[0].mxu0
        %v710 = vadd.f32 %v352, %v709
        %711 = vmatprep.mubr.f32.mxu0 0.0
        %712 = vmatmul.mubr.f32.gmra.mrb[0].mxu0 %v380
        %v713 = vpop.f32.mrb[0].mxu0
        %v714 = vadd.f32 %v357, %v713
        %v715 = vpop.f32.mrb[0].mxu0
        %v716 = vadd.f32 %v357, %v715
        %717 = vmatprep.mubr.f32.mxu0 0.0
        %718 = vmatmul.mubr.f32.gmra.mrb[0].mxu0 %v383
        %v719 = vpop.f32.mrb[0].mxu0
        %v720 = vadd.f32 %v362, %v719
        %v721 = vpop.f32.mrb[0].mxu0
        %v722 = vadd.f32 %v362, %v721
        %723 = vmatprep.mubr.f32.mxu0 0.0
        %724 = vmatmul.mubr.f32.gmra.mrb[0].mxu0 %v386
        %v725 = vpop.f32.mrb[0].mxu0
        %v726 = vadd.f32 %v367, %v725
        %v727 = vpop.f32.mrb[0].mxu0
        %v728 = vadd.f32 %v367, %v727
        %729 = vdwg.mxu0
        %s730 = scalar_lea.vmem [#allocation2], 192
        %731 = vst [vmem:[%s730] sm:$0xff] %v696
        %732 = vst [vmem:[%s730 + $0x8] sm:$0xff] %v698
        %733 = vst [vmem:[%s730 + $0x10] sm:$0xff] %v702
        %734 = vst [vmem:[%s730 + $0x18] sm:$0xff] %v704
        %735 = vst [vmem:[%s730 + $0x20] sm:$0xff] %v708
        %736 = vst [vmem:[%s730 + $0x28] sm:$0xff] %v710
        %737 = vst [vmem:[%s730 + $0x30] sm:$0xff] %v714
        %738 = vst [vmem:[%s730 + $0x38] sm:$0xff] %v716
        %739 = vst [vmem:[%s730 + $0x40] sm:$0xff] %v720
        %740 = vst [vmem:[%s730 + $0x48] sm:$0xff] %v722
        %741 = vst [vmem:[%s730 + $0x50] sm:$0xff] %v726
        %742 = vst [vmem:[%s730 + $0x58] sm:$0xff] %v728
        %s743 = scalar_lea.vmem %s269, 48 [#allocation3]
        %v744 = vld [vmem:[%s743] sm:$0xff]
        %v745 = vld [vmem:[%s743 + $0x8] sm:$0xff]
        %v746 = vunpack.c.l.bf16 %v744
        %v747 = vunpack.c.h.bf16 %v744
        %v748 = vunpack.c.l.bf16 %v745
        %v749 = vunpack.c.h.bf16 %v745
        %750 = vmatprep.subr.mxu0 %v747
        %751 = vmatpush1.msra.mxu0 %v746
        %752 = vmatprep.subr.mxu0 %v749
        %753 = vmatpush1.msra.mxu0 %v748
        %754 = vmatprep.subr.mxu0 0.0
        %755 = vmatpush1.msra.mxu0 0.0
        %756 = vmatprep.subr.mxu0 0.0
        %757 = vmatpush1.msra.mxu0 0.0
        %758 = vmatprep.subr.mxu0 0.0
        %759 = vmatpush1.msra.mxu0 0.0
        %760 = vmatprep.subr.mxu0 0.0
        %761 = vmatpush1.msra.mxu0 0.0
        %762 = vmatprep.subr.mxu0 0.0
        %763 = vmatpush1.msra.mxu0 0.0
        %764 = vmatprep.subr.mxu0 0.0
        %765 = vmatpush1.msra.mxu0 0.0
        %766 = vmatprep.subr.mxu0 0.0
        %767 = vmatpush1.msra.mxu0 0.0
        %768 = vmatprep.subr.mxu0 0.0
        %769 = vmatpush1.msra.mxu0 0.0
        %770 = vmatprep.subr.mxu0 0.0
        %771 = vmatpush1.msra.mxu0 0.0
        %772 = vmatprep.subr.mxu0 0.0
        %773 = vmatpush1.msra.mxu0 0.0
        %774 = vmatprep.subr.mxu0 0.0
        %775 = vmatpush1.msra.mxu0 0.0
        %776 = vmatprep.subr.mxu0 0.0
        %777 = vmatpush1.msra.mxu0 0.0
        %778 = vmatprep.subr.mxu0 0.0
        %779 = vmatpush1.msra.mxu0 0.0
        %780 = vmatprep.subr.mxu0 0.0
        %781 = vmatpush1.msra.mxu0 0.0
        %782 = vmatprep.subr.mxu0 0.0
        %783 = vmatpush1.msra.mxu0 0.0
        %784 = vmatprep.subr.mxu0 0.0
        %785 = vmatpush1.msra.mxu0 0.0
        %786 = vmatprep.subr.mxu0 0.0
        %787 = vmatpush1.msra.mxu0 0.0
        %788 = vmatprep.subr.mxu0 0.0
        %789 = vmatpush1.msra.mxu0 0.0
        %790 = vmatprep.subr.mxu0 0.0
        %791 = vmatpush1.msra.mxu0 0.0
        %792 = vmatprep.subr.mxu0 0.0
        %793 = vmatpush1.msra.mxu0 0.0
        %794 = vmatprep.subr.mxu0 0.0
        %795 = vmatpush1.msra.mxu0 0.0
        %796 = vmatprep.subr.mxu0 0.0
        %797 = vmatpush1.msra.mxu0 0.0
        %798 = vmatprep.subr.mxu0 0.0
        %799 = vmatpush1.msra.mxu0 0.0
        %800 = vmatprep.subr.mxu0 0.0
        %801 = vmatpush1.msra.mxu0 0.0
        %802 = vmatprep.subr.mxu0 0.0
        %803 = vmatpush1.msra.mxu0 0.0
        %804 = vmatprep.subr.mxu0 0.0
        %805 = vmatpush1.msra.mxu0 0.0
        %806 = vmatprep.subr.mxu0 0.0
        %807 = vmatpush1.msra.mxu0 0.0
        %808 = vmatprep.subr.mxu0 0.0
        %809 = vmatpush1.msra.mxu0 0.0
        %810 = vmatprep.subr.mxu0 0.0
        %811 = vmatpush1.msra.mxu0 0.0
        %812 = vmatprep.subr.mxu0 0.0
        %813 = vmatpush1.msra.mxu0 0.0
        %814 = vmatprep.mubr.f32.mxu0 0.0
        %815 = vmatmul.mubr.f32.gmra.mrb[0].mxu0 %v371
        %v816 = vpop.f32.mrb[0].mxu0
        %v817 = vadd.f32 %v342, %v816
        %v818 = vpop.f32.mrb[0].mxu0
        %v819 = vadd.f32 %v342, %v818
        %820 = vmatprep.mubr.f32.mxu0 0.0
        %821 = vmatmul.mubr.f32.gmra.mrb[0].mxu0 %v374
        %v822 = vpop.f32.mrb[0].mxu0
        %v823 = vadd.f32 %v347, %v822
        %v824 = vpop.f32.mrb[0].mxu0
        %v825 = vadd.f32 %v347, %v824
        %826 = vmatprep.mubr.f32.mxu0 0.0
        %827 = vmatmul.mubr.f32.gmra.mrb[0].mxu0 %v377
        %v828 = vpop.f32.mrb[0].mxu0
        %v829 = vadd.f32 %v352, %v828
        %v830 = vpop.f32.mrb[0].mxu0
        %v831 = vadd.f32 %v352, %v830
        %832 = vmatprep.mubr.f32.mxu0 0.0
        %833 = vmatmul.mubr.f32.gmra.mrb[0].mxu0 %v380
        %v834 = vpop.f32.mrb[0].mxu0
        %v835 = vadd.f32 %v357, %v834
        %v836 = vpop.f32.mrb[0].mxu0
        %v837 = vadd.f32 %v357, %v836
        %838 = vmatprep.mubr.f32.mxu0 0.0
        %839 = vmatmul.mubr.f32.gmra.mrb[0].mxu0 %v383
        %v840 = vpop.f32.mrb[0].mxu0
        %v841 = vadd.f32 %v362, %v840
        %v842 = vpop.f32.mrb[0].mxu0
        %v843 = vadd.f32 %v362, %v842
        %844 = vmatprep.mubr.f32.mxu0 0.0
        %845 = vmatmul.mubr.f32.gmra.mrb[0].mxu0 %v386
        %v846 = vpop.f32.mrb[0].mxu0
        %v847 = vadd.f32 %v367, %v846
        %v848 = vpop.f32.mrb[0].mxu0
        %v849 = vadd.f32 %v367, %v848
        %850 = vdwg.mxu0
        %s851 = scalar_lea.vmem [#allocation2], 288
        %852 = vst [vmem:[%s851] sm:$0xff] %v817
        %853 = vst [vmem:[%s851 + $0x8] sm:$0xff] %v819
        %854 = vst [vmem:[%s851 + $0x10] sm:$0xff] %v823
        %855 = vst [vmem:[%s851 + $0x18] sm:$0xff] %v825
        %856 = vst [vmem:[%s851 + $0x20] sm:$0xff] %v829
        %857 = vst [vmem:[%s851 + $0x28] sm:$0xff] %v831
        %858 = vst [vmem:[%s851 + $0x30] sm:$0xff] %v835
        %859 = vst [vmem:[%s851 + $0x38] sm:$0xff] %v837
        %860 = vst [vmem:[%s851 + $0x40] sm:$0xff] %v841
        %861 = vst [vmem:[%s851 + $0x48] sm:$0xff] %v843
        %862 = vst [vmem:[%s851 + $0x50] sm:$0xff] %v847
        %863 = vst [vmem:[%s851 + $0x58] sm:$0xff] %v849
        %s864 = scalar_lea.vmem %s269, 64 [#allocation3]
        %v865 = vld [vmem:[%s864] sm:$0xff]
        %v866 = vld [vmem:[%s864 + $0x8] sm:$0xff]
        %v867 = vunpack.c.l.bf16 %v865
        %v868 = vunpack.c.h.bf16 %v865
        %v869 = vunpack.c.l.bf16 %v866
        %v870 = vunpack.c.h.bf16 %v866
        %871 = vmatprep.subr.mxu0 %v868
        %872 = vmatpush1.msra.mxu0 %v867
        %873 = vmatprep.subr.mxu0 %v870
        %874 = vmatpush1.msra.mxu0 %v869
        %875 = vmatprep.subr.mxu0 0.0
        %876 = vmatpush1.msra.mxu0 0.0
        %877 = vmatprep.subr.mxu0 0.0
        %878 = vmatpush1.msra.mxu0 0.0
        %879 = vmatprep.subr.mxu0 0.0
        %880 = vmatpush1.msra.mxu0 0.0
        %881 = vmatprep.subr.mxu0 0.0
        %882 = vmatpush1.msra.mxu0 0.0
        %883 = vmatprep.subr.mxu0 0.0
        %884 = vmatpush1.msra.mxu0 0.0
        %885 = vmatprep.subr.mxu0 0.0
        %886 = vmatpush1.msra.mxu0 0.0
        %887 = vmatprep.subr.mxu0 0.0
        %888 = vmatpush1.msra.mxu0 0.0
        %889 = vmatprep.subr.mxu0 0.0
        %890 = vmatpush1.msra.mxu0 0.0
        %891 = vmatprep.subr.mxu0 0.0
        %892 = vmatpush1.msra.mxu0 0.0
        %893 = vmatprep.subr.mxu0 0.0
        %894 = vmatpush1.msra.mxu0 0.0
        %895 = vmatprep.subr.mxu0 0.0
        %896 = vmatpush1.msra.mxu0 0.0
        %897 = vmatprep.subr.mxu0 0.0
        %898 = vmatpush1.msra.mxu0 0.0
        %899 = vmatprep.subr.mxu0 0.0
        %900 = vmatpush1.msra.mxu0 0.0
        %901 = vmatprep.subr.mxu0 0.0
        %902 = vmatpush1.msra.mxu0 0.0
        %903 = vmatprep.subr.mxu0 0.0
        %904 = vmatpush1.msra.mxu0 0.0
        %905 = vmatprep.subr.mxu0 0.0
        %906 = vmatpush1.msra.mxu0 0.0
        %907 = vmatprep.subr.mxu0 0.0
        %908 = vmatpush1.msra.mxu0 0.0
        %909 = vmatprep.subr.mxu0 0.0
        %910 = vmatpush1.msra.mxu0 0.0
        %911 = vmatprep.subr.mxu0 0.0
        %912 = vmatpush1.msra.mxu0 0.0
        %913 = vmatprep.subr.mxu0 0.0
        %914 = vmatpush1.msra.mxu0 0.0
        %915 = vmatprep.subr.mxu0 0.0
        %916 = vmatpush1.msra.mxu0 0.0
        %917 = vmatprep.subr.mxu0 0.0
        %918 = vmatpush1.msra.mxu0 0.0
        %919 = vmatprep.subr.mxu0 0.0
        %920 = vmatpush1.msra.mxu0 0.0
        %921 = vmatprep.subr.mxu0 0.0
        %922 = vmatpush1.msra.mxu0 0.0
        %923 = vmatprep.subr.mxu0 0.0
        %924 = vmatpush1.msra.mxu0 0.0
        %925 = vmatprep.subr.mxu0 0.0
        %926 = vmatpush1.msra.mxu0 0.0
        %927 = vmatprep.subr.mxu0 0.0
        %928 = vmatpush1.msra.mxu0 0.0
        %929 = vmatprep.subr.mxu0 0.0
        %930 = vmatpush1.msra.mxu0 0.0
        %931 = vmatprep.subr.mxu0 0.0
        %932 = vmatpush1.msra.mxu0 0.0
        %933 = vmatprep.subr.mxu0 0.0
        %934 = vmatpush1.msra.mxu0 0.0
        %935 = vmatprep.mubr.f32.mxu0 0.0
        %936 = vmatmul.mubr.f32.gmra.mrb[0].mxu0 %v371
        %v937 = vpop.f32.mrb[0].mxu0
        %v938 = vadd.f32 %v342, %v937
        %v939 = vpop.f32.mrb[0].mxu0
        %v940 = vadd.f32 %v342, %v939
        %941 = vmatprep.mubr.f32.mxu0 0.0
        %942 = vmatmul.mubr.f32.gmra.mrb[0].mxu0 %v374
        %v943 = vpop.f32.mrb[0].mxu0
        %v944 = vadd.f32 %v347, %v943
        %v945 = vpop.f32.mrb[0].mxu0
        %v946 = vadd.f32 %v347, %v945
        %947 = vmatprep.mubr.f32.mxu0 0.0
        %948 = vmatmul.mubr.f32.gmra.mrb[0].mxu0 %v377
        %v949 = vpop.f32.mrb[0].mxu0
        %v950 = vadd.f32 %v352, %v949
        %v951 = vpop.f32.mrb[0].mxu0
        %v952 = vadd.f32 %v352, %v951
        %953 = vmatprep.mubr.f32.mxu0 0.0
        %954 = vmatmul.mubr.f32.gmra.mrb[0].mxu0 %v380
        %v955 = vpop.f32.mrb[0].mxu0
        %v956 = vadd.f32 %v357, %v955
        %v957 = vpop.f32.mrb[0].mxu0
        %v958 = vadd.f32 %v357, %v957
        %959 = vmatprep.mubr.f32.mxu0 0.0
        %960 = vmatmul.mubr.f32.gmra.mrb[0].mxu0 %v383
        %v961 = vpop.f32.mrb[0].mxu0
        %v962 = vadd.f32 %v362, %v961
        %v963 = vpop.f32.mrb[0].mxu0
        %v964 = vadd.f32 %v362, %v963
        %965 = vmatprep.mubr.f32.mxu0 0.0
        %966 = vmatmul.mubr.f32.gmra.mrb[0].mxu0 %v386
        %v967 = vpop.f32.mrb[0].mxu0
        %v968 = vadd.f32 %v367, %v967
        %v969 = vpop.f32.mrb[0].mxu0
        %v970 = vadd.f32 %v367, %v969
        %971 = vdwg.mxu0
        %s972 = scalar_lea.vmem [#allocation2], 384
        %973 = vst [vmem:[%s972] sm:$0xff] %v938
        %974 = vst [vmem:[%s972 + $0x8] sm:$0xff] %v940
        %975 = vst [vmem:[%s972 + $0x10] sm:$0xff] %v944
        %976 = vst [vmem:[%s972 + $0x18] sm:$0xff] %v946
        %977 = vst [vmem:[%s972 + $0x20] sm:$0xff] %v950
        %978 = vst [vmem:[%s972 + $0x28] sm:$0xff] %v952
        %979 = vst [vmem:[%s972 + $0x30] sm:$0xff] %v956
        %980 = vst [vmem:[%s972 + $0x38] sm:$0xff] %v958
        %981 = vst [vmem:[%s972 + $0x40] sm:$0xff] %v962
        %982 = vst [vmem:[%s972 + $0x48] sm:$0xff] %v964
        %983 = vst [vmem:[%s972 + $0x50] sm:$0xff] %v968
        %984 = vst [vmem:[%s972 + $0x58] sm:$0xff] %v970
        %v985 = vld [vmem:[#allocation2] sm:$0xff]
        %v986 = vld [vmem:[#allocation2 + $0x8] sm:$0xff]
        %v987 = vld [vmem:[#allocation2 + $0x20] sm:$0xff]
        %v988 = vld [vmem:[#allocation2 + $0x28] sm:$0xff]
        %v989 = vmul.f32 %v985, %v987
        %v990 = vmul.f32 %v986, %v988
        %v991 = vrot.slane %v989, 4
        %v992 = vadd.f32 %v989, %v991
        %v993 = vrot.slane %v992, 2
        %v994 = vadd.f32 %v992, %v993
        %v995 = vrot.slane %v994, 1
        %v996 = vadd.f32 %v994, %v995
        %v997 = vrot.slane %v990, 4
        %v998 = vadd.f32 %v990, %v997
        %v999 = vrot.slane %v998, 2
        %v1000 = vadd.f32 %v998, %v999
        %v1001 = vrot.slane %v1000, 1
        %v1002 = vadd.f32 %v1000, %v1001
        %v1003 = vld [vmem:[%s609 + $0x20] sm:$0xff]
        %v1004 = vld [vmem:[%s609 + $0x28] sm:$0xff]
        %v1005 = vmul.f32 %v985, %v1003
        %v1006 = vmul.f32 %v986, %v1004
        %v1007 = vrot.slane %v1005, 4
        %v1008 = vadd.f32 %v1005, %v1007
        %v1009 = vrot.slane %v1008, 2
        %v1010 = vadd.f32 %v1008, %v1009
        %v1011 = vrot.slane %v1010, 1
        %v1012 = vadd.f32 %v1010, %v1011
        %v1013 = vrot.slane %v1006, 4
        %v1014 = vadd.f32 %v1006, %v1013
        %v1015 = vrot.slane %v1014, 2
        %v1016 = vadd.f32 %v1014, %v1015
        %v1017 = vrot.slane %v1016, 1
        %v1018 = vadd.f32 %v1016, %v1017
        %v1019 = vld [vmem:[%s730 + $0x20] sm:$0xff]
        %v1020 = vld [vmem:[%s730 + $0x28] sm:$0xff]
        %v1021 = vmul.f32 %v985, %v1019
        %v1022 = vmul.f32 %v986, %v1020
        %v1023 = vrot.slane %v1021, 4
        %v1024 = vadd.f32 %v1021, %v1023
        %v1025 = vrot.slane %v1024, 2
        %v1026 = vadd.f32 %v1024, %v1025
        %v1027 = vrot.slane %v1026, 1
        %v1028 = vadd.f32 %v1026, %v1027
        %v1029 = vrot.slane %v1022, 4
        %v1030 = vadd.f32 %v1022, %v1029
        %v1031 = vrot.slane %v1030, 2
        %v1032 = vadd.f32 %v1030, %v1031
        %v1033 = vrot.slane %v1032, 1
        %v1034 = vadd.f32 %v1032, %v1033
        %v1035 = vld [vmem:[%s851 + $0x20] sm:$0xff]
        %v1036 = vld [vmem:[%s851 + $0x28] sm:$0xff]
        %v1037 = vmul.f32 %v985, %v1035
        %v1038 = vmul.f32 %v986, %v1036
        %v1039 = vrot.slane %v1037, 4
        %v1040 = vadd.f32 %v1037, %v1039
        %v1041 = vrot.slane %v1040, 2
        %v1042 = vadd.f32 %v1040, %v1041
        %v1043 = vrot.slane %v1042, 1
        %v1044 = vadd.f32 %v1042, %v1043
        %v1045 = vrot.slane %v1038, 4
        %v1046 = vadd.f32 %v1038, %v1045
        %v1047 = vrot.slane %v1046, 2
        %v1048 = vadd.f32 %v1046, %v1047
        %v1049 = vrot.slane %v1048, 1
        %v1050 = vadd.f32 %v1048, %v1049
        %v1051 = vld [vmem:[%s972 + $0x20] sm:$0xff]
        %v1052 = vld [vmem:[%s972 + $0x28] sm:$0xff]
        %v1053 = vmul.f32 %v985, %v1051
        %v1054 = vmul.f32 %v986, %v1052
        %v1055 = vrot.slane %v1053, 4
        %v1056 = vadd.f32 %v1053, %v1055
        %v1057 = vrot.slane %v1056, 2
        %v1058 = vadd.f32 %v1056, %v1057
        %v1059 = vrot.slane %v1058, 1
        %v1060 = vadd.f32 %v1058, %v1059
        %v1061 = vrot.slane %v1054, 4
        %v1062 = vadd.f32 %v1054, %v1061
        %v1063 = vrot.slane %v1062, 2
        %v1064 = vadd.f32 %v1062, %v1063
        %v1065 = vrot.slane %v1064, 1
        %v1066 = vadd.f32 %v1064, %v1065
        %vm1067 = vcmask 1040384
        %v1068 = vsel %vm1067, %v996, %v1012
        %v1069 = vsel %vm1067, %v1002, %v1018
        %vm1070 = vcmask 1041408
        %v1071 = vsel %vm1070, %v1068, %v1028
        %v1072 = vsel %vm1070, %v1069, %v1034
        %vm1073 = vcmask 1042432
        %v1074 = vsel %vm1073, %v1071, %v1044
        %v1075 = vsel %vm1073, %v1072, %v1050
        %vm1076 = vcmask 1043456
        %v1077 = vsel %vm1076, %v1074, %v1060
        %v1078 = vsel %vm1076, %v1075, %v1066
        %vm1079 = vcmask 1044480
        %v1080 = vsel %vm1079, %v1077, -inf
        %v1081 = vrot.slane %v1080, 4
        %v1082 = vmax.f32 %v1080, %v1081
        %v1083 = vrot.slane %v1082, 2
        %v1084 = vmax.f32 %v1082, %v1083
        %v1085 = vrot.slane %v1084, 1
        %v1086 = vmax.f32 %v1084, %v1085
        %v1087 = vsel %vm1079, %v1078, -inf
        %v1088 = vrot.slane %v1087, 4
        %v1089 = vmax.f32 %v1087, %v1088
        %v1090 = vrot.slane %v1089, 2
        %v1091 = vmax.f32 %v1089, %v1090
        %v1092 = vrot.slane %v1091, 1
        %v1093 = vmax.f32 %v1091, %v1092
        %v1094 = vsub.f32 %v1077, %v1086
        %v1095 = vsub.f32 %v1078, %v1093
        %v1096 = vmul.f32 %v1094, 1.442695
        %v1097 = vpow.pop %v1096
        %v1098 = vmul.f32 %v1095, 1.442695
        %v1099 = vpow.pop %v1098
        %v1100 = vsel %vm1079, %v1097, 0.0
        %v1101 = vrot.slane %v1100, 4
        %v1102 = vadd.f32 %v1100, %v1101
        %v1103 = vrot.slane %v1102, 2
        %v1104 = vadd.f32 %v1102, %v1103
        %v1105 = vrot.slane %v1104, 1
        %v1106 = vadd.f32 %v1104, %v1105
        %v1107 = vsel %vm1079, %v1099, 0.0
        %v1108 = vrot.slane %v1107, 4
        %v1109 = vadd.f32 %v1107, %v1108
        %v1110 = vrot.slane %v1109, 2
        %v1111 = vadd.f32 %v1109, %v1110
        %v1112 = vrot.slane %v1111, 1
        %v1113 = vadd.f32 %v1111, %v1112
        %v1114 = vrcp.pop %v1106
        %v1115 = vrcp.pop %v1113
        %v1116 = vmul.f32 %v1097, %v1114
        %v1117 = vmul.f32 %v1099, %v1115
        %v1118 = vld [vmem:[%s609] sm:$0xff]
        %v1119 = vld [vmem:[%s609 + $0x8] sm:$0xff]
        %v1120 = vmul.f32 %v1118, %v987
        %v1121 = vmul.f32 %v1119, %v988
        %v1122 = vrot.slane %v1120, 4
        %v1123 = vadd.f32 %v1120, %v1122
        %v1124 = vrot.slane %v1123, 2
        %v1125 = vadd.f32 %v1123, %v1124
        %v1126 = vrot.slane %v1125, 1
        %v1127 = vadd.f32 %v1125, %v1126
        %v1128 = vrot.slane %v1121, 4
        %v1129 = vadd.f32 %v1121, %v1128
        %v1130 = vrot.slane %v1129, 2
        %v1131 = vadd.f32 %v1129, %v1130
        %v1132 = vrot.slane %v1131, 1
        %v1133 = vadd.f32 %v1131, %v1132
        %v1134 = vmul.f32 %v1118, %v1003
        %v1135 = vmul.f32 %v1119, %v1004
        %v1136 = vrot.slane %v1134, 4
        %v1137 = vadd.f32 %v1134, %v1136
        %v1138 = vrot.slane %v1137, 2
        %v1139 = vadd.f32 %v1137, %v1138
        %v1140 = vrot.slane %v1139, 1
        %v1141 = vadd.f32 %v1139, %v1140
        %v1142 = vrot.slane %v1135, 4
        %v1143 = vadd.f32 %v1135, %v1142
        %v1144 = vrot.slane %v1143, 2
        %v1145 = vadd.f32 %v1143, %v1144
        %v1146 = vrot.slane %v1145, 1
        %v1147 = vadd.f32 %v1145, %v1146
        %v1148 = vmul.f32 %v1118, %v1019
        %v1149 = vmul.f32 %v1119, %v1020
        %v1150 = vrot.slane %v1148, 4
        %v1151 = vadd.f32 %v1148, %v1150
        %v1152 = vrot.slane %v1151, 2
        %v1153 = vadd.f32 %v1151, %v1152
        %v1154 = vrot.slane %v1153, 1
        %v1155 = vadd.f32 %v1153, %v1154
        %v1156 = vrot.slane %v1149, 4
        %v1157 = vadd.f32 %v1149, %v1156
        %v1158 = vrot.slane %v1157, 2
        %v1159 = vadd.f32 %v1157, %v1158
        %v1160 = vrot.slane %v1159, 1
        %v1161 = vadd.f32 %v1159, %v1160
        %v1162 = vmul.f32 %v1118, %v1035
        %v1163 = vmul.f32 %v1119, %v1036
        %v1164 = vrot.slane %v1162, 4
        %v1165 = vadd.f32 %v1162, %v1164
        %v1166 = vrot.slane %v1165, 2
        %v1167 = vadd.f32 %v1165, %v1166
        %v1168 = vrot.slane %v1167, 1
        %v1169 = vadd.f32 %v1167, %v1168
        %v1170 = vrot.slane %v1163, 4
        %v1171 = vadd.f32 %v1163, %v1170
        %v1172 = vrot.slane %v1171, 2
        %v1173 = vadd.f32 %v1171, %v1172
        %v1174 = vrot.slane %v1173, 1
        %v1175 = vadd.f32 %v1173, %v1174
        %v1176 = vmul.f32 %v1118, %v1051
        %v1177 = vmul.f32 %v1119, %v1052
        %v1178 = vrot.slane %v1176, 4
        %v1179 = vadd.f32 %v1176, %v1178
        %v1180 = vrot.slane %v1179, 2
        %v1181 = vadd.f32 %v1179, %v1180
        %v1182 = vrot.slane %v1181, 1
        %v1183 = vadd.f32 %v1181, %v1182
        %v1184 = vrot.slane %v1177, 4
        %v1185 = vadd.f32 %v1177, %v1184
        %v1186 = vrot.slane %v1185, 2
        %v1187 = vadd.f32 %v1185, %v1186
        %v1188 = vrot.slane %v1187, 1
        %v1189 = vadd.f32 %v1187, %v1188
        %v1190 = vsel %vm1067, %v1127, %v1141
        %v1191 = vsel %vm1067, %v1133, %v1147
        %v1192 = vsel %vm1070, %v1190, %v1155
        %v1193 = vsel %vm1070, %v1191, %v1161
        %v1194 = vsel %vm1073, %v1192, %v1169
        %v1195 = vsel %vm1073, %v1193, %v1175
        %v1196 = vsel %vm1076, %v1194, %v1183
        %v1197 = vsel %vm1076, %v1195, %v1189
        %v1198 = vsel %vm1079, %v1196, -inf
        %v1199 = vrot.slane %v1198, 4
        %v1200 = vmax.f32 %v1198, %v1199
        %v1201 = vrot.slane %v1200, 2
        %v1202 = vmax.f32 %v1200, %v1201
        %v1203 = vrot.slane %v1202, 1
        %v1204 = vmax.f32 %v1202, %v1203
        %v1205 = vsel %vm1079, %v1197, -inf
        %v1206 = vrot.slane %v1205, 4
        %v1207 = vmax.f32 %v1205, %v1206
        %v1208 = vrot.slane %v1207, 2
        %v1209 = vmax.f32 %v1207, %v1208
        %v1210 = vrot.slane %v1209, 1
        %v1211 = vmax.f32 %v1209, %v1210
        %v1212 = vsub.f32 %v1196, %v1204
        %v1213 = vsub.f32 %v1197, %v1211
        %v1214 = vmul.f32 %v1212, 1.442695
        %v1215 = vpow.pop %v1214
        %v1216 = vmul.f32 %v1213, 1.442695
        %v1217 = vpow.pop %v1216
        %v1218 = vsel %vm1079, %v1215, 0.0
        %v1219 = vrot.slane %v1218, 4
        %v1220 = vadd.f32 %v1218, %v1219
        %v1221 = vrot.slane %v1220, 2
        %v1222 = vadd.f32 %v1220, %v1221
        %v1223 = vrot.slane %v1222, 1
        %v1224 = vadd.f32 %v1222, %v1223
        %v1225 = vsel %vm1079, %v1217, 0.0
        %v1226 = vrot.slane %v1225, 4
        %v1227 = vadd.f32 %v1225, %v1226
        %v1228 = vrot.slane %v1227, 2
        %v1229 = vadd.f32 %v1227, %v1228
        %v1230 = vrot.slane %v1229, 1
        %v1231 = vadd.f32 %v1229, %v1230
        %v1232 = vrcp.pop %v1224
        %v1233 = vrcp.pop %v1231
        %v1234 = vmul.f32 %v1215, %v1232
        %v1235 = vmul.f32 %v1217, %v1233
        %v1236 = vadd.f32 %v1116, %v1234
        %v1237 = vadd.f32 %v1117, %v1235
        %v1238 = vld [vmem:[%s730] sm:$0xff]
        %v1239 = vld [vmem:[%s730 + $0x8] sm:$0xff]
        %v1240 = vmul.f32 %v1238, %v987
        %v1241 = vmul.f32 %v1239, %v988
        %v1242 = vrot.slane %v1240, 4
        %v1243 = vadd.f32 %v1240, %v1242
        %v1244 = vrot.slane %v1243, 2
        %v1245 = vadd.f32 %v1243, %v1244
        %v1246 = vrot.slane %v1245, 1
        %v1247 = vadd.f32 %v1245, %v1246
        %v1248 = vrot.slane %v1241, 4
        %v1249 = vadd.f32 %v1241, %v1248
        %v1250 = vrot.slane %v1249, 2
        %v1251 = vadd.f32 %v1249, %v1250
        %v1252 = vrot.slane %v1251, 1
        %v1253 = vadd.f32 %v1251, %v1252
        %v1254 = vmul.f32 %v1238, %v1003
        %v1255 = vmul.f32 %v1239, %v1004
        %v1256 = vrot.slane %v1254, 4
        %v1257 = vadd.f32 %v1254, %v1256
        %v1258 = vrot.slane %v1257, 2
        %v1259 = vadd.f32 %v1257, %v1258
        %v1260 = vrot.slane %v1259, 1
        %v1261 = vadd.f32 %v1259, %v1260
        %v1262 = vrot.slane %v1255, 4
        %v1263 = vadd.f32 %v1255, %v1262
        %v1264 = vrot.slane %v1263, 2
        %v1265 = vadd.f32 %v1263, %v1264
        %v1266 = vrot.slane %v1265, 1
        %v1267 = vadd.f32 %v1265, %v1266
        %v1268 = vmul.f32 %v1238, %v1019
        %v1269 = vmul.f32 %v1239, %v1020
        %v1270 = vrot.slane %v1268, 4
        %v1271 = vadd.f32 %v1268, %v1270
        %v1272 = vrot.slane %v1271, 2
        %v1273 = vadd.f32 %v1271, %v1272
        %v1274 = vrot.slane %v1273, 1
        %v1275 = vadd.f32 %v1273, %v1274
        %v1276 = vrot.slane %v1269, 4
        %v1277 = vadd.f32 %v1269, %v1276
        %v1278 = vrot.slane %v1277, 2
        %v1279 = vadd.f32 %v1277, %v1278
        %v1280 = vrot.slane %v1279, 1
        %v1281 = vadd.f32 %v1279, %v1280
        %v1282 = vmul.f32 %v1238, %v1035
        %v1283 = vmul.f32 %v1239, %v1036
        %v1284 = vrot.slane %v1282, 4
        %v1285 = vadd.f32 %v1282, %v1284
        %v1286 = vrot.slane %v1285, 2
        %v1287 = vadd.f32 %v1285, %v1286
        %v1288 = vrot.slane %v1287, 1
        %v1289 = vadd.f32 %v1287, %v1288
        %v1290 = vrot.slane %v1283, 4
        %v1291 = vadd.f32 %v1283, %v1290
        %v1292 = vrot.slane %v1291, 2
        %v1293 = vadd.f32 %v1291, %v1292
        %v1294 = vrot.slane %v1293, 1
        %v1295 = vadd.f32 %v1293, %v1294
        %v1296 = vmul.f32 %v1238, %v1051
        %v1297 = vmul.f32 %v1239, %v1052
        %v1298 = vrot.slane %v1296, 4
        %v1299 = vadd.f32 %v1296, %v1298
        %v1300 = vrot.slane %v1299, 2
        %v1301 = vadd.f32 %v1299, %v1300
        %v1302 = vrot.slane %v1301, 1
        %v1303 = vadd.f32 %v1301, %v1302
        %v1304 = vrot.slane %v1297, 4
        %v1305 = vadd.f32 %v1297, %v1304
        %v1306 = vrot.slane %v1305, 2
        %v1307 = vadd.f32 %v1305, %v1306
        %v1308 = vrot.slane %v1307, 1
        %v1309 = vadd.f32 %v1307, %v1308
        %v1310 = vsel %vm1067, %v1247, %v1261
        %v1311 = vsel %vm1067, %v1253, %v1267
        %v1312 = vsel %vm1070, %v1310, %v1275
        %v1313 = vsel %vm1070, %v1311, %v1281
        %v1314 = vsel %vm1073, %v1312, %v1289
        %v1315 = vsel %vm1073, %v1313, %v1295
        %v1316 = vsel %vm1076, %v1314, %v1303
        %v1317 = vsel %vm1076, %v1315, %v1309
        %v1318 = vsel %vm1079, %v1316, -inf
        %v1319 = vrot.slane %v1318, 4
        %v1320 = vmax.f32 %v1318, %v1319
        %v1321 = vrot.slane %v1320, 2
        %v1322 = vmax.f32 %v1320, %v1321
        %v1323 = vrot.slane %v1322, 1
        %v1324 = vmax.f32 %v1322, %v1323
        %v1325 = vsel %vm1079, %v1317, -inf
        %v1326 = vrot.slane %v1325, 4
        %v1327 = vmax.f32 %v1325, %v1326
        %v1328 = vrot.slane %v1327, 2
        %v1329 = vmax.f32 %v1327, %v1328
        %v1330 = vrot.slane %v1329, 1
        %v1331 = vmax.f32 %v1329, %v1330
        %v1332 = vsub.f32 %v1316, %v1324
        %v1333 = vsub.f32 %v1317, %v1331
        %v1334 = vmul.f32 %v1332, 1.442695
        %v1335 = vpow.pop %v1334
        %v1336 = vmul.f32 %v1333, 1.442695
        %v1337 = vpow.pop %v1336
        %v1338 = vsel %vm1079, %v1335, 0.0
        %v1339 = vrot.slane %v1338, 4
        %v1340 = vadd.f32 %v1338, %v1339
        %v1341 = vrot.slane %v1340, 2
        %v1342 = vadd.f32 %v1340, %v1341
        %v1343 = vrot.slane %v1342, 1
        %v1344 = vadd.f32 %v1342, %v1343
        %v1345 = vsel %vm1079, %v1337, 0.0
        %v1346 = vrot.slane %v1345, 4
        %v1347 = vadd.f32 %v1345, %v1346
        %v1348 = vrot.slane %v1347, 2
        %v1349 = vadd.f32 %v1347, %v1348
        %v1350 = vrot.slane %v1349, 1
        %v1351 = vadd.f32 %v1349, %v1350
        %v1352 = vrcp.pop %v1344
        %v1353 = vrcp.pop %v1351
        %v1354 = vmul.f32 %v1335, %v1352
        %v1355 = vmul.f32 %v1337, %v1353
        %v1356 = vadd.f32 %v1236, %v1354
        %v1357 = vadd.f32 %v1237, %v1355
        %v1358 = vld [vmem:[%s851] sm:$0xff]
        %v1359 = vld [vmem:[%s851 + $0x8] sm:$0xff]
        %v1360 = vmul.f32 %v1358, %v987
        %v1361 = vmul.f32 %v1359, %v988
        %v1362 = vrot.slane %v1360, 4
        %v1363 = vadd.f32 %v1360, %v1362
        %v1364 = vrot.slane %v1363, 2
        %v1365 = vadd.f32 %v1363, %v1364
        %v1366 = vrot.slane %v1365, 1
        %v1367 = vadd.f32 %v1365, %v1366
        %v1368 = vrot.slane %v1361, 4
        %v1369 = vadd.f32 %v1361, %v1368
        %v1370 = vrot.slane %v1369, 2
        %v1371 = vadd.f32 %v1369, %v1370
        %v1372 = vrot.slane %v1371, 1
        %v1373 = vadd.f32 %v1371, %v1372
        %v1374 = vmul.f32 %v1358, %v1003
        %v1375 = vmul.f32 %v1359, %v1004
        %v1376 = vrot.slane %v1374, 4
        %v1377 = vadd.f32 %v1374, %v1376
        %v1378 = vrot.slane %v1377, 2
        %v1379 = vadd.f32 %v1377, %v1378
        %v1380 = vrot.slane %v1379, 1
        %v1381 = vadd.f32 %v1379, %v1380
        %v1382 = vrot.slane %v1375, 4
        %v1383 = vadd.f32 %v1375, %v1382
        %v1384 = vrot.slane %v1383, 2
        %v1385 = vadd.f32 %v1383, %v1384
        %v1386 = vrot.slane %v1385, 1
        %v1387 = vadd.f32 %v1385, %v1386
        %v1388 = vmul.f32 %v1358, %v1019
        %v1389 = vmul.f32 %v1359, %v1020
        %v1390 = vrot.slane %v1388, 4
        %v1391 = vadd.f32 %v1388, %v1390
        %v1392 = vrot.slane %v1391, 2
        %v1393 = vadd.f32 %v1391, %v1392
        %v1394 = vrot.slane %v1393, 1
        %v1395 = vadd.f32 %v1393, %v1394
        %v1396 = vrot.slane %v1389, 4
        %v1397 = vadd.f32 %v1389, %v1396
        %v1398 = vrot.slane %v1397, 2
        %v1399 = vadd.f32 %v1397, %v1398
        %v1400 = vrot.slane %v1399, 1
        %v1401 = vadd.f32 %v1399, %v1400
        %v1402 = vmul.f32 %v1358, %v1035
        %v1403 = vmul.f32 %v1359, %v1036
        %v1404 = vrot.slane %v1402, 4
        %v1405 = vadd.f32 %v1402, %v1404
        %v1406 = vrot.slane %v1405, 2
        %v1407 = vadd.f32 %v1405, %v1406
        %v1408 = vrot.slane %v1407, 1
        %v1409 = vadd.f32 %v1407, %v1408
        %v1410 = vrot.slane %v1403, 4
        %v1411 = vadd.f32 %v1403, %v1410
        %v1412 = vrot.slane %v1411, 2
        %v1413 = vadd.f32 %v1411, %v1412
        %v1414 = vrot.slane %v1413, 1
        %v1415 = vadd.f32 %v1413, %v1414
        %v1416 = vmul.f32 %v1358, %v1051
        %v1417 = vmul.f32 %v1359, %v1052
        %v1418 = vrot.slane %v1416, 4
        %v1419 = vadd.f32 %v1416, %v1418
        %v1420 = vrot.slane %v1419, 2
        %v1421 = vadd.f32 %v1419, %v1420
        %v1422 = vrot.slane %v1421, 1
        %v1423 = vadd.f32 %v1421, %v1422
        %v1424 = vrot.slane %v1417, 4
        %v1425 = vadd.f32 %v1417, %v1424
        %v1426 = vrot.slane %v1425, 2
        %v1427 = vadd.f32 %v1425, %v1426
        %v1428 = vrot.slane %v1427, 1
        %v1429 = vadd.f32 %v1427, %v1428
        %v1430 = vsel %vm1067, %v1367, %v1381
        %v1431 = vsel %vm1067, %v1373, %v1387
        %v1432 = vsel %vm1070, %v1430, %v1395
        %v1433 = vsel %vm1070, %v1431, %v1401
        %v1434 = vsel %vm1073, %v1432, %v1409
        %v1435 = vsel %vm1073, %v1433, %v1415
        %v1436 = vsel %vm1076, %v1434, %v1423
        %v1437 = vsel %vm1076, %v1435, %v1429
        %v1438 = vsel %vm1079, %v1436, -inf
        %v1439 = vrot.slane %v1438, 4
        %v1440 = vmax.f32 %v1438, %v1439
        %v1441 = vrot.slane %v1440, 2
        %v1442 = vmax.f32 %v1440, %v1441
        %v1443 = vrot.slane %v1442, 1
        %v1444 = vmax.f32 %v1442, %v1443
        %v1445 = vsel %vm1079, %v1437, -inf
        %v1446 = vrot.slane %v1445, 4
        %v1447 = vmax.f32 %v1445, %v1446
        %v1448 = vrot.slane %v1447, 2
        %v1449 = vmax.f32 %v1447, %v1448
        %v1450 = vrot.slane %v1449, 1
        %v1451 = vmax.f32 %v1449, %v1450
        %v1452 = vsub.f32 %v1436, %v1444
        %v1453 = vsub.f32 %v1437, %v1451
        %v1454 = vmul.f32 %v1452, 1.442695
        %v1455 = vpow.pop %v1454
        %v1456 = vmul.f32 %v1453, 1.442695
        %v1457 = vpow.pop %v1456
        %v1458 = vsel %vm1079, %v1455, 0.0
        %v1459 = vrot.slane %v1458, 4
        %v1460 = vadd.f32 %v1458, %v1459
        %v1461 = vrot.slane %v1460, 2
        %v1462 = vadd.f32 %v1460, %v1461
        %v1463 = vrot.slane %v1462, 1
        %v1464 = vadd.f32 %v1462, %v1463
        %v1465 = vsel %vm1079, %v1457, 0.0
        %v1466 = vrot.slane %v1465, 4
        %v1467 = vadd.f32 %v1465, %v1466
        %v1468 = vrot.slane %v1467, 2
        %v1469 = vadd.f32 %v1467, %v1468
        %v1470 = vrot.slane %v1469, 1
        %v1471 = vadd.f32 %v1469, %v1470
        %v1472 = vrcp.pop %v1464
        %v1473 = vrcp.pop %v1471
        %v1474 = vmul.f32 %v1455, %v1472
        %v1475 = vmul.f32 %v1457, %v1473
        %v1476 = vadd.f32 %v1356, %v1474
        %v1477 = vadd.f32 %v1357, %v1475
        %v1478 = vld [vmem:[%s972] sm:$0xff]
        %v1479 = vld [vmem:[%s972 + $0x8] sm:$0xff]
        %v1480 = vmul.f32 %v1478, %v987
        %v1481 = vmul.f32 %v1479, %v988
        %v1482 = vrot.slane %v1480, 4
        %v1483 = vadd.f32 %v1480, %v1482
        %v1484 = vrot.slane %v1483, 2
        %v1485 = vadd.f32 %v1483, %v1484
        %v1486 = vrot.slane %v1485, 1
        %v1487 = vadd.f32 %v1485, %v1486
        %v1488 = vrot.slane %v1481, 4
        %v1489 = vadd.f32 %v1481, %v1488
        %v1490 = vrot.slane %v1489, 2
        %v1491 = vadd.f32 %v1489, %v1490
        %v1492 = vrot.slane %v1491, 1
        %v1493 = vadd.f32 %v1491, %v1492
        %v1494 = vmul.f32 %v1478, %v1003
        %v1495 = vmul.f32 %v1479, %v1004
        %v1496 = vrot.slane %v1494, 4
        %v1497 = vadd.f32 %v1494, %v1496
        %v1498 = vrot.slane %v1497, 2
        %v1499 = vadd.f32 %v1497, %v1498
        %v1500 = vrot.slane %v1499, 1
        %v1501 = vadd.f32 %v1499, %v1500
        %v1502 = vrot.slane %v1495, 4
        %v1503 = vadd.f32 %v1495, %v1502
        %v1504 = vrot.slane %v1503, 2
        %v1505 = vadd.f32 %v1503, %v1504
        %v1506 = vrot.slane %v1505, 1
        %v1507 = vadd.f32 %v1505, %v1506
        %v1508 = vmul.f32 %v1478, %v1019
        %v1509 = vmul.f32 %v1479, %v1020
        %v1510 = vrot.slane %v1508, 4
        %v1511 = vadd.f32 %v1508, %v1510
        %v1512 = vrot.slane %v1511, 2
        %v1513 = vadd.f32 %v1511, %v1512
        %v1514 = vrot.slane %v1513, 1
        %v1515 = vadd.f32 %v1513, %v1514
        %v1516 = vrot.slane %v1509, 4
        %v1517 = vadd.f32 %v1509, %v1516
        %v1518 = vrot.slane %v1517, 2
        %v1519 = vadd.f32 %v1517, %v1518
        %v1520 = vrot.slane %v1519, 1
        %v1521 = vadd.f32 %v1519, %v1520
        %v1522 = vmul.f32 %v1478, %v1035
        %v1523 = vmul.f32 %v1479, %v1036
        %v1524 = vrot.slane %v1522, 4
        %v1525 = vadd.f32 %v1522, %v1524
        %v1526 = vrot.slane %v1525, 2
        %v1527 = vadd.f32 %v1525, %v1526
        %v1528 = vrot.slane %v1527, 1
        %v1529 = vadd.f32 %v1527, %v1528
        %v1530 = vrot.slane %v1523, 4
        %v1531 = vadd.f32 %v1523, %v1530
        %v1532 = vrot.slane %v1531, 2
        %v1533 = vadd.f32 %v1531, %v1532
        %v1534 = vrot.slane %v1533, 1
        %v1535 = vadd.f32 %v1533, %v1534
        %v1536 = vmul.f32 %v1478, %v1051
        %v1537 = vmul.f32 %v1479, %v1052
        %v1538 = vrot.slane %v1536, 4
        %v1539 = vadd.f32 %v1536, %v1538
        %v1540 = vrot.slane %v1539, 2
        %v1541 = vadd.f32 %v1539, %v1540
        %v1542 = vrot.slane %v1541, 1
        %v1543 = vadd.f32 %v1541, %v1542
        %v1544 = vrot.slane %v1537, 4
        %v1545 = vadd.f32 %v1537, %v1544
        %v1546 = vrot.slane %v1545, 2
        %v1547 = vadd.f32 %v1545, %v1546
        %v1548 = vrot.slane %v1547, 1
        %v1549 = vadd.f32 %v1547, %v1548
        %v1550 = vsel %vm1067, %v1487, %v1501
        %v1551 = vsel %vm1067, %v1493, %v1507
        %v1552 = vsel %vm1070, %v1550, %v1515
        %v1553 = vsel %vm1070, %v1551, %v1521
        %v1554 = vsel %vm1073, %v1552, %v1529
        %v1555 = vsel %vm1073, %v1553, %v1535
        %v1556 = vsel %vm1076, %v1554, %v1543
        %v1557 = vsel %vm1076, %v1555, %v1549
        %v1558 = vsel %vm1079, %v1556, -inf
        %v1559 = vrot.slane %v1558, 4
        %v1560 = vmax.f32 %v1558, %v1559
        %v1561 = vrot.slane %v1560, 2
        %v1562 = vmax.f32 %v1560, %v1561
        %v1563 = vrot.slane %v1562, 1
        %v1564 = vmax.f32 %v1562, %v1563
        %v1565 = vsel %vm1079, %v1557, -inf
        %v1566 = vrot.slane %v1565, 4
        %v1567 = vmax.f32 %v1565, %v1566
        %v1568 = vrot.slane %v1567, 2
        %v1569 = vmax.f32 %v1567, %v1568
        %v1570 = vrot.slane %v1569, 1
        %v1571 = vmax.f32 %v1569, %v1570
        %v1572 = vsub.f32 %v1556, %v1564
        %v1573 = vsub.f32 %v1557, %v1571
        %v1574 = vmul.f32 %v1572, 1.442695
        %v1575 = vpow.pop %v1574
        %v1576 = vmul.f32 %v1573, 1.442695
        %v1577 = vpow.pop %v1576
        %v1578 = vsel %vm1079, %v1575, 0.0
        %v1579 = vrot.slane %v1578, 4
        %v1580 = vadd.f32 %v1578, %v1579
        %v1581 = vrot.slane %v1580, 2
        %v1582 = vadd.f32 %v1580, %v1581
        %v1583 = vrot.slane %v1582, 1
        %v1584 = vadd.f32 %v1582, %v1583
        %v1585 = vsel %vm1079, %v1577, 0.0
        %v1586 = vrot.slane %v1585, 4
        %v1587 = vadd.f32 %v1585, %v1586
        %v1588 = vrot.slane %v1587, 2
        %v1589 = vadd.f32 %v1587, %v1588
        %v1590 = vrot.slane %v1589, 1
        %v1591 = vadd.f32 %v1589, %v1590
        %v1592 = vrcp.pop %v1584
        %v1593 = vrcp.pop %v1591
        %v1594 = vmul.f32 %v1575, %v1592
        %v1595 = vmul.f32 %v1577, %v1593
        %v1596 = vadd.f32 %v1476, %v1594
        %v1597 = vadd.f32 %v1477, %v1595
        %v1598 = vmul.f32 %v1596, 0.2
        %v1599 = vmul.f32 %v1597, 0.2
        %v1600 = vld [vmem:[#allocation2 + $0x40] sm:$0xff]
        %v1601 = vld [vmem:[#allocation2 + $0x48] sm:$0xff]
        %v1602 = vlaneseq
        %v1603 = vshrl.u32 %v1602, 7
        %v1604 = vsub.s32 0, %v1603
        %v1605 = vrot.slane %v1598, %v1604
        %v1606 = vlaneseq
        %v1607 = vshrl.u32 %v1606, 7
        %v1608 = vsub.s32 0, %v1607
        %v1609 = vrot.slane %v1599, %v1608
        %v1610 = vmul.f32 %v1605, %v1600
        %v1611 = vmul.f32 %v1609, %v1601
        %v1612 = vld [vmem:[%s609 + $0x40] sm:$0xff]
        %v1613 = vld [vmem:[%s609 + $0x48] sm:$0xff]
        %v1614 = vlaneseq
        %v1615 = vshrl.u32 %v1614, 7
        %v1616 = vsub.s32 1, %v1615
        %v1617 = vrot.slane %v1598, %v1616
        %v1618 = vlaneseq
        %v1619 = vshrl.u32 %v1618, 7
        %v1620 = vsub.s32 1, %v1619
        %v1621 = vrot.slane %v1599, %v1620
        %v1622 = vmul.f32 %v1617, %v1612
        %v1623 = vmul.f32 %v1621, %v1613
        %v1624 = vadd.f32 %v1610, %v1622
        %v1625 = vadd.f32 %v1611, %v1623
        %v1626 = vld [vmem:[%s730 + $0x40] sm:$0xff]
        %v1627 = vld [vmem:[%s730 + $0x48] sm:$0xff]
        %v1628 = vlaneseq
        %v1629 = vshrl.u32 %v1628, 7
        %v1630 = vsub.s32 2, %v1629
        %v1631 = vrot.slane %v1598, %v1630
        %v1632 = vlaneseq
        %v1633 = vshrl.u32 %v1632, 7
        %v1634 = vsub.s32 2, %v1633
        %v1635 = vrot.slane %v1599, %v1634
        %v1636 = vmul.f32 %v1631, %v1626
        %v1637 = vmul.f32 %v1635, %v1627
        %v1638 = vadd.f32 %v1624, %v1636
        %v1639 = vadd.f32 %v1625, %v1637
        %v1640 = vld [vmem:[%s851 + $0x40] sm:$0xff]
        %v1641 = vld [vmem:[%s851 + $0x48] sm:$0xff]
        %v1642 = vlaneseq
        %v1643 = vshrl.u32 %v1642, 7
        %v1644 = vsub.s32 3, %v1643
        %v1645 = vrot.slane %v1598, %v1644
        %v1646 = vlaneseq
        %v1647 = vshrl.u32 %v1646, 7
        %v1648 = vsub.s32 3, %v1647
        %v1649 = vrot.slane %v1599, %v1648
        %v1650 = vmul.f32 %v1645, %v1640
        %v1651 = vmul.f32 %v1649, %v1641
        %v1652 = vadd.f32 %v1638, %v1650
        %v1653 = vadd.f32 %v1639, %v1651
        %v1654 = vld [vmem:[%s972 + $0x40] sm:$0xff]
        %v1655 = vld [vmem:[%s972 + $0x48] sm:$0xff]
        %v1656 = vlaneseq
        %v1657 = vshrl.u32 %v1656, 7
        %v1658 = vsub.s32 4, %v1657
        %v1659 = vrot.slane %v1598, %v1658
        %v1660 = vlaneseq
        %v1661 = vshrl.u32 %v1660, 7
        %v1662 = vsub.s32 4, %v1661
        %v1663 = vrot.slane %v1599, %v1662
        %v1664 = vmul.f32 %v1659, %v1654
        %v1665 = vmul.f32 %v1663, %v1655
        %v1666 = vadd.f32 %v1652, %v1664
        %v1667 = vadd.f32 %v1653, %v1665
        %v1668 = vld [vmem:[#allocation2 + $0x10] sm:$0xff]
        %v1669 = vld [vmem:[#allocation2 + $0x18] sm:$0xff]
        %v1670 = vld [vmem:[#allocation2 + $0x30] sm:$0xff]
        %v1671 = vld [vmem:[#allocation2 + $0x38] sm:$0xff]
        %v1672 = vmul.f32 %v1668, %v1670
        %v1673 = vmul.f32 %v1669, %v1671
        %v1674 = vrot.slane %v1672, 4
        %v1675 = vadd.f32 %v1672, %v1674
        %v1676 = vrot.slane %v1675, 2
        %v1677 = vadd.f32 %v1675, %v1676
        %v1678 = vrot.slane %v1677, 1
        %v1679 = vadd.f32 %v1677, %v1678
        %v1680 = vrot.slane %v1673, 4
        %v1681 = vadd.f32 %v1673, %v1680
        %v1682 = vrot.slane %v1681, 2
        %v1683 = vadd.f32 %v1681, %v1682
        %v1684 = vrot.slane %v1683, 1
        %v1685 = vadd.f32 %v1683, %v1684
        %v1686 = vld [vmem:[%s609 + $0x30] sm:$0xff]
        %v1687 = vld [vmem:[%s609 + $0x38] sm:$0xff]
        %v1688 = vmul.f32 %v1668, %v1686
        %v1689 = vmul.f32 %v1669, %v1687
        %v1690 = vrot.slane %v1688, 4
        %v1691 = vadd.f32 %v1688, %v1690
        %v1692 = vrot.slane %v1691, 2
        %v1693 = vadd.f32 %v1691, %v1692
        %v1694 = vrot.slane %v1693, 1
        %v1695 = vadd.f32 %v1693, %v1694
        %v1696 = vrot.slane %v1689, 4
        %v1697 = vadd.f32 %v1689, %v1696
        %v1698 = vrot.slane %v1697, 2
        %v1699 = vadd.f32 %v1697, %v1698
        %v1700 = vrot.slane %v1699, 1
        %v1701 = vadd.f32 %v1699, %v1700
        %v1702 = vld [vmem:[%s730 + $0x30] sm:$0xff]
        %v1703 = vld [vmem:[%s730 + $0x38] sm:$0xff]
        %v1704 = vmul.f32 %v1668, %v1702
        %v1705 = vmul.f32 %v1669, %v1703
        %v1706 = vrot.slane %v1704, 4
        %v1707 = vadd.f32 %v1704, %v1706
        %v1708 = vrot.slane %v1707, 2
        %v1709 = vadd.f32 %v1707, %v1708
        %v1710 = vrot.slane %v1709, 1
        %v1711 = vadd.f32 %v1709, %v1710
        %v1712 = vrot.slane %v1705, 4
        %v1713 = vadd.f32 %v1705, %v1712
        %v1714 = vrot.slane %v1713, 2
        %v1715 = vadd.f32 %v1713, %v1714
        %v1716 = vrot.slane %v1715, 1
        %v1717 = vadd.f32 %v1715, %v1716
        %v1718 = vld [vmem:[%s851 + $0x30] sm:$0xff]
        %v1719 = vld [vmem:[%s851 + $0x38] sm:$0xff]
        %v1720 = vmul.f32 %v1668, %v1718
        %v1721 = vmul.f32 %v1669, %v1719
        %v1722 = vrot.slane %v1720, 4
        %v1723 = vadd.f32 %v1720, %v1722
        %v1724 = vrot.slane %v1723, 2
        %v1725 = vadd.f32 %v1723, %v1724
        %v1726 = vrot.slane %v1725, 1
        %v1727 = vadd.f32 %v1725, %v1726
        %v1728 = vrot.slane %v1721, 4
        %v1729 = vadd.f32 %v1721, %v1728
        %v1730 = vrot.slane %v1729, 2
        %v1731 = vadd.f32 %v1729, %v1730
        %v1732 = vrot.slane %v1731, 1
        %v1733 = vadd.f32 %v1731, %v1732
        %v1734 = vld [vmem:[%s972 + $0x30] sm:$0xff]
        %v1735 = vld [vmem:[%s972 + $0x38] sm:$0xff]
        %v1736 = vmul.f32 %v1668, %v1734
        %v1737 = vmul.f32 %v1669, %v1735
        %v1738 = vrot.slane %v1736, 4
        %v1739 = vadd.f32 %v1736, %v1738
        %v1740 = vrot.slane %v1739, 2
        %v1741 = vadd.f32 %v1739, %v1740
        %v1742 = vrot.slane %v1741, 1
        %v1743 = vadd.f32 %v1741, %v1742
        %v1744 = vrot.slane %v1737, 4
        %v1745 = vadd.f32 %v1737, %v1744
        %v1746 = vrot.slane %v1745, 2
        %v1747 = vadd.f32 %v1745, %v1746
        %v1748 = vrot.slane %v1747, 1
        %v1749 = vadd.f32 %v1747, %v1748
        %v1750 = vsel %vm1067, %v1679, %v1695
        %v1751 = vsel %vm1067, %v1685, %v1701
        %v1752 = vsel %vm1070, %v1750, %v1711
        %v1753 = vsel %vm1070, %v1751, %v1717
        %v1754 = vsel %vm1073, %v1752, %v1727
        %v1755 = vsel %vm1073, %v1753, %v1733
        %v1756 = vsel %vm1076, %v1754, %v1743
        %v1757 = vsel %vm1076, %v1755, %v1749
        %v1758 = vsel %vm1079, %v1756, -inf
        %v1759 = vrot.slane %v1758, 4
        %v1760 = vmax.f32 %v1758, %v1759
        %v1761 = vrot.slane %v1760, 2
        %v1762 = vmax.f32 %v1760, %v1761
        %v1763 = vrot.slane %v1762, 1
        %v1764 = vmax.f32 %v1762, %v1763
        %v1765 = vsel %vm1079, %v1757, -inf
        %v1766 = vrot.slane %v1765, 4
        %v1767 = vmax.f32 %v1765, %v1766
        %v1768 = vrot.slane %v1767, 2
        %v1769 = vmax.f32 %v1767, %v1768
        %v1770 = vrot.slane %v1769, 1
        %v1771 = vmax.f32 %v1769, %v1770
        %v1772 = vsub.f32 %v1756, %v1764
        %v1773 = vsub.f32 %v1757, %v1771
        %v1774 = vmul.f32 %v1772, 1.442695
        %v1775 = vpow.pop %v1774
        %v1776 = vmul.f32 %v1773, 1.442695
        %v1777 = vpow.pop %v1776
        %v1778 = vsel %vm1079, %v1775, 0.0
        %v1779 = vrot.slane %v1778, 4
        %v1780 = vadd.f32 %v1778, %v1779
        %v1781 = vrot.slane %v1780, 2
        %v1782 = vadd.f32 %v1780, %v1781
        %v1783 = vrot.slane %v1782, 1
        %v1784 = vadd.f32 %v1782, %v1783
        %v1785 = vsel %vm1079, %v1777, 0.0
        %v1786 = vrot.slane %v1785, 4
        %v1787 = vadd.f32 %v1785, %v1786
        %v1788 = vrot.slane %v1787, 2
        %v1789 = vadd.f32 %v1787, %v1788
        %v1790 = vrot.slane %v1789, 1
        %v1791 = vadd.f32 %v1789, %v1790
        %v1792 = vrcp.pop %v1784
        %v1793 = vrcp.pop %v1791
        %v1794 = vmul.f32 %v1775, %v1792
        %v1795 = vmul.f32 %v1777, %v1793
        %v1796 = vld [vmem:[%s609 + $0x10] sm:$0xff]
        %v1797 = vld [vmem:[%s609 + $0x18] sm:$0xff]
        %v1798 = vmul.f32 %v1796, %v1670
        %v1799 = vmul.f32 %v1797, %v1671
        %v1800 = vrot.slane %v1798, 4
        %v1801 = vadd.f32 %v1798, %v1800
        %v1802 = vrot.slane %v1801, 2
        %v1803 = vadd.f32 %v1801, %v1802
        %v1804 = vrot.slane %v1803, 1
        %v1805 = vadd.f32 %v1803, %v1804
        %v1806 = vrot.slane %v1799, 4
        %v1807 = vadd.f32 %v1799, %v1806
        %v1808 = vrot.slane %v1807, 2
        %v1809 = vadd.f32 %v1807, %v1808
        %v1810 = vrot.slane %v1809, 1
        %v1811 = vadd.f32 %v1809, %v1810
        %v1812 = vmul.f32 %v1796, %v1686
        %v1813 = vmul.f32 %v1797, %v1687
        %v1814 = vrot.slane %v1812, 4
        %v1815 = vadd.f32 %v1812, %v1814
        %v1816 = vrot.slane %v1815, 2
        %v1817 = vadd.f32 %v1815, %v1816
        %v1818 = vrot.slane %v1817, 1
        %v1819 = vadd.f32 %v1817, %v1818
        %v1820 = vrot.slane %v1813, 4
        %v1821 = vadd.f32 %v1813, %v1820
        %v1822 = vrot.slane %v1821, 2
        %v1823 = vadd.f32 %v1821, %v1822
        %v1824 = vrot.slane %v1823, 1
        %v1825 = vadd.f32 %v1823, %v1824
        %v1826 = vmul.f32 %v1796, %v1702
        %v1827 = vmul.f32 %v1797, %v1703
        %v1828 = vrot.slane %v1826, 4
        %v1829 = vadd.f32 %v1826, %v1828
        %v1830 = vrot.slane %v1829, 2
        %v1831 = vadd.f32 %v1829, %v1830
        %v1832 = vrot.slane %v1831, 1
        %v1833 = vadd.f32 %v1831, %v1832
        %v1834 = vrot.slane %v1827, 4
        %v1835 = vadd.f32 %v1827, %v1834
        %v1836 = vrot.slane %v1835, 2
        %v1837 = vadd.f32 %v1835, %v1836
        %v1838 = vrot.slane %v1837, 1
        %v1839 = vadd.f32 %v1837, %v1838
        %v1840 = vmul.f32 %v1796, %v1718
        %v1841 = vmul.f32 %v1797, %v1719
        %v1842 = vrot.slane %v1840, 4
        %v1843 = vadd.f32 %v1840, %v1842
        %v1844 = vrot.slane %v1843, 2
        %v1845 = vadd.f32 %v1843, %v1844
        %v1846 = vrot.slane %v1845, 1
        %v1847 = vadd.f32 %v1845, %v1846
        %v1848 = vrot.slane %v1841, 4
        %v1849 = vadd.f32 %v1841, %v1848
        %v1850 = vrot.slane %v1849, 2
        %v1851 = vadd.f32 %v1849, %v1850
        %v1852 = vrot.slane %v1851, 1
        %v1853 = vadd.f32 %v1851, %v1852
        %v1854 = vmul.f32 %v1796, %v1734
        %v1855 = vmul.f32 %v1797, %v1735
        %v1856 = vrot.slane %v1854, 4
        %v1857 = vadd.f32 %v1854, %v1856
        %v1858 = vrot.slane %v1857, 2
        %v1859 = vadd.f32 %v1857, %v1858
        %v1860 = vrot.slane %v1859, 1
        %v1861 = vadd.f32 %v1859, %v1860
        %v1862 = vrot.slane %v1855, 4
        %v1863 = vadd.f32 %v1855, %v1862
        %v1864 = vrot.slane %v1863, 2
        %v1865 = vadd.f32 %v1863, %v1864
        %v1866 = vrot.slane %v1865, 1
        %v1867 = vadd.f32 %v1865, %v1866
        %v1868 = vsel %vm1067, %v1805, %v1819
        %v1869 = vsel %vm1067, %v1811, %v1825
        %v1870 = vsel %vm1070, %v1868, %v1833
        %v1871 = vsel %vm1070, %v1869, %v1839
        %v1872 = vsel %vm1073, %v1870, %v1847
        %v1873 = vsel %vm1073, %v1871, %v1853
        %v1874 = vsel %vm1076, %v1872, %v1861
        %v1875 = vsel %vm1076, %v1873, %v1867
        %v1876 = vsel %vm1079, %v1874, -inf
        %v1877 = vrot.slane %v1876, 4
        %v1878 = vmax.f32 %v1876, %v1877
        %v1879 = vrot.slane %v1878, 2
        %v1880 = vmax.f32 %v1878, %v1879
        %v1881 = vrot.slane %v1880, 1
        %v1882 = vmax.f32 %v1880, %v1881
        %v1883 = vsel %vm1079, %v1875, -inf
        %v1884 = vrot.slane %v1883, 4
        %v1885 = vmax.f32 %v1883, %v1884
        %v1886 = vrot.slane %v1885, 2
        %v1887 = vmax.f32 %v1885, %v1886
        %v1888 = vrot.slane %v1887, 1
        %v1889 = vmax.f32 %v1887, %v1888
        %v1890 = vsub.f32 %v1874, %v1882
        %v1891 = vsub.f32 %v1875, %v1889
        %v1892 = vmul.f32 %v1890, 1.442695
        %v1893 = vpow.pop %v1892
        %v1894 = vmul.f32 %v1891, 1.442695
        %v1895 = vpow.pop %v1894
        %v1896 = vsel %vm1079, %v1893, 0.0
        %v1897 = vrot.slane %v1896, 4
        %v1898 = vadd.f32 %v1896, %v1897
        %v1899 = vrot.slane %v1898, 2
        %v1900 = vadd.f32 %v1898, %v1899
        %v1901 = vrot.slane %v1900, 1
        %v1902 = vadd.f32 %v1900, %v1901
        %v1903 = vsel %vm1079, %v1895, 0.0
        %v1904 = vrot.slane %v1903, 4
        %v1905 = vadd.f32 %v1903, %v1904
        %v1906 = vrot.slane %v1905, 2
        %v1907 = vadd.f32 %v1905, %v1906
        %v1908 = vrot.slane %v1907, 1
        %v1909 = vadd.f32 %v1907, %v1908
        %v1910 = vrcp.pop %v1902
        %v1911 = vrcp.pop %v1909
        %v1912 = vmul.f32 %v1893, %v1910
        %v1913 = vmul.f32 %v1895, %v1911
        %v1914 = vadd.f32 %v1794, %v1912
        %v1915 = vadd.f32 %v1795, %v1913
        %v1916 = vld [vmem:[%s730 + $0x10] sm:$0xff]
        %v1917 = vld [vmem:[%s730 + $0x18] sm:$0xff]
        %v1918 = vmul.f32 %v1916, %v1670
        %v1919 = vmul.f32 %v1917, %v1671
        %v1920 = vrot.slane %v1918, 4
        %v1921 = vadd.f32 %v1918, %v1920
        %v1922 = vrot.slane %v1921, 2
        %v1923 = vadd.f32 %v1921, %v1922
        %v1924 = vrot.slane %v1923, 1
        %v1925 = vadd.f32 %v1923, %v1924
        %v1926 = vrot.slane %v1919, 4
        %v1927 = vadd.f32 %v1919, %v1926
        %v1928 = vrot.slane %v1927, 2
        %v1929 = vadd.f32 %v1927, %v1928
        %v1930 = vrot.slane %v1929, 1
        %v1931 = vadd.f32 %v1929, %v1930
        %v1932 = vmul.f32 %v1916, %v1686
        %v1933 = vmul.f32 %v1917, %v1687
        %v1934 = vrot.slane %v1932, 4
        %v1935 = vadd.f32 %v1932, %v1934
        %v1936 = vrot.slane %v1935, 2
        %v1937 = vadd.f32 %v1935, %v1936
        %v1938 = vrot.slane %v1937, 1
        %v1939 = vadd.f32 %v1937, %v1938
        %v1940 = vrot.slane %v1933, 4
        %v1941 = vadd.f32 %v1933, %v1940
        %v1942 = vrot.slane %v1941, 2
        %v1943 = vadd.f32 %v1941, %v1942
        %v1944 = vrot.slane %v1943, 1
        %v1945 = vadd.f32 %v1943, %v1944
        %v1946 = vmul.f32 %v1916, %v1702
        %v1947 = vmul.f32 %v1917, %v1703
        %v1948 = vrot.slane %v1946, 4
        %v1949 = vadd.f32 %v1946, %v1948
        %v1950 = vrot.slane %v1949, 2
        %v1951 = vadd.f32 %v1949, %v1950
        %v1952 = vrot.slane %v1951, 1
        %v1953 = vadd.f32 %v1951, %v1952
        %v1954 = vrot.slane %v1947, 4
        %v1955 = vadd.f32 %v1947, %v1954
        %v1956 = vrot.slane %v1955, 2
        %v1957 = vadd.f32 %v1955, %v1956
        %v1958 = vrot.slane %v1957, 1
        %v1959 = vadd.f32 %v1957, %v1958
        %v1960 = vmul.f32 %v1916, %v1718
        %v1961 = vmul.f32 %v1917, %v1719
        %v1962 = vrot.slane %v1960, 4
        %v1963 = vadd.f32 %v1960, %v1962
        %v1964 = vrot.slane %v1963, 2
        %v1965 = vadd.f32 %v1963, %v1964
        %v1966 = vrot.slane %v1965, 1
        %v1967 = vadd.f32 %v1965, %v1966
        %v1968 = vrot.slane %v1961, 4
        %v1969 = vadd.f32 %v1961, %v1968
        %v1970 = vrot.slane %v1969, 2
        %v1971 = vadd.f32 %v1969, %v1970
        %v1972 = vrot.slane %v1971, 1
        %v1973 = vadd.f32 %v1971, %v1972
        %v1974 = vmul.f32 %v1916, %v1734
        %v1975 = vmul.f32 %v1917, %v1735
        %v1976 = vrot.slane %v1974, 4
        %v1977 = vadd.f32 %v1974, %v1976
        %v1978 = vrot.slane %v1977, 2
        %v1979 = vadd.f32 %v1977, %v1978
        %v1980 = vrot.slane %v1979, 1
        %v1981 = vadd.f32 %v1979, %v1980
        %v1982 = vrot.slane %v1975, 4
        %v1983 = vadd.f32 %v1975, %v1982
        %v1984 = vrot.slane %v1983, 2
        %v1985 = vadd.f32 %v1983, %v1984
        %v1986 = vrot.slane %v1985, 1
        %v1987 = vadd.f32 %v1985, %v1986
        %v1988 = vsel %vm1067, %v1925, %v1939
        %v1989 = vsel %vm1067, %v1931, %v1945
        %v1990 = vsel %vm1070, %v1988, %v1953
        %v1991 = vsel %vm1070, %v1989, %v1959
        %v1992 = vsel %vm1073, %v1990, %v1967
        %v1993 = vsel %vm1073, %v1991, %v1973
        %v1994 = vsel %vm1076, %v1992, %v1981
        %v1995 = vsel %vm1076, %v1993, %v1987
        %v1996 = vsel %vm1079, %v1994, -inf
        %v1997 = vrot.slane %v1996, 4
        %v1998 = vmax.f32 %v1996, %v1997
        %v1999 = vrot.slane %v1998, 2
        %v2000 = vmax.f32 %v1998, %v1999
        %v2001 = vrot.slane %v2000, 1
        %v2002 = vmax.f32 %v2000, %v2001
        %v2003 = vsel %vm1079, %v1995, -inf
        %v2004 = vrot.slane %v2003, 4
        %v2005 = vmax.f32 %v2003, %v2004
        %v2006 = vrot.slane %v2005, 2
        %v2007 = vmax.f32 %v2005, %v2006
        %v2008 = vrot.slane %v2007, 1
        %v2009 = vmax.f32 %v2007, %v2008
        %v2010 = vsub.f32 %v1994, %v2002
        %v2011 = vsub.f32 %v1995, %v2009
        %v2012 = vmul.f32 %v2010, 1.442695
        %v2013 = vpow.pop %v2012
        %v2014 = vmul.f32 %v2011, 1.442695
        %v2015 = vpow.pop %v2014
        %v2016 = vsel %vm1079, %v2013, 0.0
        %v2017 = vrot.slane %v2016, 4
        %v2018 = vadd.f32 %v2016, %v2017
        %v2019 = vrot.slane %v2018, 2
        %v2020 = vadd.f32 %v2018, %v2019
        %v2021 = vrot.slane %v2020, 1
        %v2022 = vadd.f32 %v2020, %v2021
        %v2023 = vsel %vm1079, %v2015, 0.0
        %v2024 = vrot.slane %v2023, 4
        %v2025 = vadd.f32 %v2023, %v2024
        %v2026 = vrot.slane %v2025, 2
        %v2027 = vadd.f32 %v2025, %v2026
        %v2028 = vrot.slane %v2027, 1
        %v2029 = vadd.f32 %v2027, %v2028
        %v2030 = vrcp.pop %v2022
        %v2031 = vrcp.pop %v2029
        %v2032 = vmul.f32 %v2013, %v2030
        %v2033 = vmul.f32 %v2015, %v2031
        %v2034 = vadd.f32 %v1914, %v2032
        %v2035 = vadd.f32 %v1915, %v2033
        %v2036 = vld [vmem:[%s851 + $0x10] sm:$0xff]
        %v2037 = vld [vmem:[%s851 + $0x18] sm:$0xff]
        %v2038 = vmul.f32 %v2036, %v1670
        %v2039 = vmul.f32 %v2037, %v1671
        %v2040 = vrot.slane %v2038, 4
        %v2041 = vadd.f32 %v2038, %v2040
        %v2042 = vrot.slane %v2041, 2
        %v2043 = vadd.f32 %v2041, %v2042
        %v2044 = vrot.slane %v2043, 1
        %v2045 = vadd.f32 %v2043, %v2044
        %v2046 = vrot.slane %v2039, 4
        %v2047 = vadd.f32 %v2039, %v2046
        %v2048 = vrot.slane %v2047, 2
        %v2049 = vadd.f32 %v2047, %v2048
        %v2050 = vrot.slane %v2049, 1
        %v2051 = vadd.f32 %v2049, %v2050
        %v2052 = vmul.f32 %v2036, %v1686
        %v2053 = vmul.f32 %v2037, %v1687
        %v2054 = vrot.slane %v2052, 4
        %v2055 = vadd.f32 %v2052, %v2054
        %v2056 = vrot.slane %v2055, 2
        %v2057 = vadd.f32 %v2055, %v2056
        %v2058 = vrot.slane %v2057, 1
        %v2059 = vadd.f32 %v2057, %v2058
        %v2060 = vrot.slane %v2053, 4
        %v2061 = vadd.f32 %v2053, %v2060
        %v2062 = vrot.slane %v2061, 2
        %v2063 = vadd.f32 %v2061, %v2062
        %v2064 = vrot.slane %v2063, 1
        %v2065 = vadd.f32 %v2063, %v2064
        %v2066 = vmul.f32 %v2036, %v1702
        %v2067 = vmul.f32 %v2037, %v1703
        %v2068 = vrot.slane %v2066, 4
        %v2069 = vadd.f32 %v2066, %v2068
        %v2070 = vrot.slane %v2069, 2
        %v2071 = vadd.f32 %v2069, %v2070
        %v2072 = vrot.slane %v2071, 1
        %v2073 = vadd.f32 %v2071, %v2072
        %v2074 = vrot.slane %v2067, 4
        %v2075 = vadd.f32 %v2067, %v2074
        %v2076 = vrot.slane %v2075, 2
        %v2077 = vadd.f32 %v2075, %v2076
        %v2078 = vrot.slane %v2077, 1
        %v2079 = vadd.f32 %v2077, %v2078
        %v2080 = vmul.f32 %v2036, %v1718
        %v2081 = vmul.f32 %v2037, %v1719
        %v2082 = vrot.slane %v2080, 4
        %v2083 = vadd.f32 %v2080, %v2082
        %v2084 = vrot.slane %v2083, 2
        %v2085 = vadd.f32 %v2083, %v2084
        %v2086 = vrot.slane %v2085, 1
        %v2087 = vadd.f32 %v2085, %v2086
        %v2088 = vrot.slane %v2081, 4
        %v2089 = vadd.f32 %v2081, %v2088
        %v2090 = vrot.slane %v2089, 2
        %v2091 = vadd.f32 %v2089, %v2090
        %v2092 = vrot.slane %v2091, 1
        %v2093 = vadd.f32 %v2091, %v2092
        %v2094 = vmul.f32 %v2036, %v1734
        %v2095 = vmul.f32 %v2037, %v1735
        %v2096 = vrot.slane %v2094, 4
        %v2097 = vadd.f32 %v2094, %v2096
        %v2098 = vrot.slane %v2097, 2
        %v2099 = vadd.f32 %v2097, %v2098
        %v2100 = vrot.slane %v2099, 1
        %v2101 = vadd.f32 %v2099, %v2100
        %v2102 = vrot.slane %v2095, 4
        %v2103 = vadd.f32 %v2095, %v2102
        %v2104 = vrot.slane %v2103, 2
        %v2105 = vadd.f32 %v2103, %v2104
        %v2106 = vrot.slane %v2105, 1
        %v2107 = vadd.f32 %v2105, %v2106
        %v2108 = vsel %vm1067, %v2045, %v2059
        %v2109 = vsel %vm1067, %v2051, %v2065
        %v2110 = vsel %vm1070, %v2108, %v2073
        %v2111 = vsel %vm1070, %v2109, %v2079
        %v2112 = vsel %vm1073, %v2110, %v2087
        %v2113 = vsel %vm1073, %v2111, %v2093
        %v2114 = vsel %vm1076, %v2112, %v2101
        %v2115 = vsel %vm1076, %v2113, %v2107
        %v2116 = vsel %vm1079, %v2114, -inf
        %v2117 = vrot.slane %v2116, 4
        %v2118 = vmax.f32 %v2116, %v2117
        %v2119 = vrot.slane %v2118, 2
        %v2120 = vmax.f32 %v2118, %v2119
        %v2121 = vrot.slane %v2120, 1
        %v2122 = vmax.f32 %v2120, %v2121
        %v2123 = vsel %vm1079, %v2115, -inf
        %v2124 = vrot.slane %v2123, 4
        %v2125 = vmax.f32 %v2123, %v2124
        %v2126 = vrot.slane %v2125, 2
        %v2127 = vmax.f32 %v2125, %v2126
        %v2128 = vrot.slane %v2127, 1
        %v2129 = vmax.f32 %v2127, %v2128
        %v2130 = vsub.f32 %v2114, %v2122
        %v2131 = vsub.f32 %v2115, %v2129
        %v2132 = vmul.f32 %v2130, 1.442695
        %v2133 = vpow.pop %v2132
        %v2134 = vmul.f32 %v2131, 1.442695
        %v2135 = vpow.pop %v2134
        %v2136 = vsel %vm1079, %v2133, 0.0
        %v2137 = vrot.slane %v2136, 4
        %v2138 = vadd.f32 %v2136, %v2137
        %v2139 = vrot.slane %v2138, 2
        %v2140 = vadd.f32 %v2138, %v2139
        %v2141 = vrot.slane %v2140, 1
        %v2142 = vadd.f32 %v2140, %v2141
        %v2143 = vsel %vm1079, %v2135, 0.0
        %v2144 = vrot.slane %v2143, 4
        %v2145 = vadd.f32 %v2143, %v2144
        %v2146 = vrot.slane %v2145, 2
        %v2147 = vadd.f32 %v2145, %v2146
        %v2148 = vrot.slane %v2147, 1
        %v2149 = vadd.f32 %v2147, %v2148
        %v2150 = vrcp.pop %v2142
        %v2151 = vrcp.pop %v2149
        %v2152 = vmul.f32 %v2133, %v2150
        %v2153 = vmul.f32 %v2135, %v2151
        %v2154 = vadd.f32 %v2034, %v2152
        %v2155 = vadd.f32 %v2035, %v2153
        %v2156 = vld [vmem:[%s972 + $0x10] sm:$0xff]
        %v2157 = vld [vmem:[%s972 + $0x18] sm:$0xff]
        %v2158 = vmul.f32 %v2156, %v1670
        %v2159 = vmul.f32 %v2157, %v1671
        %v2160 = vrot.slane %v2158, 4
        %v2161 = vadd.f32 %v2158, %v2160
        %v2162 = vrot.slane %v2161, 2
        %v2163 = vadd.f32 %v2161, %v2162
        %v2164 = vrot.slane %v2163, 1
        %v2165 = vadd.f32 %v2163, %v2164
        %v2166 = vrot.slane %v2159, 4
        %v2167 = vadd.f32 %v2159, %v2166
        %v2168 = vrot.slane %v2167, 2
        %v2169 = vadd.f32 %v2167, %v2168
        %v2170 = vrot.slane %v2169, 1
        %v2171 = vadd.f32 %v2169, %v2170
        %v2172 = vmul.f32 %v2156, %v1686
        %v2173 = vmul.f32 %v2157, %v1687
        %v2174 = vrot.slane %v2172, 4
        %v2175 = vadd.f32 %v2172, %v2174
        %v2176 = vrot.slane %v2175, 2
        %v2177 = vadd.f32 %v2175, %v2176
        %v2178 = vrot.slane %v2177, 1
        %v2179 = vadd.f32 %v2177, %v2178
        %v2180 = vrot.slane %v2173, 4
        %v2181 = vadd.f32 %v2173, %v2180
        %v2182 = vrot.slane %v2181, 2
        %v2183 = vadd.f32 %v2181, %v2182
        %v2184 = vrot.slane %v2183, 1
        %v2185 = vadd.f32 %v2183, %v2184
        %v2186 = vmul.f32 %v2156, %v1702
        %v2187 = vmul.f32 %v2157, %v1703
        %v2188 = vrot.slane %v2186, 4
        %v2189 = vadd.f32 %v2186, %v2188
        %v2190 = vrot.slane %v2189, 2
        %v2191 = vadd.f32 %v2189, %v2190
        %v2192 = vrot.slane %v2191, 1
        %v2193 = vadd.f32 %v2191, %v2192
        %v2194 = vrot.slane %v2187, 4
        %v2195 = vadd.f32 %v2187, %v2194
        %v2196 = vrot.slane %v2195, 2
        %v2197 = vadd.f32 %v2195, %v2196
        %v2198 = vrot.slane %v2197, 1
        %v2199 = vadd.f32 %v2197, %v2198
        %v2200 = vmul.f32 %v2156, %v1718
        %v2201 = vmul.f32 %v2157, %v1719
        %v2202 = vrot.slane %v2200, 4
        %v2203 = vadd.f32 %v2200, %v2202
        %v2204 = vrot.slane %v2203, 2
        %v2205 = vadd.f32 %v2203, %v2204
        %v2206 = vrot.slane %v2205, 1
        %v2207 = vadd.f32 %v2205, %v2206
        %v2208 = vrot.slane %v2201, 4
        %v2209 = vadd.f32 %v2201, %v2208
        %v2210 = vrot.slane %v2209, 2
        %v2211 = vadd.f32 %v2209, %v2210
        %v2212 = vrot.slane %v2211, 1
        %v2213 = vadd.f32 %v2211, %v2212
        %v2214 = vmul.f32 %v2156, %v1734
        %v2215 = vmul.f32 %v2157, %v1735
        %v2216 = vrot.slane %v2214, 4
        %v2217 = vadd.f32 %v2214, %v2216
        %v2218 = vrot.slane %v2217, 2
        %v2219 = vadd.f32 %v2217, %v2218
        %v2220 = vrot.slane %v2219, 1
        %v2221 = vadd.f32 %v2219, %v2220
        %v2222 = vrot.slane %v2215, 4
        %v2223 = vadd.f32 %v2215, %v2222
        %v2224 = vrot.slane %v2223, 2
        %v2225 = vadd.f32 %v2223, %v2224
        %v2226 = vrot.slane %v2225, 1
        %v2227 = vadd.f32 %v2225, %v2226
        %v2228 = vsel %vm1067, %v2165, %v2179
        %v2229 = vsel %vm1067, %v2171, %v2185
        %v2230 = vsel %vm1070, %v2228, %v2193
        %v2231 = vsel %vm1070, %v2229, %v2199
        %v2232 = vsel %vm1073, %v2230, %v2207
        %v2233 = vsel %vm1073, %v2231, %v2213
        %v2234 = vsel %vm1076, %v2232, %v2221
        %v2235 = vsel %vm1076, %v2233, %v2227
        %v2236 = vsel %vm1079, %v2234, -inf
        %v2237 = vrot.slane %v2236, 4
        %v2238 = vmax.f32 %v2236, %v2237
        %v2239 = vrot.slane %v2238, 2
        %v2240 = vmax.f32 %v2238, %v2239
        %v2241 = vrot.slane %v2240, 1
        %v2242 = vmax.f32 %v2240, %v2241
        %v2243 = vsel %vm1079, %v2235, -inf
        %v2244 = vrot.slane %v2243, 4
        %v2245 = vmax.f32 %v2243, %v2244
        %v2246 = vrot.slane %v2245, 2
        %v2247 = vmax.f32 %v2245, %v2246
        %v2248 = vrot.slane %v2247, 1
        %v2249 = vmax.f32 %v2247, %v2248
        %v2250 = vsub.f32 %v2234, %v2242
        %v2251 = vsub.f32 %v2235, %v2249
        %v2252 = vmul.f32 %v2250, 1.442695
        %v2253 = vpow.pop %v2252
        %v2254 = vmul.f32 %v2251, 1.442695
        %v2255 = vpow.pop %v2254
        %v2256 = vsel %vm1079, %v2253, 0.0
        %v2257 = vrot.slane %v2256, 4
        %v2258 = vadd.f32 %v2256, %v2257
        %v2259 = vrot.slane %v2258, 2
        %v2260 = vadd.f32 %v2258, %v2259
        %v2261 = vrot.slane %v2260, 1
        %v2262 = vadd.f32 %v2260, %v2261
        %v2263 = vsel %vm1079, %v2255, 0.0
        %v2264 = vrot.slane %v2263, 4
        %v2265 = vadd.f32 %v2263, %v2264
        %v2266 = vrot.slane %v2265, 2
        %v2267 = vadd.f32 %v2265, %v2266
        %v2268 = vrot.slane %v2267, 1
        %v2269 = vadd.f32 %v2267, %v2268
        %v2270 = vrcp.pop %v2262
        %v2271 = vrcp.pop %v2269
        %v2272 = vmul.f32 %v2253, %v2270
        %v2273 = vmul.f32 %v2255, %v2271
        %v2274 = vadd.f32 %v2154, %v2272
        %v2275 = vadd.f32 %v2155, %v2273
        %v2276 = vmul.f32 %v2274, 0.2
        %v2277 = vmul.f32 %v2275, 0.2
        %v2278 = vld [vmem:[#allocation2 + $0x50] sm:$0xff]
        %v2279 = vld [vmem:[#allocation2 + $0x58] sm:$0xff]
        %v2280 = vlaneseq
        %v2281 = vshrl.u32 %v2280, 7
        %v2282 = vsub.s32 0, %v2281
        %v2283 = vrot.slane %v2276, %v2282
        %v2284 = vlaneseq
        %v2285 = vshrl.u32 %v2284, 7
        %v2286 = vsub.s32 0, %v2285
        %v2287 = vrot.slane %v2277, %v2286
        %v2288 = vmul.f32 %v2283, %v2278
        %v2289 = vmul.f32 %v2287, %v2279
        %v2290 = vld [vmem:[%s609 + $0x50] sm:$0xff]
        %v2291 = vld [vmem:[%s609 + $0x58] sm:$0xff]
        %v2292 = vlaneseq
        %v2293 = vshrl.u32 %v2292, 7
        %v2294 = vsub.s32 1, %v2293
        %v2295 = vrot.slane %v2276, %v2294
        %v2296 = vlaneseq
        %v2297 = vshrl.u32 %v2296, 7
        %v2298 = vsub.s32 1, %v2297
        %v2299 = vrot.slane %v2277, %v2298
        %v2300 = vmul.f32 %v2295, %v2290
        %v2301 = vmul.f32 %v2299, %v2291
        %v2302 = vadd.f32 %v2288, %v2300
        %v2303 = vadd.f32 %v2289, %v2301
        %v2304 = vld [vmem:[%s730 + $0x50] sm:$0xff]
        %v2305 = vld [vmem:[%s730 + $0x58] sm:$0xff]
        %v2306 = vlaneseq
        %v2307 = vshrl.u32 %v2306, 7
        %v2308 = vsub.s32 2, %v2307
        %v2309 = vrot.slane %v2276, %v2308
        %v2310 = vlaneseq
        %v2311 = vshrl.u32 %v2310, 7
        %v2312 = vsub.s32 2, %v2311
        %v2313 = vrot.slane %v2277, %v2312
        %v2314 = vmul.f32 %v2309, %v2304
        %v2315 = vmul.f32 %v2313, %v2305
        %v2316 = vadd.f32 %v2302, %v2314
        %v2317 = vadd.f32 %v2303, %v2315
        %v2318 = vld [vmem:[%s851 + $0x50] sm:$0xff]
        %v2319 = vld [vmem:[%s851 + $0x58] sm:$0xff]
        %v2320 = vlaneseq
        %v2321 = vshrl.u32 %v2320, 7
        %v2322 = vsub.s32 3, %v2321
        %v2323 = vrot.slane %v2276, %v2322
        %v2324 = vlaneseq
        %v2325 = vshrl.u32 %v2324, 7
        %v2326 = vsub.s32 3, %v2325
        %v2327 = vrot.slane %v2277, %v2326
        %v2328 = vmul.f32 %v2323, %v2318
        %v2329 = vmul.f32 %v2327, %v2319
        %v2330 = vadd.f32 %v2316, %v2328
        %v2331 = vadd.f32 %v2317, %v2329
        %v2332 = vld [vmem:[%s972 + $0x50] sm:$0xff]
        %v2333 = vld [vmem:[%s972 + $0x58] sm:$0xff]
        %v2334 = vlaneseq
        %v2335 = vshrl.u32 %v2334, 7
        %v2336 = vsub.s32 4, %v2335
        %v2337 = vrot.slane %v2276, %v2336
        %v2338 = vlaneseq
        %v2339 = vshrl.u32 %v2338, 7
        %v2340 = vsub.s32 4, %v2339
        %v2341 = vrot.slane %v2277, %v2340
        %v2342 = vmul.f32 %v2337, %v2332
        %v2343 = vmul.f32 %v2341, %v2333
        %v2344 = vadd.f32 %v2330, %v2342
        %v2345 = vadd.f32 %v2331, %v2343
        %2347 = vset.pattern.permute.xlu0 0
        %2348 = vperm.xlu0 %2347, %v318
        %v2349 = vpop.permute.xlu0 %2348
        %2352 = vset.pattern.permute.xlu0 0
        %2353 = vperm.xlu0 %2352, %v319
        %v2354 = vpop.permute.xlu0 %2353
        %v2357 = vsel %vm369, %v302, 0
        %v2360 = vsel %vm369, %v303, 0
        %2362 = vmatprep.subr.mxu0 %v1667
        %2363 = vmatpush1.msra.mxu0 %v1666
        %2364 = vmatprep.subr.mxu0 %v2345
        %2365 = vmatpush1.msra.mxu0 %v2344
        %2366 = vmatprep.subr.mxu0 0.0
        %2367 = vmatpush1.msra.mxu0 0.0
        %2368 = vmatprep.subr.mxu0 0.0
        %2369 = vmatpush1.msra.mxu0 0.0
        %2370 = vmatprep.subr.mxu0 0.0
        %2371 = vmatpush1.msra.mxu0 0.0
        %2372 = vmatprep.subr.mxu0 0.0
        %2373 = vmatpush1.msra.mxu0 0.0
        %2374 = vmatprep.subr.mxu0 0.0
        %2375 = vmatpush1.msra.mxu0 0.0
        %2376 = vmatprep.subr.mxu0 0.0
        %2377 = vmatpush1.msra.mxu0 0.0
        %2378 = vmatprep.subr.mxu0 0.0
        %2379 = vmatpush1.msra.mxu0 0.0
        %2380 = vmatprep.subr.mxu0 0.0
        %2381 = vmatpush1.msra.mxu0 0.0
        %2382 = vmatprep.subr.mxu0 0.0
        %2383 = vmatpush1.msra.mxu0 0.0
        %2384 = vmatprep.subr.mxu0 0.0
        %2385 = vmatpush1.msra.mxu0 0.0
        %2386 = vmatprep.subr.mxu0 0.0
        %2387 = vmatpush1.msra.mxu0 0.0
        %2388 = vmatprep.subr.mxu0 0.0
        %2389 = vmatpush1.msra.mxu0 0.0
        %2390 = vmatprep.subr.mxu0 0.0
        %2391 = vmatpush1.msra.mxu0 0.0
        %2392 = vmatprep.subr.mxu0 0.0
        %2393 = vmatpush1.msra.mxu0 0.0
        %2394 = vmatprep.subr.mxu0 0.0
        %2395 = vmatpush1.msra.mxu0 0.0
        %2396 = vmatprep.subr.mxu0 0.0
        %2397 = vmatpush1.msra.mxu0 0.0
        %2398 = vmatprep.subr.mxu0 0.0
        %2399 = vmatpush1.msra.mxu0 0.0
        %2400 = vmatprep.subr.mxu0 0.0
        %2401 = vmatpush1.msra.mxu0 0.0
        %2402 = vmatprep.subr.mxu0 0.0
        %2403 = vmatpush1.msra.mxu0 0.0
        %2404 = vmatprep.subr.mxu0 0.0
        %2405 = vmatpush1.msra.mxu0 0.0
        %2406 = vmatprep.subr.mxu0 0.0
        %2407 = vmatpush1.msra.mxu0 0.0
        %2408 = vmatprep.subr.mxu0 0.0
        %2409 = vmatpush1.msra.mxu0 0.0
        %2410 = vmatprep.subr.mxu0 0.0
        %2411 = vmatpush1.msra.mxu0 0.0
        %2412 = vmatprep.subr.mxu0 0.0
        %2413 = vmatpush1.msra.mxu0 0.0
        %2414 = vmatprep.subr.mxu0 0.0
        %2415 = vmatpush1.msra.mxu0 0.0
        %2416 = vmatprep.subr.mxu0 0.0
        %2417 = vmatpush1.msra.mxu0 0.0
        %2418 = vmatprep.subr.mxu0 0.0
        %2419 = vmatpush1.msra.mxu0 0.0
        %2420 = vmatprep.subr.mxu0 0.0
        %2421 = vmatpush1.msra.mxu0 0.0
        %2422 = vmatprep.subr.mxu0 0.0
        %2423 = vmatpush1.msra.mxu0 0.0
        %2424 = vmatprep.subr.mxu0 0.0
        %2425 = vmatpush1.msra.mxu0 0.0
        %2426 = vmatprep.mubr.f32.mxu0 0.0
        %2427 = vmatmul.mubr.f32.gmra.mrb[0].mxu0 %v2357
        %v2428 = vpop.f32.mrb[0].mxu0
        %v2429 = vadd.f32 %v2349, %v2428
        %v2430 = vpop.f32.mrb[0].mxu0
        %v2431 = vadd.f32 %v2349, %v2430
        %2432 = vmatprep.mubr.f32.mxu0 0.0
        %2433 = vmatmul.mubr.f32.gmra.mrb[0].mxu0 %v2360
        %v2434 = vpop.f32.mrb[0].mxu0
        %v2435 = vadd.f32 %v2354, %v2434
        %v2436 = vpop.f32.mrb[0].mxu0
        %v2437 = vadd.f32 %v2354, %v2436
        %2438 = vdwg.mxu0
        %2440 = vset.pattern.permute.xlu0 0
        %2441 = vperm.xlu0 %2440, %v320
        %v2442 = vpop.permute.xlu0 %2441
        %2445 = vset.pattern.permute.xlu0 0
        %2446 = vperm.xlu0 %2445, %v321
        %v2447 = vpop.permute.xlu0 %2446
        %2450 = vset.pattern.permute.xlu0 0
        %2451 = vperm.xlu0 %2450, %v322
        %v2452 = vpop.permute.xlu0 %2451
        %2455 = vset.pattern.permute.xlu0 0
        %2456 = vperm.xlu0 %2455, %v323
        %v2457 = vpop.permute.xlu0 %2456
        %2460 = vset.pattern.permute.xlu0 0
        %2461 = vperm.xlu0 %2460, %v324
        %v2462 = vpop.permute.xlu0 %2461
        %2465 = vset.pattern.permute.xlu0 0
        %2466 = vperm.xlu0 %2465, %v325
        %v2467 = vpop.permute.xlu0 %2466
        %2470 = vset.pattern.permute.xlu0 0
        %2471 = vperm.xlu0 %2470, %v326
        %v2472 = vpop.permute.xlu0 %2471
        %2475 = vset.pattern.permute.xlu0 0
        %2476 = vperm.xlu0 %2475, %v327
        %v2477 = vpop.permute.xlu0 %2476
        %v2480 = vsel %vm369, %v304, 0
        %v2483 = vsel %vm369, %v305, 0
        %v2486 = vsel %vm369, %v306, 0
        %v2489 = vsel %vm369, %v307, 0
        %v2492 = vsel %vm369, %v308, 0
        %v2495 = vsel %vm369, %v309, 0
        %v2498 = vsel %vm369, %v310, 0
        %v2501 = vsel %vm369, %v311, 0
        %2503 = vmatprep.subr.mxu0 %v2431
        %2504 = vmatpush1.msra.mxu0 %v2429
        %2505 = vmatprep.subr.mxu0 %v2437
        %2506 = vmatpush1.msra.mxu0 %v2435
        %2507 = vmatprep.subr.mxu0 0.0
        %2508 = vmatpush1.msra.mxu0 0.0
        %2509 = vmatprep.subr.mxu0 0.0
        %2510 = vmatpush1.msra.mxu0 0.0
        %2511 = vmatprep.subr.mxu0 0.0
        %2512 = vmatpush1.msra.mxu0 0.0
        %2513 = vmatprep.subr.mxu0 0.0
        %2514 = vmatpush1.msra.mxu0 0.0
        %2515 = vmatprep.subr.mxu0 0.0
        %2516 = vmatpush1.msra.mxu0 0.0
        %2517 = vmatprep.subr.mxu0 0.0
        %2518 = vmatpush1.msra.mxu0 0.0
        %2519 = vmatprep.subr.mxu0 0.0
        %2520 = vmatpush1.msra.mxu0 0.0
        %2521 = vmatprep.subr.mxu0 0.0
        %2522 = vmatpush1.msra.mxu0 0.0
        %2523 = vmatprep.subr.mxu0 0.0
        %2524 = vmatpush1.msra.mxu0 0.0
        %2525 = vmatprep.subr.mxu0 0.0
        %2526 = vmatpush1.msra.mxu0 0.0
        %2527 = vmatprep.subr.mxu0 0.0
        %2528 = vmatpush1.msra.mxu0 0.0
        %2529 = vmatprep.subr.mxu0 0.0
        %2530 = vmatpush1.msra.mxu0 0.0
        %2531 = vmatprep.subr.mxu0 0.0
        %2532 = vmatpush1.msra.mxu0 0.0
        %2533 = vmatprep.subr.mxu0 0.0
        %2534 = vmatpush1.msra.mxu0 0.0
        %2535 = vmatprep.subr.mxu0 0.0
        %2536 = vmatpush1.msra.mxu0 0.0
        %2537 = vmatprep.subr.mxu0 0.0
        %2538 = vmatpush1.msra.mxu0 0.0
        %2539 = vmatprep.subr.mxu0 0.0
        %2540 = vmatpush1.msra.mxu0 0.0
        %2541 = vmatprep.subr.mxu0 0.0
        %2542 = vmatpush1.msra.mxu0 0.0
        %2543 = vmatprep.subr.mxu0 0.0
        %2544 = vmatpush1.msra.mxu0 0.0
        %2545 = vmatprep.subr.mxu0 0.0
        %2546 = vmatpush1.msra.mxu0 0.0
        %2547 = vmatprep.subr.mxu0 0.0
        %2548 = vmatpush1.msra.mxu0 0.0
        %2549 = vmatprep.subr.mxu0 0.0
        %2550 = vmatpush1.msra.mxu0 0.0
        %2551 = vmatprep.subr.mxu0 0.0
        %2552 = vmatpush1.msra.mxu0 0.0
        %2553 = vmatprep.subr.mxu0 0.0
        %2554 = vmatpush1.msra.mxu0 0.0
        %2555 = vmatprep.subr.mxu0 0.0
        %2556 = vmatpush1.msra.mxu0 0.0
        %2557 = vmatprep.subr.mxu0 0.0
        %2558 = vmatpush1.msra.mxu0 0.0
        %2559 = vmatprep.subr.mxu0 0.0
        %2560 = vmatpush1.msra.mxu0 0.0
        %2561 = vmatprep.subr.mxu0 0.0
        %2562 = vmatpush1.msra.mxu0 0.0
        %2563 = vmatprep.subr.mxu0 0.0
        %2564 = vmatpush1.msra.mxu0 0.0
        %2565 = vmatprep.subr.mxu0 0.0
        %2566 = vmatpush1.msra.mxu0 0.0
        %2567 = vmatprep.mubr.f32.mxu0 0.0
        %2568 = vmatmul.mubr.f32.gmra.mrb[0].mxu0 %v2480
        %v2569 = vpop.f32.mrb[0].mxu0
        %v2570 = vadd.f32 %v2442, %v2569
        %v2571 = vpop.f32.mrb[0].mxu0
        %v2572 = vadd.f32 %v2442, %v2571
        %2573 = vmatprep.mubr.f32.mxu0 0.0
        %2574 = vmatmul.mubr.f32.gmra.mrb[0].mxu0 %v2483
        %v2575 = vpop.f32.mrb[0].mxu0
        %v2576 = vadd.f32 %v2447, %v2575
        %v2577 = vpop.f32.mrb[0].mxu0
        %v2578 = vadd.f32 %v2447, %v2577
        %2579 = vmatprep.mubr.f32.mxu0 0.0
        %2580 = vmatmul.mubr.f32.gmra.mrb[0].mxu0 %v2486
        %v2581 = vpop.f32.mrb[0].mxu0
        %v2582 = vadd.f32 %v2452, %v2581
        %v2583 = vpop.f32.mrb[0].mxu0
        %v2584 = vadd.f32 %v2452, %v2583
        %2585 = vmatprep.mubr.f32.mxu0 0.0
        %2586 = vmatmul.mubr.f32.gmra.mrb[0].mxu0 %v2489
        %v2587 = vpop.f32.mrb[0].mxu0
        %v2588 = vadd.f32 %v2457, %v2587
        %v2589 = vpop.f32.mrb[0].mxu0
        %v2590 = vadd.f32 %v2457, %v2589
        %2591 = vmatprep.mubr.f32.mxu0 0.0
        %2592 = vmatmul.mubr.f32.gmra.mrb[0].mxu0 %v2492
        %v2593 = vpop.f32.mrb[0].mxu0
        %v2594 = vadd.f32 %v2462, %v2593
        %v2595 = vpop.f32.mrb[0].mxu0
        %v2596 = vadd.f32 %v2462, %v2595
        %2597 = vmatprep.mubr.f32.mxu0 0.0
        %2598 = vmatmul.mubr.f32.gmra.mrb[0].mxu0 %v2495
        %v2599 = vpop.f32.mrb[0].mxu0
        %v2600 = vadd.f32 %v2467, %v2599
        %v2601 = vpop.f32.mrb[0].mxu0
        %v2602 = vadd.f32 %v2467, %v2601
        %2603 = vmatprep.mubr.f32.mxu0 0.0
        %2604 = vmatmul.mubr.f32.gmra.mrb[0].mxu0 %v2498
        %v2605 = vpop.f32.mrb[0].mxu0
        %v2606 = vadd.f32 %v2472, %v2605
        %v2607 = vpop.f32.mrb[0].mxu0
        %v2608 = vadd.f32 %v2472, %v2607
        %2609 = vmatprep.mubr.f32.mxu0 0.0
        %2610 = vmatmul.mubr.f32.gmra.mrb[0].mxu0 %v2501
        %v2611 = vpop.f32.mrb[0].mxu0
        %v2612 = vadd.f32 %v2477, %v2611
        %v2613 = vpop.f32.mrb[0].mxu0
        %v2614 = vadd.f32 %v2477, %v2613
        %2615 = vdwg.mxu0
        %v2616 = vmax.f32 %v2570, 0.0
        %v2617 = vmax.f32 %v2572, 0.0
        %v2618 = vmax.f32 %v2576, 0.0
        %v2619 = vmax.f32 %v2578, 0.0
        %v2620 = vmax.f32 %v2582, 0.0
        %v2621 = vmax.f32 %v2584, 0.0
        %v2622 = vmax.f32 %v2588, 0.0
        %v2623 = vmax.f32 %v2590, 0.0
        %v2624 = vmax.f32 %v2594, 0.0
        %v2625 = vmax.f32 %v2596, 0.0
        %v2626 = vmax.f32 %v2600, 0.0
        %v2627 = vmax.f32 %v2602, 0.0
        %v2628 = vmax.f32 %v2606, 0.0
        %v2629 = vmax.f32 %v2608, 0.0
        %v2630 = vmax.f32 %v2612, 0.0
        %v2631 = vmax.f32 %v2614, 0.0
        %v2632 = vld [vmem:[%s2] sm:$0xff]
        %v2633 = vld [vmem:[%s2 + $0x8] sm:$0xff]
        %v2634 = vld [vmem:[%s2 + $0x10] sm:$0xff]
        %v2635 = vld [vmem:[%s2 + $0x18] sm:$0xff]
        %2637 = vset.pattern.permute.xlu0 0
        %2638 = vperm.xlu0 %2637, %v328
        %v2639 = vpop.permute.xlu0 %2638
        %2642 = vset.pattern.permute.xlu0 0
        %2643 = vperm.xlu0 %2642, %v329
        %v2644 = vpop.permute.xlu0 %2643
        %2647 = vset.pattern.permute.xlu0 0
        %2648 = vperm.xlu0 %2647, %v330
        %v2649 = vpop.permute.xlu0 %2648
        %2652 = vset.pattern.permute.xlu0 0
        %2653 = vperm.xlu0 %2652, %v331
        %v2654 = vpop.permute.xlu0 %2653
        %vm2656 = vcmask 523264
        %v2658 = vsel %vm2656, %v2632, 0
        %v2661 = vsel %vm2656, %v2633, 0
        %v2664 = vsel %vm2656, %v2634, 0
        %v2667 = vsel %vm2656, %v2635, 0
        %2669 = vmatprep.subr.mxu0 %v2617
        %2670 = vmatpush1.msra.mxu0 %v2616
        %2671 = vmatprep.subr.mxu0 %v2619
        %2672 = vmatpush1.msra.mxu0 %v2618
        %2673 = vmatprep.subr.mxu0 %v2621
        %2674 = vmatpush1.msra.mxu0 %v2620
        %2675 = vmatprep.subr.mxu0 %v2623
        %2676 = vmatpush1.msra.mxu0 %v2622
        %2677 = vmatprep.subr.mxu0 %v2625
        %2678 = vmatpush1.msra.mxu0 %v2624
        %2679 = vmatprep.subr.mxu0 %v2627
        %2680 = vmatpush1.msra.mxu0 %v2626
        %2681 = vmatprep.subr.mxu0 %v2629
        %2682 = vmatpush1.msra.mxu0 %v2628
        %2683 = vmatprep.subr.mxu0 %v2631
        %2684 = vmatpush1.msra.mxu0 %v2630
        %2685 = vmatprep.subr.mxu0 0.0
        %2686 = vmatpush1.msra.mxu0 0.0
        %2687 = vmatprep.subr.mxu0 0.0
        %2688 = vmatpush1.msra.mxu0 0.0
        %2689 = vmatprep.subr.mxu0 0.0
        %2690 = vmatpush1.msra.mxu0 0.0
        %2691 = vmatprep.subr.mxu0 0.0
        %2692 = vmatpush1.msra.mxu0 0.0
        %2693 = vmatprep.subr.mxu0 0.0
        %2694 = vmatpush1.msra.mxu0 0.0
        %2695 = vmatprep.subr.mxu0 0.0
        %2696 = vmatpush1.msra.mxu0 0.0
        %2697 = vmatprep.subr.mxu0 0.0
        %2698 = vmatpush1.msra.mxu0 0.0
        %2699 = vmatprep.subr.mxu0 0.0
        %2700 = vmatpush1.msra.mxu0 0.0
        %2701 = vmatprep.subr.mxu0 0.0
        %2702 = vmatpush1.msra.mxu0 0.0
        %2703 = vmatprep.subr.mxu0 0.0
        %2704 = vmatpush1.msra.mxu0 0.0
        %2705 = vmatprep.subr.mxu0 0.0
        %2706 = vmatpush1.msra.mxu0 0.0
        %2707 = vmatprep.subr.mxu0 0.0
        %2708 = vmatpush1.msra.mxu0 0.0
        %2709 = vmatprep.subr.mxu0 0.0
        %2710 = vmatpush1.msra.mxu0 0.0
        %2711 = vmatprep.subr.mxu0 0.0
        %2712 = vmatpush1.msra.mxu0 0.0
        %2713 = vmatprep.subr.mxu0 0.0
        %2714 = vmatpush1.msra.mxu0 0.0
        %2715 = vmatprep.subr.mxu0 0.0
        %2716 = vmatpush1.msra.mxu0 0.0
        %2717 = vmatprep.subr.mxu0 0.0
        %2718 = vmatpush1.msra.mxu0 0.0
        %2719 = vmatprep.subr.mxu0 0.0
        %2720 = vmatpush1.msra.mxu0 0.0
        %2721 = vmatprep.subr.mxu0 0.0
        %2722 = vmatpush1.msra.mxu0 0.0
        %2723 = vmatprep.subr.mxu0 0.0
        %2724 = vmatpush1.msra.mxu0 0.0
        %2725 = vmatprep.subr.mxu0 0.0
        %2726 = vmatpush1.msra.mxu0 0.0
        %2727 = vmatprep.subr.mxu0 0.0
        %2728 = vmatpush1.msra.mxu0 0.0
        %2729 = vmatprep.subr.mxu0 0.0
        %2730 = vmatpush1.msra.mxu0 0.0
        %2731 = vmatprep.subr.mxu0 0.0
        %2732 = vmatpush1.msra.mxu0 0.0
        %2733 = vmatprep.mubr.f32.mxu0 0.0
        %2734 = vmatmul.mubr.f32.gmra.mrb[0].mxu0 %v2658
        %v2735 = vpop.f32.mrb[0].mxu0
        %v2736 = vadd.f32 %v2639, %v2735
        %v2737 = vpop.f32.mrb[0].mxu0
        %v2738 = vadd.f32 %v2639, %v2737
        %2739 = vmatprep.mubr.f32.mxu0 0.0
        %2740 = vmatmul.mubr.f32.gmra.mrb[0].mxu0 %v2661
        %v2741 = vpop.f32.mrb[0].mxu0
        %v2742 = vadd.f32 %v2644, %v2741
        %v2743 = vpop.f32.mrb[0].mxu0
        %v2744 = vadd.f32 %v2644, %v2743
        %2745 = vmatprep.mubr.f32.mxu0 0.0
        %2746 = vmatmul.mubr.f32.gmra.mrb[0].mxu0 %v2664
        %v2747 = vpop.f32.mrb[0].mxu0
        %v2748 = vadd.f32 %v2649, %v2747
        %v2749 = vpop.f32.mrb[0].mxu0
        %v2750 = vadd.f32 %v2649, %v2749
        %2751 = vmatprep.mubr.f32.mxu0 0.0
        %2752 = vmatmul.mubr.f32.gmra.mrb[0].mxu0 %v2667
        %v2753 = vpop.f32.mrb[0].mxu0
        %v2754 = vadd.f32 %v2654, %v2753
        %v2755 = vpop.f32.mrb[0].mxu0
        %v2756 = vadd.f32 %v2654, %v2755
        %2757 = vdwg.mxu0
        %v2758 = vmax.f32 %v2736, 0.0
        %v2759 = vmax.f32 %v2738, 0.0
        %v2760 = vmax.f32 %v2742, 0.0
        %v2761 = vmax.f32 %v2744, 0.0
        %v2762 = vmax.f32 %v2748, 0.0
        %v2763 = vmax.f32 %v2750, 0.0
        %v2764 = vmax.f32 %v2754, 0.0
        %v2765 = vmax.f32 %v2756, 0.0
        %v2766 = vld [vmem:[%s3] sm:$0x1]
        %2768 = vset.pattern.permute.xlu0 0
        %2769 = vperm.xlu0 %2768, %v332
        %v2770 = vpop.permute.xlu0 %2769
        %vm2772 = vcmask 261120
        %v2774 = vsel %vm2772, %v2766, 0
        %2776 = vmatprep.subr.mxu0 %v2759
        %2777 = vmatpush1.msra.mxu0 %v2758
        %2778 = vmatprep.subr.mxu0 %v2761
        %2779 = vmatpush1.msra.mxu0 %v2760
        %2780 = vmatprep.subr.mxu0 %v2763
        %2781 = vmatpush1.msra.mxu0 %v2762
        %2782 = vmatprep.subr.mxu0 %v2765
        %2783 = vmatpush1.msra.mxu0 %v2764
        %2784 = vmatprep.subr.mxu0 0.0
        %2785 = vmatpush1.msra.mxu0 0.0
        %2786 = vmatprep.subr.mxu0 0.0
        %2787 = vmatpush1.msra.mxu0 0.0
        %2788 = vmatprep.subr.mxu0 0.0
        %2789 = vmatpush1.msra.mxu0 0.0
        %2790 = vmatprep.subr.mxu0 0.0
        %2791 = vmatpush1.msra.mxu0 0.0
        %2792 = vmatprep.subr.mxu0 0.0
        %2793 = vmatpush1.msra.mxu0 0.0
        %2794 = vmatprep.subr.mxu0 0.0
        %2795 = vmatpush1.msra.mxu0 0.0
        %2796 = vmatprep.subr.mxu0 0.0
        %2797 = vmatpush1.msra.mxu0 0.0
        %2798 = vmatprep.subr.mxu0 0.0
        %2799 = vmatpush1.msra.mxu0 0.0
        %2800 = vmatprep.subr.mxu0 0.0
        %2801 = vmatpush1.msra.mxu0 0.0
        %2802 = vmatprep.subr.mxu0 0.0
        %2803 = vmatpush1.msra.mxu0 0.0
        %2804 = vmatprep.subr.mxu0 0.0
        %2805 = vmatpush1.msra.mxu0 0.0
        %2806 = vmatprep.subr.mxu0 0.0
        %2807 = vmatpush1.msra.mxu0 0.0
        %2808 = vmatprep.subr.mxu0 0.0
        %2809 = vmatpush1.msra.mxu0 0.0
        %2810 = vmatprep.subr.mxu0 0.0
        %2811 = vmatpush1.msra.mxu0 0.0
        %2812 = vmatprep.subr.mxu0 0.0
        %2813 = vmatpush1.msra.mxu0 0.0
        %2814 = vmatprep.subr.mxu0 0.0
        %2815 = vmatpush1.msra.mxu0 0.0
        %2816 = vmatprep.subr.mxu0 0.0
        %2817 = vmatpush1.msra.mxu0 0.0
        %2818 = vmatprep.subr.mxu0 0.0
        %2819 = vmatpush1.msra.mxu0 0.0
        %2820 = vmatprep.subr.mxu0 0.0
        %2821 = vmatpush1.msra.mxu0 0.0
        %2822 = vmatprep.subr.mxu0 0.0
        %2823 = vmatpush1.msra.mxu0 0.0
        %2824 = vmatprep.subr.mxu0 0.0
        %2825 = vmatpush1.msra.mxu0 0.0
        %2826 = vmatprep.subr.mxu0 0.0
        %2827 = vmatpush1.msra.mxu0 0.0
        %2828 = vmatprep.subr.mxu0 0.0
        %2829 = vmatpush1.msra.mxu0 0.0
        %2830 = vmatprep.subr.mxu0 0.0
        %2831 = vmatpush1.msra.mxu0 0.0
        %2832 = vmatprep.subr.mxu0 0.0
        %2833 = vmatpush1.msra.mxu0 0.0
        %2834 = vmatprep.subr.mxu0 0.0
        %2835 = vmatpush1.msra.mxu0 0.0
        %2836 = vmatprep.subr.mxu0 0.0
        %2837 = vmatpush1.msra.mxu0 0.0
        %2838 = vmatprep.subr.mxu0 0.0
        %2839 = vmatpush1.msra.mxu0 0.0
        %2840 = vmatprep.mubr.f32.mxu0 0.0
        %2841 = vmatmul.mubr.f32.gmra.mrb[0].mxu0 %v2774
        %v2842 = vpop.f32.mrb[0].mxu0
        %v2843 = vadd.f32 %v2770, %v2842
        %v2844 = vpop.f32.mrb[0].mxu0
        %v2845 = vadd.f32 %v2770, %v2844
        %2846 = vdwg.mxu0
        %v2849 = vcombine.low %v2843, %v2845
        %v2851 = vunpack.c.l.s4 1966171168
        %v2852 = vunpack.c.0.s8 %v2851
        %v2853 = vlaneseq
        %v2854 = vshrl.u32 %v2853, 7
        %v2855 = vsub.s32 %v2852, %v2854
        %v2856 = vrot.slane %v2849, %v2855
        %v2858 = vunpack.c.l.s4 1966171168
        %v2859 = vunpack.c.0.s8 %v2858
        %v2860 = vlaneseq
        %v2861 = vshrl.u32 %v2860, 7
        %v2862 = vsub.s32 %v2859, %v2861
        %v2863 = vrot.slane %v2856, %v2862
        %v2865 = vlaneseq
        %vm2866 = vcmp.ge.s32.totalorder %v2865, 0
        %vm2867 = vcmp.lt.s32.totalorder %v2865, 256
        %vm2868 = vmand %vm2866, %vm2867
        %2869 = vst.msk [vmem:[%s293] sm:$0x3] %vm2868, %v2863
        %s2870 = sand.u32 %s137, 1
        %s2871 = scalar_lea.sflag [#allocation5], %s2870
        %s2872 = sand.u32 %s137, 1
        %s2873 = smul.addr %s2872, 2
        %s2874 = scalar_lea.vmem [#allocation4], %s2873
        // Predicated region
        $region79: #{tpu_custom_call.1} parent=73 // pred_check
          %p2875 = pneg %p147
        $region80: #{tpu_custom_call.1} parent=73 // pred_check_branch
          %2877 = sbr.rel (%p2875) target = $region82
        $region81: #{tpu_custom_call.1} parent=73 // pred_region
          %s2878 = smul.u32 2, %s19
          %s2880 = ssub.s32 32, 32
          %2881 = vsyncadd %s2871, %s2880
          %s2882 = smul.addr %s2878, 16
          %s2883 = scalar_lea.hbm %s5, %s2882
          %s2885 = sshll.u32 %s2874, 4
          %s2886 = int_to_ptr.vmem [resolvable:$true] %s2885
          %2888 = dma.vmem_to_hbm [thread:$0]  %s2886, 32, %s2883, %s2871
        $region82: #{tpu_custom_call.1} parent=73 // pred_fallthru
          _
      $region74: #{tpu_custom_call.1} parent=5 // pred_fallthru
        _
      %p2889 = scmp.le.s32.totalorder 2, %s14
      // Predicated region
      $region83: #{tpu_custom_call.1} parent=5 // pred_check
        %p2890 = pneg %p2889
      $region84: #{tpu_custom_call.1} parent=5 // pred_check_branch
        %2892 = sbr.rel (%p2890) target = $region86
      $region85: #{tpu_custom_call.1} parent=5 // pred_region
        %s2893 = ssub.s32 %s14, 2
        // Predicated region
        $region87: #{tpu_custom_call.1} parent=85 // pred_check
          %p2894 = pneg %p153
        $region88: #{tpu_custom_call.1} parent=85 // pred_check_branch
          %2896 = sbr.rel (%p2894) target = $region90
        $region89: #{tpu_custom_call.1} parent=85 // pred_region
          %s2897 = sand.u32 %s138, 1
          %s2898 = scalar_lea.sflag [#allocation5], %s2897
          %s2899 = sand.u32 %s138, 1
          %s2900 = smul.addr %s2899, 2
          %s2901 = scalar_lea.vmem [#allocation4], %s2900
          %2902 = dma.done %s2898, 32
        $region90: #{tpu_custom_call.1} parent=85 // pred_fallthru
          _
      $region86: #{tpu_custom_call.1} parent=5 // pred_fallthru
        _
    $region6: #{tpu_custom_call.1} parent=1 // loop_footer
      %s18 = sadd.s32 1, %s14
    $region7: #{tpu_custom_call.1} parent=1 // loop_footer_branch
      %13 = sbr.rel target = $region3
    $region8: #{tpu_custom_call.1} parent=1 // loop_exit
      _
    %2903 = vsyncpa [#allocation5], 1
    %s2904 = scalar_lea.sflag [#allocation5], 1
    %2905 = vsyncpa %s2904, 1

</llo_original>
